<compile_context>
chip_gen: v7x
topology: tpu7x:2x2x1
jax: 0.10.0
libtpu: 0.0.40
codegen_flags: <defaults>
</compile_context>

<pallas_src>
import math
import functools

import jax
import jax.numpy as jnp
from jax.experimental import pallas as pl
from jax.experimental.pallas import tpu as pltpu

# ----------------------- small, ESM2-like config -----------------------------
B = 2            # batch
S = 8            # sequence length
H = 32           # hidden size
NUM_HEADS = 4
HEAD_DIM = H // NUM_HEADS
FFN = 4 * H
VOCAB = 33       # ESM2 vocab size
NUM_SEGMENTS = 2
NUM_LABELS = 3
NUM_LAYERS = 2
LN_EPS = 1e-5
NEG_BIAS = -1e4  # additive mask value for padded keys

LOGIT_PAD = 128  # lane-dense logits (true labels sliced outside the kernel)
OUT_SUB = 8      # sublane-dense logits output block


# ----------------------------- kernel helpers --------------------------------
def _gelu(x):
    # tanh-approx GELU (EUP-friendly), f32.
    # TODO(synk): exact erf-based GELU if bit-exact parity with HF ESM2 is required.
    c = math.sqrt(2.0 / math.pi)
    return 0.5 * x * (1.0 + jnp.tanh(c * (x + 0.044715 * x * x * x)))


def _layernorm(x, gamma, beta):
    mu = jnp.mean(x, axis=-1, keepdims=True)
    var = jnp.mean((x - mu) * (x - mu), axis=-1, keepdims=True)
    return (x - mu) * jax.lax.rsqrt(var + LN_EPS) * gamma + beta


# ------------------------------ fused Pallas kernel ---------------------------
def fused_forward_kernel(emb_ref, mask_ref, embln_ref,
                         wqkv_ref, bqkv_ref, wo_ref, bvec_ref,
                         wf1_ref, bf1_ref, wf2_ref,
                         wp_ref, bp_ref, wc_ref, bc_ref,
                         out_ref):
    """Whole ESM2 classifier forward for one batch row (grid axis = batch).

    Blocks:
      emb_ref   (1, S, H)   f32          mask_ref (1, 1, S) f32 additive key bias
      embln_ref (2, H)      f32 [g; b]
      wqkv_ref  (L, H, 3H)  bf16         (Wq pre-scaled by 1/sqrt(hd))
      bqkv_ref  (L, 1, 3H)  f32          (bq pre-scaled)
      wo_ref    (L, H, H)   bf16
      bvec_ref  (L, 6, H)   f32 [bo, g1, b1, bf2, g2, b2]
      wf1_ref   (L, H, FFN) bf16         bf1_ref (L, 1, FFN) f32
      wf2_ref   (L, FFN, H) bf16
      wp_ref (H, H) bf16    bp_ref (1, H) f32
      wc_ref (H, 128) bf16  bc_ref (1, 128) f32   (zero-padded past NUM_LABELS)
      out_ref   (1, 8, 128) f32
    """
    x = emb_ref[0]                            # (S, H) f32
    mask3 = mask_ref[0].reshape(1, 1, S)      # hoisted once per batch row

    # Embedding LayerNorm.
    x = _layernorm(x, embln_ref[0:1, :], embln_ref[1:2, :])

    for l in range(NUM_LAYERS):               # tiny, statically unrolled
        bv = bvec_ref[l]                      # (6, H) f32

        # --- multi-head self-attention (single fused QKV matmul) ---
        x_bf = x.astype(jnp.bfloat16)
        qkv = jnp.dot(x_bf, wqkv_ref[l],
                      preferred_element_type=jnp.float32) + bqkv_ref[l]   # (S, 3H)

        # heads leading: (S, 3*NH, hd) -> (3*NH, S, hd); split on leading axis
        qkvh = jnp.swapaxes(qkv.reshape(S, 3 * NUM_HEADS, HEAD_DIM), 0, 1)
        qh = qkvh[0:NUM_HEADS].astype(jnp.bfloat16)                       # (NH, S, hd)
        kh = qkvh[NUM_HEADS:2 * NUM_HEADS].astype(jnp.bfloat16)
        vh = qkvh[2 * NUM_HEADS:3 * NUM_HEADS].astype(jnp.bfloat16)

        s = jnp.einsum('hqd,hkd->hqk', qh, kh,
                       preferred_element_type=jnp.float32)      # scale folded in Wq
        s = s + mask3
        s = s - jnp.max(s, axis=-1, keepdims=True)
        p = jnp.exp(s)
        p = p * pl.reciprocal(jnp.sum(p, axis=-1, keepdims=True), approx=True)
        ctx = jnp.einsum('hqk,hkd->hqd', p.astype(jnp.bfloat16), vh,
                         preferred_element_type=jnp.float32)    # (NH, S, hd)
        ctx = jnp.swapaxes(ctx, 0, 1).reshape(S, H)             # (S, H)

        attn = jnp.dot(ctx.astype(jnp.bfloat16), wo_ref[l],
                       preferred_element_type=jnp.float32) + bv[0:1]
        x = _layernorm(x + attn, bv[1:2], bv[2:3])

        # --- feed-forward ---
        ff = jnp.dot(x.astype(jnp.bfloat16), wf1_ref[l],
                     preferred_element_type=jnp.float32) + bf1_ref[l]
        ff = _gelu(ff)
        ff = jnp.dot(ff.astype(jnp.bfloat16), wf2_ref[l],
                     preferred_element_type=jnp.float32) + bv[3:4]
        x = _layernorm(x + ff, bv[4:5], bv[5:6])

    # --- pooler (CLS token) + classifier head; dropout = identity at inference ---
    cls = x[0:1, :]                                              # (1, H)
    pooled = jnp.tanh(jnp.dot(cls.astype(jnp.bfloat16), wp_ref[...],
                              preferred_element_type=jnp.float32) + bp_ref[...])
    logits = jnp.dot(pooled.astype(jnp.bfloat16), wc_ref[...],
                     preferred_element_type=jnp.float32) + bc_ref[...]   # (1, 128)
    # lane/sublane-dense unmasked store; true logits sliced outside
    out_ref[...] = jnp.broadcast_to(logits.reshape(1, 1, LOGIT_PAD),
                                    (1, OUT_SUB, LOGIT_PAD))


# ------------------------------ wrapper --------------------------------------
def esm2_sequence_classifier_forward(packed, input_ids, attention_mask, segment_ids):
    # Embedding gather (plain-JAX glue) feeding the fused kernel.
    # TODO(synk): move the gather in-kernel via DMA gather if the embedding table
    # needs to stay out of XLA's hands.
    pos_ids = jnp.arange(S, dtype=jnp.int32)
    emb = (packed['word_emb'][input_ids]
           + packed['pos_emb'][pos_ids][None, :, :]
           + packed['seg_emb'][segment_ids]).astype(jnp.float32)
    # additive attention mask bias: 0 for valid keys, -1e4 for padded keys
    mask_bias = ((1.0 - attention_mask.astype(jnp.float32)) * NEG_BIAS).reshape(B, 1, S)

    const2 = lambda b: (0, 0)
    const3 = lambda b: (0, 0, 0)

    out = pl.pallas_call(
        fused_forward_kernel,
        out_shape=jax.ShapeDtypeStruct((B, OUT_SUB, LOGIT_PAD), jnp.float32),
        grid=(B,),
        in_specs=[
            pl.BlockSpec((1, S, H), lambda b: (b, 0, 0)),            # embeddings
            pl.BlockSpec((1, 1, S), lambda b: (b, 0, 0)),            # mask bias
            pl.BlockSpec((2, H), const2),                            # emb LN [g; b]
            pl.BlockSpec((NUM_LAYERS, H, 3 * H), const3),            # fused QKV W
            pl.BlockSpec((NUM_LAYERS, 1, 3 * H), const3),            # fused QKV b
            pl.BlockSpec((NUM_LAYERS, H, H), const3),                # attn out W
            pl.BlockSpec((NUM_LAYERS, 6, H), const3),                # bias / LN pack
            pl.BlockSpec((NUM_LAYERS, H, FFN), const3),              # FFN W1
            pl.BlockSpec((NUM_LAYERS, 1, FFN), const3),              # FFN b1
            pl.BlockSpec((NUM_LAYERS, FFN, H), const3),              # FFN W2
            pl.BlockSpec((H, H), const2),                            # pooler W
            pl.BlockSpec((1, H), const2),                            # pooler b
            pl.BlockSpec((H, LOGIT_PAD), const2),                    # classifier W (padded)
            pl.BlockSpec((1, LOGIT_PAD), const2),                    # classifier b (padded)
        ],
        out_specs=pl.BlockSpec((1, OUT_SUB, LOGIT_PAD), lambda b: (b, 0, 0)),
        compiler_params=pltpu.CompilerParams(
            dimension_semantics=("parallel",)),                      # 2 TCs on v7x
    )(emb, mask_bias, packed['emb_ln'],
      packed['wqkv'], packed['bqkv'], packed['wo'], packed['bvec'],
      packed['wf1'], packed['bf1'], packed['wf2'],
      packed['wp'], packed['bp'], packed['wc'], packed['bc'])

    return out[:, 0, :NUM_LABELS]


# ----------------------- deterministic parameter init -------------------------
def init_params(key, init_std=0.02):
    keys = iter(jax.random.split(key, 64))

    def normal(shape):
        return (init_std * jax.random.normal(next(keys), shape)).astype(jnp.float32)

    params = {
        'word_emb': normal((VOCAB, H)),
        'pos_emb': normal((S, H)),
        'seg_emb': normal((NUM_SEGMENTS, H)),
        'emb_ln_g': jnp.ones((1, H), jnp.float32),
        'emb_ln_b': jnp.zeros((1, H), jnp.float32),
        'pool_w': normal((H, H)),
        'pool_b': jnp.zeros((1, H), jnp.float32),
        # classifier.__reset_parameters: weight ~ N(mean=0, std=0.02), bias = 0
        'cls_w': normal((H, NUM_LABELS)),
        'cls_b': jnp.zeros((1, NUM_LABELS), jnp.float32),
        'layers': [],
    }
    for _ in range(NUM_LAYERS):
        params['layers'].append({
            'wq': normal((H, H)), 'bq': jnp.zeros((1, H), jnp.float32),
            'wk': normal((H, H)), 'bk': jnp.zeros((1, H), jnp.float32),
            'wv': normal((H, H)), 'bv': jnp.zeros((1, H), jnp.float32),
            'wo': normal((H, H)), 'bo': jnp.zeros((1, H), jnp.float32),
            'ln1_g': jnp.ones((1, H), jnp.float32),
            'ln1_b': jnp.zeros((1, H), jnp.float32),
            'wf1': normal((H, FFN)), 'bf1': jnp.zeros((1, FFN), jnp.float32),
            'wf2': normal((FFN, H)), 'bf2': jnp.zeros((1, H), jnp.float32),
            'ln2_g': jnp.ones((1, H), jnp.float32),
            'ln2_b': jnp.zeros((1, H), jnp.float32),
        })
    return params


def pack_params(p):
    """Stack per-layer tensors, fold the attention scale, cast MXU weights to bf16."""
    scale = 1.0 / math.sqrt(HEAD_DIM)
    wqkv, bqkv, wo, bvec, wf1, bf1, wf2 = [], [], [], [], [], [], []
    for lp in p['layers']:
        wqkv.append(jnp.concatenate([lp['wq'] * scale, lp['wk'], lp['wv']], axis=1))  # (H, 3H)
        bqkv.append(jnp.concatenate([lp['bq'] * scale, lp['bk'], lp['bv']], axis=1))  # (1, 3H)
        wo.append(lp['wo'])
        bvec.append(jnp.concatenate(
            [lp['bo'], lp['ln1_g'], lp['ln1_b'],
             lp['bf2'], lp['ln2_g'], lp['ln2_b']], axis=0))                           # (6, H)
        wf1.append(lp['wf1'])
        bf1.append(lp['bf1'])
        wf2.append(lp['wf2'])

    wc_pad = jnp.zeros((H, LOGIT_PAD), jnp.float32).at[:, :NUM_LABELS].set(p['cls_w'])
    bc_pad = jnp.zeros((1, LOGIT_PAD), jnp.float32).at[:, :NUM_LABELS].set(p['cls_b'])

    return {
        'word_emb': p['word_emb'],
        'pos_emb': p['pos_emb'],
        'seg_emb': p['seg_emb'],
        'emb_ln': jnp.concatenate([p['emb_ln_g'], p['emb_ln_b']], axis=0),   # (2, H)
        'wqkv': jnp.stack(wqkv, axis=0).astype(jnp.bfloat16),                # (L, H, 3H)
        'bqkv': jnp.stack(bqkv, axis=0),                                     # (L, 1, 3H) f32
        'wo': jnp.stack(wo, axis=0).astype(jnp.bfloat16),                    # (L, H, H)
        'bvec': jnp.stack(bvec, axis=0),                                     # (L, 6, H) f32
        'wf1': jnp.stack(wf1, axis=0).astype(jnp.bfloat16),                  # (L, H, FFN)
        'bf1': jnp.stack(bf1, axis=0),                                       # (L, 1, FFN) f32
        'wf2': jnp.stack(wf2, axis=0).astype(jnp.bfloat16),                  # (L, FFN, H)
        'wp': p['pool_w'].astype(jnp.bfloat16),                              # (H, H)
        'bp': p['pool_b'],                                                   # (1, H) f32
        'wc': wc_pad.astype(jnp.bfloat16),                                   # (H, 128)
        'bc': bc_pad,                                                        # (1, 128) f32
    }


# ----------------------------------- main --------------------------------------
if __name__ == "__main__":
    root = jax.random.PRNGKey(0)
    k_param, k_ids = jax.random.split(root)

    params = init_params(k_param)
    packed = pack_params(params)

    input_ids = jax.random.randint(k_ids, (B, S), 0, VOCAB, dtype=jnp.int32)
    # second sequence has 2 padded positions to exercise the attention mask
    attention_mask = jnp.array([[1] * S,
                                [1] * (S - 2) + [0, 0]], dtype=jnp.int32)
    segment_ids = jnp.zeros((B, S), dtype=jnp.int32)

    fwd = jax.jit(functools.partial(esm2_sequence_classifier_forward, packed))
    logits = fwd(input_ids, attention_mask, segment_ids)
    jax.block_until_ready(logits)

    assert logits.shape == (B, NUM_LABELS)
    assert logits.dtype == jnp.float32
    assert bool(jnp.all(jnp.isfinite(logits)))
    print("KERNEL_OK")
</pallas_src>

<mosaic_0001>
module attributes {stable_mosaic.version = 11 : i64} {
  func.func @fused_forward_kernel(%arg0: i32, %arg1: memref<1x8x32xf32, #tpu.memory_space<vmem>>, %arg2: memref<1x1x8xf32, #tpu.memory_space<vmem>>, %arg3: memref<2x32xf32, #tpu.memory_space<vmem>>, %arg4: memref<2x32x96xbf16, #tpu.memory_space<vmem>>, %arg5: memref<2x1x96xf32, #tpu.memory_space<vmem>>, %arg6: memref<2x32x32xbf16, #tpu.memory_space<vmem>>, %arg7: memref<2x6x32xf32, #tpu.memory_space<vmem>>, %arg8: memref<2x32x128xbf16, #tpu.memory_space<vmem>>, %arg9: memref<2x1x128xf32, #tpu.memory_space<vmem>>, %arg10: memref<2x128x32xbf16, #tpu.memory_space<vmem>>, %arg11: memref<32x32xbf16, #tpu.memory_space<vmem>>, %arg12: memref<1x32xf32, #tpu.memory_space<vmem>>, %arg13: memref<32x128xbf16, #tpu.memory_space<vmem>>, %arg14: memref<1x128xf32, #tpu.memory_space<vmem>>, %arg15: memref<1x8x128xf32, #tpu.memory_space<vmem>>) attributes {dimension_semantics = [#tpu.dimension_semantics<parallel>], iteration_bounds = array<i64: 2>, scalar_prefetch = 0 : i64, scratch_operands = 0 : i64, tpu.core_type = #tpu.core_type<tc>, window_params = [{transform_indices = @transform_0, window_bounds = array<i64: 1, 8, 32>}, {transform_indices = @transform_1, window_bounds = array<i64: 1, 1, 8>}, {pipeline_mode = #tpu.pipeline_mode<synchronous>, transform_indices = @transform_2, window_bounds = array<i64: 2, 32>}, {pipeline_mode = #tpu.pipeline_mode<synchronous>, transform_indices = @transform_3, window_bounds = array<i64: 2, 32, 96>}, {pipeline_mode = #tpu.pipeline_mode<synchronous>, transform_indices = @transform_4, window_bounds = array<i64: 2, 1, 96>}, {pipeline_mode = #tpu.pipeline_mode<synchronous>, transform_indices = @transform_5, window_bounds = array<i64: 2, 32, 32>}, {pipeline_mode = #tpu.pipeline_mode<synchronous>, transform_indices = @transform_6, window_bounds = array<i64: 2, 6, 32>}, {pipeline_mode = #tpu.pipeline_mode<synchronous>, transform_indices = @transform_7, window_bounds = array<i64: 2, 32, 128>}, {pipeline_mode = #tpu.pipeline_mode<synchronous>, transform_indices = @transform_8, window_bounds = array<i64: 2, 1, 128>}, {pipeline_mode = #tpu.pipeline_mode<synchronous>, transform_indices = @transform_9, window_bounds = array<i64: 2, 128, 32>}, {pipeline_mode = #tpu.pipeline_mode<synchronous>, transform_indices = @transform_10, window_bounds = array<i64: 32, 32>}, {pipeline_mode = #tpu.pipeline_mode<synchronous>, transform_indices = @transform_11, window_bounds = array<i64: 1, 32>}, {pipeline_mode = #tpu.pipeline_mode<synchronous>, transform_indices = @transform_12, window_bounds = array<i64: 32, 128>}, {pipeline_mode = #tpu.pipeline_mode<synchronous>, transform_indices = @transform_13, window_bounds = array<i64: 1, 128>}, {transform_indices = @transform_14, window_bounds = array<i64: 1, 8, 128>}]} {
    %c0 = arith.constant 0 : index
    %c0_0 = arith.constant 0 : index
    %c0_1 = arith.constant 0 : index
    %0 = vector.load %arg1[%c0, %c0_0, %c0_1] : memref<1x8x32xf32, #tpu.memory_space<vmem>>, vector<1x8x32xf32>
    %1 = vector.shape_cast %0 : vector<1x8x32xf32> to vector<8x32xf32>
    %c0_2 = arith.constant 0 : index
    %c0_3 = arith.constant 0 : index
    %c0_4 = arith.constant 0 : index
    %2 = vector.load %arg2[%c0_2, %c0_3, %c0_4] : memref<1x1x8xf32, #tpu.memory_space<vmem>>, vector<1x1x8xf32>
    %3 = vector.shape_cast %2 : vector<1x1x8xf32> to vector<1x8xf32>
    %4 = vector.shape_cast %3 : vector<1x8xf32> to vector<1x1x8xf32>
    %c0_5 = arith.constant 0 : index
    %c0_6 = arith.constant 0 : index
    %5 = vector.load %arg3[%c0_5, %c0_6] : memref<2x32xf32, #tpu.memory_space<vmem>>, vector<1x32xf32>
    %c1 = arith.constant 1 : index
    %c0_7 = arith.constant 0 : index
    %6 = vector.load %arg3[%c1, %c0_7] : memref<2x32xf32, #tpu.memory_space<vmem>>, vector<1x32xf32>
    %cst = arith.constant dense<0.000000e+00> : vector<8xf32>
    %7 = vector.multi_reduction <add>, %1, %cst [1] : vector<8x32xf32> to vector<8xf32>
    %8 = vector.shape_cast %7 : vector<8xf32> to vector<8x1xf32>
    %cst_8 = arith.constant 3.200000e+01 : f32
    %9 = vector.broadcast %cst_8 : f32 to vector<8x1xf32>
    %10 = arith.divf %8, %9 : vector<8x1xf32>
    %11 = vector.broadcast %10 : vector<8x1xf32> to vector<8x32xf32>
    %12 = arith.subf %1, %11 : vector<8x32xf32>
    %13 = vector.broadcast %10 : vector<8x1xf32> to vector<8x32xf32>
    %14 = arith.subf %1, %13 : vector<8x32xf32>
    %15 = arith.mulf %12, %14 : vector<8x32xf32>
    %cst_9 = arith.constant dense<0.000000e+00> : vector<8xf32>
    %16 = vector.multi_reduction <add>, %15, %cst_9 [1] : vector<8x32xf32> to vector<8xf32>
    %17 = vector.shape_cast %16 : vector<8xf32> to vector<8x1xf32>
    %cst_10 = arith.constant 3.200000e+01 : f32
    %18 = vector.broadcast %cst_10 : f32 to vector<8x1xf32>
    %19 = arith.divf %17, %18 : vector<8x1xf32>
    %20 = vector.broadcast %10 : vector<8x1xf32> to vector<8x32xf32>
    %21 = arith.subf %1, %20 : vector<8x32xf32>
    %cst_11 = arith.constant 9.99999974E-6 : f32
    %22 = vector.broadcast %cst_11 : f32 to vector<8x1xf32>
    %23 = arith.addf %19, %22 : vector<8x1xf32>
    %24 = math.rsqrt %23 : vector<8x1xf32>
    %25 = vector.broadcast %24 : vector<8x1xf32> to vector<8x32xf32>
    %26 = arith.mulf %21, %25 : vector<8x32xf32>
    %27 = vector.broadcast %5 : vector<1x32xf32> to vector<8x32xf32>
    %28 = arith.mulf %26, %27 : vector<8x32xf32>
    %29 = vector.broadcast %6 : vector<1x32xf32> to vector<8x32xf32>
    %30 = arith.addf %28, %29 : vector<8x32xf32>
    %c0_12 = arith.constant 0 : index
    %c0_13 = arith.constant 0 : index
    %c0_14 = arith.constant 0 : index
    %31 = vector.load %arg7[%c0_12, %c0_13, %c0_14] : memref<2x6x32xf32, #tpu.memory_space<vmem>>, vector<1x6x32xf32>
    %32 = vector.shape_cast %31 : vector<1x6x32xf32> to vector<6x32xf32>
    %33 = arith.truncf %30 : vector<8x32xf32> to vector<8x32xbf16>
    %c0_15 = arith.constant 0 : index
    %c0_16 = arith.constant 0 : index
    %c0_17 = arith.constant 0 : index
    %34 = vector.load %arg4[%c0_15, %c0_16, %c0_17] : memref<2x32x96xbf16, #tpu.memory_space<vmem>>, vector<1x32x96xbf16>
    %35 = vector.shape_cast %34 : vector<1x32x96xbf16> to vector<32x96xbf16>
    %cst_18 = arith.constant dense<0.000000e+00> : vector<8x96xf32>
    %36 = tpu.matmul %33, %35, %cst_18 {dimension_numbers = #tpu.dot_dimension_numbers<[1], [0], [0], [1], [0, 0, 1, 1], [], []>} : vector<8x32xbf16>, vector<32x96xbf16>, vector<8x96xf32> -> vector<8x96xf32>
    %c0_19 = arith.constant 0 : index
    %c0_20 = arith.constant 0 : index
    %c0_21 = arith.constant 0 : index
    %37 = vector.load %arg5[%c0_19, %c0_20, %c0_21] : memref<2x1x96xf32, #tpu.memory_space<vmem>>, vector<1x1x96xf32>
    %38 = vector.shape_cast %37 : vector<1x1x96xf32> to vector<1x96xf32>
    %39 = vector.broadcast %38 : vector<1x96xf32> to vector<8x96xf32>
    %40 = arith.addf %36, %39 : vector<8x96xf32>
    %41 = vector.shape_cast %40 : vector<8x96xf32> to vector<8x12x8xf32>
    %42 = tpu.transpose %41, [1, 0, 2] : vector<8x12x8xf32> -> vector<12x8x8xf32>
    %43 = vector.extract_strided_slice %42 {offsets = [0, 0, 0], sizes = [4, 8, 8], strides = [1, 1, 1]} : vector<12x8x8xf32> to vector<4x8x8xf32>
    %44 = arith.truncf %43 : vector<4x8x8xf32> to vector<4x8x8xbf16>
    %45 = vector.extract_strided_slice %42 {offsets = [4, 0, 0], sizes = [4, 8, 8], strides = [1, 1, 1]} : vector<12x8x8xf32> to vector<4x8x8xf32>
    %46 = arith.truncf %45 : vector<4x8x8xf32> to vector<4x8x8xbf16>
    %47 = vector.extract_strided_slice %42 {offsets = [8, 0, 0], sizes = [4, 8, 8], strides = [1, 1, 1]} : vector<12x8x8xf32> to vector<4x8x8xf32>
    %48 = arith.truncf %47 : vector<4x8x8xf32> to vector<4x8x8xbf16>
    "tpu.trace_start"() <{level = 10 : i32, message = "hqd,hkd->hqk"}> : () -> ()
    %cst_22 = arith.constant dense<0.000000e+00> : vector<4x8x8xf32>
    %49 = tpu.matmul %44, %46, %cst_22 {dimension_numbers = #tpu.dot_dimension_numbers<[2], [2], [1], [1], [0, 0, 0, 1, 1, 1], [0], [0]>} : vector<4x8x8xbf16>, vector<4x8x8xbf16>, vector<4x8x8xf32> -> vector<4x8x8xf32>
    "tpu.trace_stop"() : () -> ()
    %50 = vector.broadcast %4 : vector<1x1x8xf32> to vector<4x8x8xf32>
    %51 = arith.addf %49, %50 : vector<4x8x8xf32>
    %cst_23 = arith.constant dense<0xFF800000> : vector<4x8xf32>
    %52 = vector.multi_reduction <maximumf>, %51, %cst_23 [2] : vector<4x8x8xf32> to vector<4x8xf32>
    %53 = vector.shape_cast %52 : vector<4x8xf32> to vector<4x8x1xf32>
    %54 = vector.broadcast %53 : vector<4x8x1xf32> to vector<4x8x8xf32>
    %55 = arith.subf %51, %54 : vector<4x8x8xf32>
    %56 = math.exp %55 : vector<4x8x8xf32>
    %cst_24 = arith.constant dense<0.000000e+00> : vector<4x8xf32>
    %57 = vector.multi_reduction <add>, %56, %cst_24 [2] : vector<4x8x8xf32> to vector<4x8xf32>
    %58 = vector.shape_cast %57 : vector<4x8xf32> to vector<4x8x1xf32>
    %59 = tpu.reciprocal %58 {approx = true} : vector<4x8x1xf32> -> vector<4x8x1xf32>
    %60 = vector.broadcast %59 : vector<4x8x1xf32> to vector<4x8x8xf32>
    %61 = arith.mulf %56, %60 : vector<4x8x8xf32>
    %62 = arith.truncf %61 : vector<4x8x8xf32> to vector<4x8x8xbf16>
    "tpu.trace_start"() <{level = 10 : i32, message = "hqk,hkd->hqd"}> : () -> ()
    %cst_25 = arith.constant dense<0.000000e+00> : vector<4x8x8xf32>
    %63 = tpu.matmul %62, %48, %cst_25 {dimension_numbers = #tpu.dot_dimension_numbers<[2], [1], [1], [2], [0, 0, 0, 1, 1, 2], [0], [0]>} : vector<4x8x8xbf16>, vector<4x8x8xbf16>, vector<4x8x8xf32> -> vector<4x8x8xf32>
    "tpu.trace_stop"() : () -> ()
    %64 = tpu.transpose %63, [1, 0, 2] : vector<4x8x8xf32> -> vector<8x4x8xf32>
    %65 = vector.shape_cast %64 : vector<8x4x8xf32> to vector<8x32xf32>
    %66 = arith.truncf %65 : vector<8x32xf32> to vector<8x32xbf16>
    %c0_26 = arith.constant 0 : index
    %c0_27 = arith.constant 0 : index
    %c0_28 = arith.constant 0 : index
    %67 = vector.load %arg6[%c0_26, %c0_27, %c0_28] : memref<2x32x32xbf16, #tpu.memory_space<vmem>>, vector<1x32x32xbf16>
    %68 = vector.shape_cast %67 : vector<1x32x32xbf16> to vector<32x32xbf16>
    %cst_29 = arith.constant dense<0.000000e+00> : vector<8x32xf32>
    %69 = tpu.matmul %66, %68, %cst_29 {dimension_numbers = #tpu.dot_dimension_numbers<[1], [0], [0], [1], [0, 0, 1, 1], [], []>} : vector<8x32xbf16>, vector<32x32xbf16>, vector<8x32xf32> -> vector<8x32xf32>
    %70 = vector.extract_strided_slice %32 {offsets = [0, 0], sizes = [1, 32], strides = [1, 1]} : vector<6x32xf32> to vector<1x32xf32>
    %71 = vector.broadcast %70 : vector<1x32xf32> to vector<8x32xf32>
    %72 = arith.addf %69, %71 : vector<8x32xf32>
    %73 = arith.addf %30, %72 : vector<8x32xf32>
    %74 = vector.extract_strided_slice %32 {offsets = [1, 0], sizes = [1, 32], strides = [1, 1]} : vector<6x32xf32> to vector<1x32xf32>
    %75 = vector.extract_strided_slice %32 {offsets = [2, 0], sizes = [1, 32], strides = [1, 1]} : vector<6x32xf32> to vector<1x32xf32>
    %cst_30 = arith.constant dense<0.000000e+00> : vector<8xf32>
    %76 = vector.multi_reduction <add>, %73, %cst_30 [1] : vector<8x32xf32> to vector<8xf32>
    %77 = vector.shape_cast %76 : vector<8xf32> to vector<8x1xf32>
    %cst_31 = arith.constant 3.200000e+01 : f32
    %78 = vector.broadcast %cst_31 : f32 to vector<8x1xf32>
    %79 = arith.divf %77, %78 : vector<8x1xf32>
    %80 = vector.broadcast %79 : vector<8x1xf32> to vector<8x32xf32>
    %81 = arith.subf %73, %80 : vector<8x32xf32>
    %82 = vector.broadcast %79 : vector<8x1xf32> to vector<8x32xf32>
    %83 = arith.subf %73, %82 : vector<8x32xf32>
    %84 = arith.mulf %81, %83 : vector<8x32xf32>
    %cst_32 = arith.constant dense<0.000000e+00> : vector<8xf32>
    %85 = vector.multi_reduction <add>, %84, %cst_32 [1] : vector<8x32xf32> to vector<8xf32>
    %86 = vector.shape_cast %85 : vector<8xf32> to vector<8x1xf32>
    %cst_33 = arith.constant 3.200000e+01 : f32
    %87 = vector.broadcast %cst_33 : f32 to vector<8x1xf32>
    %88 = arith.divf %86, %87 : vector<8x1xf32>
    %89 = vector.broadcast %79 : vector<8x1xf32> to vector<8x32xf32>
    %90 = arith.subf %73, %89 : vector<8x32xf32>
    %cst_34 = arith.constant 9.99999974E-6 : f32
    %91 = vector.broadcast %cst_34 : f32 to vector<8x1xf32>
    %92 = arith.addf %88, %91 : vector<8x1xf32>
    %93 = math.rsqrt %92 : vector<8x1xf32>
    %94 = vector.broadcast %93 : vector<8x1xf32> to vector<8x32xf32>
    %95 = arith.mulf %90, %94 : vector<8x32xf32>
    %96 = vector.broadcast %74 : vector<1x32xf32> to vector<8x32xf32>
    %97 = arith.mulf %95, %96 : vector<8x32xf32>
    %98 = vector.broadcast %75 : vector<1x32xf32> to vector<8x32xf32>
    %99 = arith.addf %97, %98 : vector<8x32xf32>
    %100 = arith.truncf %99 : vector<8x32xf32> to vector<8x32xbf16>
    %c0_35 = arith.constant 0 : index
    %c0_36 = arith.constant 0 : index
    %c0_37 = arith.constant 0 : index
    %101 = vector.load %arg8[%c0_35, %c0_36, %c0_37] : memref<2x32x128xbf16, #tpu.memory_space<vmem>>, vector<1x32x128xbf16>
    %102 = vector.shape_cast %101 : vector<1x32x128xbf16> to vector<32x128xbf16>
    %cst_38 = arith.constant dense<0.000000e+00> : vector<8x128xf32>
    %103 = tpu.matmul %100, %102, %cst_38 {dimension_numbers = #tpu.dot_dimension_numbers<[1], [0], [0], [1], [0, 0, 1, 1], [], []>} : vector<8x32xbf16>, vector<32x128xbf16>, vector<8x128xf32> -> vector<8x128xf32>
    %c0_39 = arith.constant 0 : index
    %c0_40 = arith.constant 0 : index
    %c0_41 = arith.constant 0 : index
    %104 = vector.load %arg9[%c0_39, %c0_40, %c0_41] : memref<2x1x128xf32, #tpu.memory_space<vmem>>, vector<1x1x128xf32>
    %105 = vector.shape_cast %104 : vector<1x1x128xf32> to vector<1x128xf32>
    %106 = vector.broadcast %105 : vector<1x128xf32> to vector<8x128xf32>
    %107 = arith.addf %103, %106 : vector<8x128xf32>
    %cst_42 = arith.constant 5.000000e-01 : f32
    %108 = vector.broadcast %cst_42 : f32 to vector<8x128xf32>
    %109 = arith.mulf %108, %107 : vector<8x128xf32>
    %cst_43 = arith.constant 4.471500e-02 : f32
    %110 = vector.broadcast %cst_43 : f32 to vector<8x128xf32>
    %111 = arith.mulf %110, %107 : vector<8x128xf32>
    %112 = arith.mulf %111, %107 : vector<8x128xf32>
    %113 = arith.mulf %112, %107 : vector<8x128xf32>
    %114 = arith.addf %107, %113 : vector<8x128xf32>
    %cst_44 = arith.constant 0.797884583 : f32
    %115 = vector.broadcast %cst_44 : f32 to vector<8x128xf32>
    %116 = arith.mulf %115, %114 : vector<8x128xf32>
    %117 = math.tanh %116 : vector<8x128xf32>
    %cst_45 = arith.constant 1.000000e+00 : f32
    %118 = vector.broadcast %cst_45 : f32 to vector<8x128xf32>
    %119 = arith.addf %118, %117 : vector<8x128xf32>
    %120 = arith.mulf %109, %119 : vector<8x128xf32>
    %121 = arith.truncf %120 : vector<8x128xf32> to vector<8x128xbf16>
    %c0_46 = arith.constant 0 : index
    %c0_47 = arith.constant 0 : index
    %c0_48 = arith.constant 0 : index
    %122 = vector.load %arg10[%c0_46, %c0_47, %c0_48] : memref<2x128x32xbf16, #tpu.memory_space<vmem>>, vector<1x128x32xbf16>
    %123 = vector.shape_cast %122 : vector<1x128x32xbf16> to vector<128x32xbf16>
    %cst_49 = arith.constant dense<0.000000e+00> : vector<8x32xf32>
    %124 = tpu.matmul %121, %123, %cst_49 {dimension_numbers = #tpu.dot_dimension_numbers<[1], [0], [0], [1], [0, 0, 1, 1], [], []>} : vector<8x128xbf16>, vector<128x32xbf16>, vector<8x32xf32> -> vector<8x32xf32>
    %125 = vector.extract_strided_slice %32 {offsets = [3, 0], sizes = [1, 32], strides = [1, 1]} : vector<6x32xf32> to vector<1x32xf32>
    %126 = vector.broadcast %125 : vector<1x32xf32> to vector<8x32xf32>
    %127 = arith.addf %124, %126 : vector<8x32xf32>
    %128 = arith.addf %99, %127 : vector<8x32xf32>
    %129 = vector.extract_strided_slice %32 {offsets = [4, 0], sizes = [1, 32], strides = [1, 1]} : vector<6x32xf32> to vector<1x32xf32>
    %130 = vector.extract_strided_slice %32 {offsets = [5, 0], sizes = [1, 32], strides = [1, 1]} : vector<6x32xf32> to vector<1x32xf32>
    %cst_50 = arith.constant dense<0.000000e+00> : vector<8xf32>
    %131 = vector.multi_reduction <add>, %128, %cst_50 [1] : vector<8x32xf32> to vector<8xf32>
    %132 = vector.shape_cast %131 : vector<8xf32> to vector<8x1xf32>
    %cst_51 = arith.constant 3.200000e+01 : f32
    %133 = vector.broadcast %cst_51 : f32 to vector<8x1xf32>
    %134 = arith.divf %132, %133 : vector<8x1xf32>
    %135 = vector.broadcast %134 : vector<8x1xf32> to vector<8x32xf32>
    %136 = arith.subf %128, %135 : vector<8x32xf32>
    %137 = vector.broadcast %134 : vector<8x1xf32> to vector<8x32xf32>
    %138 = arith.subf %128, %137 : vector<8x32xf32>
    %139 = arith.mulf %136, %138 : vector<8x32xf32>
    %cst_52 = arith.constant dense<0.000000e+00> : vector<8xf32>
    %140 = vector.multi_reduction <add>, %139, %cst_52 [1] : vector<8x32xf32> to vector<8xf32>
    %141 = vector.shape_cast %140 : vector<8xf32> to vector<8x1xf32>
    %cst_53 = arith.constant 3.200000e+01 : f32
    %142 = vector.broadcast %cst_53 : f32 to vector<8x1xf32>
    %143 = arith.divf %141, %142 : vector<8x1xf32>
    %144 = vector.broadcast %134 : vector<8x1xf32> to vector<8x32xf32>
    %145 = arith.subf %128, %144 : vector<8x32xf32>
    %cst_54 = arith.constant 9.99999974E-6 : f32
    %146 = vector.broadcast %cst_54 : f32 to vector<8x1xf32>
    %147 = arith.addf %143, %146 : vector<8x1xf32>
    %148 = math.rsqrt %147 : vector<8x1xf32>
    %149 = vector.broadcast %148 : vector<8x1xf32> to vector<8x32xf32>
    %150 = arith.mulf %145, %149 : vector<8x32xf32>
    %151 = vector.broadcast %129 : vector<1x32xf32> to vector<8x32xf32>
    %152 = arith.mulf %150, %151 : vector<8x32xf32>
    %153 = vector.broadcast %130 : vector<1x32xf32> to vector<8x32xf32>
    %154 = arith.addf %152, %153 : vector<8x32xf32>
    %c1_55 = arith.constant 1 : index
    %c0_56 = arith.constant 0 : index
    %c0_57 = arith.constant 0 : index
    %155 = vector.load %arg7[%c1_55, %c0_56, %c0_57] : memref<2x6x32xf32, #tpu.memory_space<vmem>>, vector<1x6x32xf32>
    %156 = vector.shape_cast %155 : vector<1x6x32xf32> to vector<6x32xf32>
    %157 = arith.truncf %154 : vector<8x32xf32> to vector<8x32xbf16>
    %c1_58 = arith.constant 1 : index
    %c0_59 = arith.constant 0 : index
    %c0_60 = arith.constant 0 : index
    %158 = vector.load %arg4[%c1_58, %c0_59, %c0_60] : memref<2x32x96xbf16, #tpu.memory_space<vmem>>, vector<1x32x96xbf16>
    %159 = vector.shape_cast %158 : vector<1x32x96xbf16> to vector<32x96xbf16>
    %cst_61 = arith.constant dense<0.000000e+00> : vector<8x96xf32>
    %160 = tpu.matmul %157, %159, %cst_61 {dimension_numbers = #tpu.dot_dimension_numbers<[1], [0], [0], [1], [0, 0, 1, 1], [], []>} : vector<8x32xbf16>, vector<32x96xbf16>, vector<8x96xf32> -> vector<8x96xf32>
    %c1_62 = arith.constant 1 : index
    %c0_63 = arith.constant 0 : index
    %c0_64 = arith.constant 0 : index
    %161 = vector.load %arg5[%c1_62, %c0_63, %c0_64] : memref<2x1x96xf32, #tpu.memory_space<vmem>>, vector<1x1x96xf32>
    %162 = vector.shape_cast %161 : vector<1x1x96xf32> to vector<1x96xf32>
    %163 = vector.broadcast %162 : vector<1x96xf32> to vector<8x96xf32>
    %164 = arith.addf %160, %163 : vector<8x96xf32>
    %165 = vector.shape_cast %164 : vector<8x96xf32> to vector<8x12x8xf32>
    %166 = tpu.transpose %165, [1, 0, 2] : vector<8x12x8xf32> -> vector<12x8x8xf32>
    %167 = vector.extract_strided_slice %166 {offsets = [0, 0, 0], sizes = [4, 8, 8], strides = [1, 1, 1]} : vector<12x8x8xf32> to vector<4x8x8xf32>
    %168 = arith.truncf %167 : vector<4x8x8xf32> to vector<4x8x8xbf16>
    %169 = vector.extract_strided_slice %166 {offsets = [4, 0, 0], sizes = [4, 8, 8], strides = [1, 1, 1]} : vector<12x8x8xf32> to vector<4x8x8xf32>
    %170 = arith.truncf %169 : vector<4x8x8xf32> to vector<4x8x8xbf16>
    %171 = vector.extract_strided_slice %166 {offsets = [8, 0, 0], sizes = [4, 8, 8], strides = [1, 1, 1]} : vector<12x8x8xf32> to vector<4x8x8xf32>
    %172 = arith.truncf %171 : vector<4x8x8xf32> to vector<4x8x8xbf16>
    "tpu.trace_start"() <{level = 10 : i32, message = "hqd,hkd->hqk"}> : () -> ()
    %cst_65 = arith.constant dense<0.000000e+00> : vector<4x8x8xf32>
    %173 = tpu.matmul %168, %170, %cst_65 {dimension_numbers = #tpu.dot_dimension_numbers<[2], [2], [1], [1], [0, 0, 0, 1, 1, 1], [0], [0]>} : vector<4x8x8xbf16>, vector<4x8x8xbf16>, vector<4x8x8xf32> -> vector<4x8x8xf32>
    "tpu.trace_stop"() : () -> ()
    %174 = vector.broadcast %4 : vector<1x1x8xf32> to vector<4x8x8xf32>
    %175 = arith.addf %173, %174 : vector<4x8x8xf32>
    %cst_66 = arith.constant dense<0xFF800000> : vector<4x8xf32>
    %176 = vector.multi_reduction <maximumf>, %175, %cst_66 [2] : vector<4x8x8xf32> to vector<4x8xf32>
    %177 = vector.shape_cast %176 : vector<4x8xf32> to vector<4x8x1xf32>
    %178 = vector.broadcast %177 : vector<4x8x1xf32> to vector<4x8x8xf32>
    %179 = arith.subf %175, %178 : vector<4x8x8xf32>
    %180 = math.exp %179 : vector<4x8x8xf32>
    %cst_67 = arith.constant dense<0.000000e+00> : vector<4x8xf32>
    %181 = vector.multi_reduction <add>, %180, %cst_67 [2] : vector<4x8x8xf32> to vector<4x8xf32>
    %182 = vector.shape_cast %181 : vector<4x8xf32> to vector<4x8x1xf32>
    %183 = tpu.reciprocal %182 {approx = true} : vector<4x8x1xf32> -> vector<4x8x1xf32>
    %184 = vector.broadcast %183 : vector<4x8x1xf32> to vector<4x8x8xf32>
    %185 = arith.mulf %180, %184 : vector<4x8x8xf32>
    %186 = arith.truncf %185 : vector<4x8x8xf32> to vector<4x8x8xbf16>
    "tpu.trace_start"() <{level = 10 : i32, message = "hqk,hkd->hqd"}> : () -> ()
    %cst_68 = arith.constant dense<0.000000e+00> : vector<4x8x8xf32>
    %187 = tpu.matmul %186, %172, %cst_68 {dimension_numbers = #tpu.dot_dimension_numbers<[2], [1], [1], [2], [0, 0, 0, 1, 1, 2], [0], [0]>} : vector<4x8x8xbf16>, vector<4x8x8xbf16>, vector<4x8x8xf32> -> vector<4x8x8xf32>
    "tpu.trace_stop"() : () -> ()
    %188 = tpu.transpose %187, [1, 0, 2] : vector<4x8x8xf32> -> vector<8x4x8xf32>
    %189 = vector.shape_cast %188 : vector<8x4x8xf32> to vector<8x32xf32>
    %190 = arith.truncf %189 : vector<8x32xf32> to vector<8x32xbf16>
    %c1_69 = arith.constant 1 : index
    %c0_70 = arith.constant 0 : index
    %c0_71 = arith.constant 0 : index
    %191 = vector.load %arg6[%c1_69, %c0_70, %c0_71] : memref<2x32x32xbf16, #tpu.memory_space<vmem>>, vector<1x32x32xbf16>
    %192 = vector.shape_cast %191 : vector<1x32x32xbf16> to vector<32x32xbf16>
    %cst_72 = arith.constant dense<0.000000e+00> : vector<8x32xf32>
    %193 = tpu.matmul %190, %192, %cst_72 {dimension_numbers = #tpu.dot_dimension_numbers<[1], [0], [0], [1], [0, 0, 1, 1], [], []>} : vector<8x32xbf16>, vector<32x32xbf16>, vector<8x32xf32> -> vector<8x32xf32>
    %194 = vector.extract_strided_slice %156 {offsets = [0, 0], sizes = [1, 32], strides = [1, 1]} : vector<6x32xf32> to vector<1x32xf32>
    %195 = vector.broadcast %194 : vector<1x32xf32> to vector<8x32xf32>
    %196 = arith.addf %193, %195 : vector<8x32xf32>
    %197 = arith.addf %154, %196 : vector<8x32xf32>
    %198 = vector.extract_strided_slice %156 {offsets = [1, 0], sizes = [1, 32], strides = [1, 1]} : vector<6x32xf32> to vector<1x32xf32>
    %199 = vector.extract_strided_slice %156 {offsets = [2, 0], sizes = [1, 32], strides = [1, 1]} : vector<6x32xf32> to vector<1x32xf32>
    %cst_73 = arith.constant dense<0.000000e+00> : vector<8xf32>
    %200 = vector.multi_reduction <add>, %197, %cst_73 [1] : vector<8x32xf32> to vector<8xf32>
    %201 = vector.shape_cast %200 : vector<8xf32> to vector<8x1xf32>
    %cst_74 = arith.constant 3.200000e+01 : f32
    %202 = vector.broadcast %cst_74 : f32 to vector<8x1xf32>
    %203 = arith.divf %201, %202 : vector<8x1xf32>
    %204 = vector.broadcast %203 : vector<8x1xf32> to vector<8x32xf32>
    %205 = arith.subf %197, %204 : vector<8x32xf32>
    %206 = vector.broadcast %203 : vector<8x1xf32> to vector<8x32xf32>
    %207 = arith.subf %197, %206 : vector<8x32xf32>
    %208 = arith.mulf %205, %207 : vector<8x32xf32>
    %cst_75 = arith.constant dense<0.000000e+00> : vector<8xf32>
    %209 = vector.multi_reduction <add>, %208, %cst_75 [1] : vector<8x32xf32> to vector<8xf32>
    %210 = vector.shape_cast %209 : vector<8xf32> to vector<8x1xf32>
    %cst_76 = arith.constant 3.200000e+01 : f32
    %211 = vector.broadcast %cst_76 : f32 to vector<8x1xf32>
    %212 = arith.divf %210, %211 : vector<8x1xf32>
    %213 = vector.broadcast %203 : vector<8x1xf32> to vector<8x32xf32>
    %214 = arith.subf %197, %213 : vector<8x32xf32>
    %cst_77 = arith.constant 9.99999974E-6 : f32
    %215 = vector.broadcast %cst_77 : f32 to vector<8x1xf32>
    %216 = arith.addf %212, %215 : vector<8x1xf32>
    %217 = math.rsqrt %216 : vector<8x1xf32>
    %218 = vector.broadcast %217 : vector<8x1xf32> to vector<8x32xf32>
    %219 = arith.mulf %214, %218 : vector<8x32xf32>
    %220 = vector.broadcast %198 : vector<1x32xf32> to vector<8x32xf32>
    %221 = arith.mulf %219, %220 : vector<8x32xf32>
    %222 = vector.broadcast %199 : vector<1x32xf32> to vector<8x32xf32>
    %223 = arith.addf %221, %222 : vector<8x32xf32>
    %224 = arith.truncf %223 : vector<8x32xf32> to vector<8x32xbf16>
    %c1_78 = arith.constant 1 : index
    %c0_79 = arith.constant 0 : index
    %c0_80 = arith.constant 0 : index
    %225 = vector.load %arg8[%c1_78, %c0_79, %c0_80] : memref<2x32x128xbf16, #tpu.memory_space<vmem>>, vector<1x32x128xbf16>
    %226 = vector.shape_cast %225 : vector<1x32x128xbf16> to vector<32x128xbf16>
    %cst_81 = arith.constant dense<0.000000e+00> : vector<8x128xf32>
    %227 = tpu.matmul %224, %226, %cst_81 {dimension_numbers = #tpu.dot_dimension_numbers<[1], [0], [0], [1], [0, 0, 1, 1], [], []>} : vector<8x32xbf16>, vector<32x128xbf16>, vector<8x128xf32> -> vector<8x128xf32>
    %c1_82 = arith.constant 1 : index
    %c0_83 = arith.constant 0 : index
    %c0_84 = arith.constant 0 : index
    %228 = vector.load %arg9[%c1_82, %c0_83, %c0_84] : memref<2x1x128xf32, #tpu.memory_space<vmem>>, vector<1x1x128xf32>
    %229 = vector.shape_cast %228 : vector<1x1x128xf32> to vector<1x128xf32>
    %230 = vector.broadcast %229 : vector<1x128xf32> to vector<8x128xf32>
    %231 = arith.addf %227, %230 : vector<8x128xf32>
    %cst_85 = arith.constant 5.000000e-01 : f32
    %232 = vector.broadcast %cst_85 : f32 to vector<8x128xf32>
    %233 = arith.mulf %232, %231 : vector<8x128xf32>
    %cst_86 = arith.constant 4.471500e-02 : f32
    %234 = vector.broadcast %cst_86 : f32 to vector<8x128xf32>
    %235 = arith.mulf %234, %231 : vector<8x128xf32>
    %236 = arith.mulf %235, %231 : vector<8x128xf32>
    %237 = arith.mulf %236, %231 : vector<8x128xf32>
    %238 = arith.addf %231, %237 : vector<8x128xf32>
    %cst_87 = arith.constant 0.797884583 : f32
    %239 = vector.broadcast %cst_87 : f32 to vector<8x128xf32>
    %240 = arith.mulf %239, %238 : vector<8x128xf32>
    %241 = math.tanh %240 : vector<8x128xf32>
    %cst_88 = arith.constant 1.000000e+00 : f32
    %242 = vector.broadcast %cst_88 : f32 to vector<8x128xf32>
    %243 = arith.addf %242, %241 : vector<8x128xf32>
    %244 = arith.mulf %233, %243 : vector<8x128xf32>
    %245 = arith.truncf %244 : vector<8x128xf32> to vector<8x128xbf16>
    %c1_89 = arith.constant 1 : index
    %c0_90 = arith.constant 0 : index
    %c0_91 = arith.constant 0 : index
    %246 = vector.load %arg10[%c1_89, %c0_90, %c0_91] : memref<2x128x32xbf16, #tpu.memory_space<vmem>>, vector<1x128x32xbf16>
    %247 = vector.shape_cast %246 : vector<1x128x32xbf16> to vector<128x32xbf16>
    %cst_92 = arith.constant dense<0.000000e+00> : vector<8x32xf32>
    %248 = tpu.matmul %245, %247, %cst_92 {dimension_numbers = #tpu.dot_dimension_numbers<[1], [0], [0], [1], [0, 0, 1, 1], [], []>} : vector<8x128xbf16>, vector<128x32xbf16>, vector<8x32xf32> -> vector<8x32xf32>
    %249 = vector.extract_strided_slice %156 {offsets = [3, 0], sizes = [1, 32], strides = [1, 1]} : vector<6x32xf32> to vector<1x32xf32>
    %250 = vector.broadcast %249 : vector<1x32xf32> to vector<8x32xf32>
    %251 = arith.addf %248, %250 : vector<8x32xf32>
    %252 = arith.addf %223, %251 : vector<8x32xf32>
    %253 = vector.extract_strided_slice %156 {offsets = [4, 0], sizes = [1, 32], strides = [1, 1]} : vector<6x32xf32> to vector<1x32xf32>
    %254 = vector.extract_strided_slice %156 {offsets = [5, 0], sizes = [1, 32], strides = [1, 1]} : vector<6x32xf32> to vector<1x32xf32>
    %cst_93 = arith.constant dense<0.000000e+00> : vector<8xf32>
    %255 = vector.multi_reduction <add>, %252, %cst_93 [1] : vector<8x32xf32> to vector<8xf32>
    %256 = vector.shape_cast %255 : vector<8xf32> to vector<8x1xf32>
    %cst_94 = arith.constant 3.200000e+01 : f32
    %257 = vector.broadcast %cst_94 : f32 to vector<8x1xf32>
    %258 = arith.divf %256, %257 : vector<8x1xf32>
    %259 = vector.broadcast %258 : vector<8x1xf32> to vector<8x32xf32>
    %260 = arith.subf %252, %259 : vector<8x32xf32>
    %261 = vector.broadcast %258 : vector<8x1xf32> to vector<8x32xf32>
    %262 = arith.subf %252, %261 : vector<8x32xf32>
    %263 = arith.mulf %260, %262 : vector<8x32xf32>
    %cst_95 = arith.constant dense<0.000000e+00> : vector<8xf32>
    %264 = vector.multi_reduction <add>, %263, %cst_95 [1] : vector<8x32xf32> to vector<8xf32>
    %265 = vector.shape_cast %264 : vector<8xf32> to vector<8x1xf32>
    %cst_96 = arith.constant 3.200000e+01 : f32
    %266 = vector.broadcast %cst_96 : f32 to vector<8x1xf32>
    %267 = arith.divf %265, %266 : vector<8x1xf32>
    %268 = vector.broadcast %258 : vector<8x1xf32> to vector<8x32xf32>
    %269 = arith.subf %252, %268 : vector<8x32xf32>
    %cst_97 = arith.constant 9.99999974E-6 : f32
    %270 = vector.broadcast %cst_97 : f32 to vector<8x1xf32>
    %271 = arith.addf %267, %270 : vector<8x1xf32>
    %272 = math.rsqrt %271 : vector<8x1xf32>
    %273 = vector.broadcast %272 : vector<8x1xf32> to vector<8x32xf32>
    %274 = arith.mulf %269, %273 : vector<8x32xf32>
    %275 = vector.broadcast %253 : vector<1x32xf32> to vector<8x32xf32>
    %276 = arith.mulf %274, %275 : vector<8x32xf32>
    %277 = vector.broadcast %254 : vector<1x32xf32> to vector<8x32xf32>
    %278 = arith.addf %276, %277 : vector<8x32xf32>
    %279 = vector.extract_strided_slice %278 {offsets = [0, 0], sizes = [1, 32], strides = [1, 1]} : vector<8x32xf32> to vector<1x32xf32>
    %280 = arith.truncf %279 : vector<1x32xf32> to vector<1x32xbf16>
    %c0_98 = arith.constant 0 : index
    %c0_99 = arith.constant 0 : index
    %281 = vector.load %arg11[%c0_98, %c0_99] : memref<32x32xbf16, #tpu.memory_space<vmem>>, vector<32x32xbf16>
    %cst_100 = arith.constant dense<0.000000e+00> : vector<1x32xf32>
    %282 = tpu.matmul %280, %281, %cst_100 {dimension_numbers = #tpu.dot_dimension_numbers<[1], [0], [0], [1], [0, 0, 1, 1], [], []>} : vector<1x32xbf16>, vector<32x32xbf16>, vector<1x32xf32> -> vector<1x32xf32>
    %c0_101 = arith.constant 0 : index
    %c0_102 = arith.constant 0 : index
    %283 = vector.load %arg12[%c0_101, %c0_102] : memref<1x32xf32, #tpu.memory_space<vmem>>, vector<1x32xf32>
    %284 = arith.addf %282, %283 : vector<1x32xf32>
    %285 = math.tanh %284 : vector<1x32xf32>
    %286 = arith.truncf %285 : vector<1x32xf32> to vector<1x32xbf16>
    %c0_103 = arith.constant 0 : index
    %c0_104 = arith.constant 0 : index
    %287 = vector.load %arg13[%c0_103, %c0_104] : memref<32x128xbf16, #tpu.memory_space<vmem>>, vector<32x128xbf16>
    %cst_105 = arith.constant dense<0.000000e+00> : vector<1x128xf32>
    %288 = tpu.matmul %286, %287, %cst_105 {dimension_numbers = #tpu.dot_dimension_numbers<[1], [0], [0], [1], [0, 0, 1, 1], [], []>} : vector<1x32xbf16>, vector<32x128xbf16>, vector<1x128xf32> -> vector<1x128xf32>
    %c0_106 = arith.constant 0 : index
    %c0_107 = arith.constant 0 : index
    %289 = vector.load %arg14[%c0_106, %c0_107] : memref<1x128xf32, #tpu.memory_space<vmem>>, vector<1x128xf32>
    %290 = arith.addf %288, %289 : vector<1x128xf32>
    %291 = vector.shape_cast %290 : vector<1x128xf32> to vector<1x1x128xf32>
    %292 = vector.shape_cast %291 : vector<1x1x128xf32> to vector<1x1x128xf32>
    %293 = vector.broadcast %292 : vector<1x1x128xf32> to vector<1x8x128xf32>
    %c0_108 = arith.constant 0 : index
    %c0_109 = arith.constant 0 : index
    %c0_110 = arith.constant 0 : index
    %294 = vector.load %arg15[%c0_108, %c0_109, %c0_110] : memref<1x8x128xf32, #tpu.memory_space<vmem>>, vector<1x8x128xf32>
    tpu.vector_store %arg15[%c0_108, %c0_109, %c0_110], %293 {strides = array<i32>} : memref<1x8x128xf32, #tpu.memory_space<vmem>>, vector<1x8x128xf32>,
    return
  }
  func.func @transform_0(%arg0: i32) -> (i32, i32, i32) {
    %c0_i32 = arith.constant 0 : i32
    %c0_i32_0 = arith.constant 0 : i32
    %c0_i32_1 = arith.constant 0 : i32
    return %arg0, %c0_i32, %c0_i32_0 : i32, i32, i32
  }
  func.func @transform_1(%arg0: i32) -> (i32, i32, i32) {
    %c0_i32 = arith.constant 0 : i32
    %c0_i32_0 = arith.constant 0 : i32
    %c0_i32_1 = arith.constant 0 : i32
    return %arg0, %c0_i32, %c0_i32_0 : i32, i32, i32
  }
  func.func @transform_2(%arg0: i32) -> (i32, i32) {
    %c0_i32 = arith.constant 0 : i32
    %c0_i32_0 = arith.constant 0 : i32
    %c0_i32_1 = arith.constant 0 : i32
    return %c0_i32, %c0_i32_0 : i32, i32
  }
  func.func @transform_3(%arg0: i32) -> (i32, i32, i32) {
    %c0_i32 = arith.constant 0 : i32
    %c0_i32_0 = arith.constant 0 : i32
    %c0_i32_1 = arith.constant 0 : i32
    %c0_i32_2 = arith.constant 0 : i32
    return %c0_i32, %c0_i32_0, %c0_i32_1 : i32, i32, i32
  }
  func.func @transform_4(%arg0: i32) -> (i32, i32, i32) {
    %c0_i32 = arith.constant 0 : i32
    %c0_i32_0 = arith.constant 0 : i32
    %c0_i32_1 = arith.constant 0 : i32
    %c0_i32_2 = arith.constant 0 : i32
    return %c0_i32, %c0_i32_0, %c0_i32_1 : i32, i32, i32
  }
  func.func @transform_5(%arg0: i32) -> (i32, i32, i32) {
    %c0_i32 = arith.constant 0 : i32
    %c0_i32_0 = arith.constant 0 : i32
    %c0_i32_1 = arith.constant 0 : i32
    %c0_i32_2 = arith.constant 0 : i32
    return %c0_i32, %c0_i32_0, %c0_i32_1 : i32, i32, i32
  }
  func.func @transform_6(%arg0: i32) -> (i32, i32, i32) {
    %c0_i32 = arith.constant 0 : i32
    %c0_i32_0 = arith.constant 0 : i32
    %c0_i32_1 = arith.constant 0 : i32
    %c0_i32_2 = arith.constant 0 : i32
    return %c0_i32, %c0_i32_0, %c0_i32_1 : i32, i32, i32
  }
  func.func @transform_7(%arg0: i32) -> (i32, i32, i32) {
    %c0_i32 = arith.constant 0 : i32
    %c0_i32_0 = arith.constant 0 : i32
    %c0_i32_1 = arith.constant 0 : i32
    %c0_i32_2 = arith.constant 0 : i32
    return %c0_i32, %c0_i32_0, %c0_i32_1 : i32, i32, i32
  }
  func.func @transform_8(%arg0: i32) -> (i32, i32, i32) {
    %c0_i32 = arith.constant 0 : i32
    %c0_i32_0 = arith.constant 0 : i32
    %c0_i32_1 = arith.constant 0 : i32
    %c0_i32_2 = arith.constant 0 : i32
    return %c0_i32, %c0_i32_0, %c0_i32_1 : i32, i32, i32
  }
  func.func @transform_9(%arg0: i32) -> (i32, i32, i32) {
    %c0_i32 = arith.constant 0 : i32
    %c0_i32_0 = arith.constant 0 : i32
    %c0_i32_1 = arith.constant 0 : i32
    %c0_i32_2 = arith.constant 0 : i32
    return %c0_i32, %c0_i32_0, %c0_i32_1 : i32, i32, i32
  }
  func.func @transform_10(%arg0: i32) -> (i32, i32) {
    %c0_i32 = arith.constant 0 : i32
    %c0_i32_0 = arith.constant 0 : i32
    %c0_i32_1 = arith.constant 0 : i32
    return %c0_i32, %c0_i32_0 : i32, i32
  }
  func.func @transform_11(%arg0: i32) -> (i32, i32) {
    %c0_i32 = arith.constant 0 : i32
    %c0_i32_0 = arith.constant 0 : i32
    %c0_i32_1 = arith.constant 0 : i32
    return %c0_i32, %c0_i32_0 : i32, i32
  }
  func.func @transform_12(%arg0: i32) -> (i32, i32) {
    %c0_i32 = arith.constant 0 : i32
    %c0_i32_0 = arith.constant 0 : i32
    %c0_i32_1 = arith.constant 0 : i32
    return %c0_i32, %c0_i32_0 : i32, i32
  }
  func.func @transform_13(%arg0: i32) -> (i32, i32) {
    %c0_i32 = arith.constant 0 : i32
    %c0_i32_0 = arith.constant 0 : i32
    %c0_i32_1 = arith.constant 0 : i32
    return %c0_i32, %c0_i32_0 : i32, i32
  }
  func.func @transform_14(%arg0: i32) -> (i32, i32, i32) {
    %c0_i32 = arith.constant 0 : i32
    %c0_i32_0 = arith.constant 0 : i32
    %c0_i32_1 = arith.constant 0 : i32
    return %arg0, %c0_i32, %c0_i32_0 : i32, i32, i32
  }
}

</mosaic_0001>

<llo_original>
// kernel: esm2_sequence_classifier_forward.1
$region0: #{esm2_sequence_classifier_forward.1}
  #allocation0 [shape = 'u32[]', space=smem, size = 0x4, offset = 0x4, fixed_abs, tag = 'smem constant byte address 0x4 - core index']
  #allocation1 [shape = 'u32[144,128]{1,0:T(1,128)}', space=vmem, size = 0x12000, scoped, tag = 'internal scratch']
  %s0 = inlined_call_operand.vmem [shape: f32[2,8,32], index: 0, kind: input, shape index: {}]
  %s1 = inlined_call_operand.vmem [shape: f32[2,1,8], index: 1, kind: input, shape index: {}]
  %s2 = inlined_call_operand.vmem [shape: f32[2,32], index: 2, kind: input, shape index: {}]
  %s3 = inlined_call_operand.vmem [shape: bf16[2,32,96], index: 3, kind: input, shape index: {}]
  %s4 = inlined_call_operand.vmem [shape: f32[2,1,96], index: 4, kind: input, shape index: {}]
  %s5 = inlined_call_operand.vmem [shape: bf16[2,32,32], index: 5, kind: input, shape index: {}]
  %s6 = inlined_call_operand.vmem [shape: f32[2,6,32], index: 6, kind: input, shape index: {}]
  %s7 = inlined_call_operand.vmem [shape: bf16[2,32,128], index: 7, kind: input, shape index: {}]
  %s8 = inlined_call_operand.vmem [shape: f32[2,1,128], index: 8, kind: input, shape index: {}]
  %s9 = inlined_call_operand.vmem [shape: bf16[2,128,32], index: 9, kind: input, shape index: {}]
  %s10 = inlined_call_operand.vmem [shape: bf16[32,32], index: 10, kind: input, shape index: {}]
  %s11 = inlined_call_operand.vmem [shape: f32[1,32], index: 11, kind: input, shape index: {}]
  %s12 = inlined_call_operand.vmem [shape: bf16[32,128], index: 12, kind: input, shape index: {}]
  %s13 = inlined_call_operand.vmem [shape: f32[1,128], index: 13, kind: input, shape index: {}]
  %s14 = inlined_call_operand.vmem [shape: f32[2,8,128], index: 14, kind: output, shape index: {}]
  %s15 = sld [smem:[#allocation0]]
  $region89: #{esm2_sequence_classifier_forward.1} parent=0
    _
  %s17 = ssub.s32 1, %s15
  %s18 = scalar_select 0, %s17, %s15
  loop: start=0, step=1, limit=4
  $region2: #{esm2_sequence_classifier_forward.1} parent=0 // loop_pre_header
    _
  $region3: #{esm2_sequence_classifier_forward.1} parent=0 // loop_header
    %s20 = sphi 0, %s24
    %p21 = scmp.ge.s32.totalorder %s20, 4
    %s30 = sphi 0, %s32
    %s33 = sphi 0, %s30
    %s34 = sphi 0, %s33
    %s50 = sphi 0, %s34
    %s56 = sphi 0, %s58
    %s59 = sphi 0, %s56
    %s60 = sphi 0, %s59
    %s76 = sphi 0, %s60
    %s80 = sphi 0, %s80
    %s82 = sphi 0, %s80
    %s83 = sphi 0, %s82
    %s97 = sphi 0, %s83
    %s101 = sphi 0, %s101
    %s103 = sphi 0, %s101
    %s104 = sphi 0, %s103
    %s118 = sphi 0, %s104
    %s122 = sphi 0, %s122
    %s124 = sphi 0, %s122
    %s125 = sphi 0, %s124
    %s139 = sphi 0, %s125
    %s143 = sphi 0, %s143
    %s145 = sphi 0, %s143
    %s146 = sphi 0, %s145
    %s160 = sphi 0, %s146
    %s164 = sphi 0, %s164
    %s166 = sphi 0, %s164
    %s167 = sphi 0, %s166
    %s181 = sphi 0, %s167
    %s185 = sphi 0, %s185
    %s187 = sphi 0, %s185
    %s188 = sphi 0, %s187
    %s202 = sphi 0, %s188
    %s206 = sphi 0, %s206
    %s208 = sphi 0, %s206
    %s209 = sphi 0, %s208
    %s223 = sphi 0, %s209
    %s227 = sphi 0, %s227
    %s229 = sphi 0, %s227
    %s230 = sphi 0, %s229
    %s244 = sphi 0, %s230
    %s248 = sphi 0, %s248
    %s250 = sphi 0, %s248
    %s251 = sphi 0, %s250
    %s265 = sphi 0, %s251
    %s269 = sphi 0, %s269
    %s271 = sphi 0, %s269
    %s272 = sphi 0, %s271
    %s286 = sphi 0, %s272
    %s290 = sphi 0, %s290
    %s292 = sphi 0, %s290
    %s293 = sphi 0, %s292
    %s307 = sphi 0, %s293
    %s311 = sphi 0, %s311
    %s313 = sphi 0, %s311
    %s314 = sphi 0, %s313
    %s328 = sphi 0, %s314
    %s334 = sphi 0, %s336
    %s337 = sphi 0, %s334
    %s338 = sphi 0, %s337
    %s354 = sphi 0, %s338
  $region4: #{esm2_sequence_classifier_forward.1} parent=0 // loop_header_branch
    %23 = sbr.rel (%p21) target = $region8
  $region5: #{esm2_sequence_classifier_forward.1} parent=0 // loop_body
    %s25 = ssub.s32 %s20, 1
    %s26 = ssub.s32 %s20, 2
    %s27 = sadd.s32 %s20, 1
    %s28 = ssub.s32 %s20, %s27
    %p29 = scmp.eq.s32.totalorder %s28, 0
    %s31 = sadd.s32 %s30, 1
    %s32 = scalar_select %p29, %s30, %s31
    %p35 = pneg %p29
    %p36 = scmp.eq.s32.totalorder %s20, 1
    %p37 = por %p35, %p36
    %p38 = scmp.ne.s32.totalorder %s30, %s33
    %p39 = scmp.eq.s32.totalorder %s20, 0
    %p40 = por %p38, %p39
    %p41 = scmp.ne.s32.totalorder %s30, %s33
    %p42 = scmp.eq.s32.totalorder %s25, 1
    %p43 = por %p41, %p42
    %p44 = scmp.ne.s32.totalorder %s33, %s34
    %p45 = scmp.eq.s32.totalorder %s25, 0
    %p46 = por %p44, %p45
    %p47 = scmp.ne.s32.totalorder %s33, %s34
    %p48 = scmp.eq.s32.totalorder %s26, 1
    %p49 = por %p47, %p48
    %p51 = scmp.ne.s32.totalorder %s34, %s50
    %p52 = scmp.eq.s32.totalorder %s26, 0
    %p53 = por %p51, %p52
    %s54 = ssub.s32 %s20, %s27
    %p55 = scmp.eq.s32.totalorder %s54, 0
    %s57 = sadd.s32 %s56, 1
    %s58 = scalar_select %p55, %s56, %s57
    %p61 = pneg %p55
    %p62 = scmp.eq.s32.totalorder %s20, 1
    %p63 = por %p61, %p62
    %p64 = scmp.ne.s32.totalorder %s56, %s59
    %p65 = scmp.eq.s32.totalorder %s20, 0
    %p66 = por %p64, %p65
    %p67 = scmp.ne.s32.totalorder %s56, %s59
    %p68 = scmp.eq.s32.totalorder %s25, 1
    %p69 = por %p67, %p68
    %p70 = scmp.ne.s32.totalorder %s59, %s60
    %p71 = scmp.eq.s32.totalorder %s25, 0
    %p72 = por %p70, %p71
    %p73 = scmp.ne.s32.totalorder %s59, %s60
    %p74 = scmp.eq.s32.totalorder %s26, 1
    %p75 = por %p73, %p74
    %p77 = scmp.ne.s32.totalorder %s60, %s76
    %p78 = scmp.eq.s32.totalorder %s26, 0
    %p79 = por %p77, %p78
    %s81 = sadd.s32 %s80, 1
    %p84 = scmp.eq.s32.totalorder %s20, 1
    %p85 = scmp.ne.s32.totalorder %s80, %s82
    %p86 = scmp.eq.s32.totalorder %s20, 0
    %p87 = por %p85, %p86
    %p88 = scmp.ne.s32.totalorder %s80, %s82
    %p89 = scmp.eq.s32.totalorder %s25, 1
    %p90 = por %p88, %p89
    %p91 = scmp.ne.s32.totalorder %s82, %s83
    %p92 = scmp.eq.s32.totalorder %s25, 0
    %p93 = por %p91, %p92
    %p94 = scmp.ne.s32.totalorder %s82, %s83
    %p95 = scmp.eq.s32.totalorder %s26, 1
    %p96 = por %p94, %p95
    %p98 = scmp.ne.s32.totalorder %s83, %s97
    %p99 = scmp.eq.s32.totalorder %s26, 0
    %p100 = por %p98, %p99
    %s102 = sadd.s32 %s101, 1
    %p105 = scmp.eq.s32.totalorder %s20, 1
    %p106 = scmp.ne.s32.totalorder %s101, %s103
    %p107 = scmp.eq.s32.totalorder %s20, 0
    %p108 = por %p106, %p107
    %p109 = scmp.ne.s32.totalorder %s101, %s103
    %p110 = scmp.eq.s32.totalorder %s25, 1
    %p111 = por %p109, %p110
    %p112 = scmp.ne.s32.totalorder %s103, %s104
    %p113 = scmp.eq.s32.totalorder %s25, 0
    %p114 = por %p112, %p113
    %p115 = scmp.ne.s32.totalorder %s103, %s104
    %p116 = scmp.eq.s32.totalorder %s26, 1
    %p117 = por %p115, %p116
    %p119 = scmp.ne.s32.totalorder %s104, %s118
    %p120 = scmp.eq.s32.totalorder %s26, 0
    %p121 = por %p119, %p120
    %s123 = sadd.s32 %s122, 1
    %p126 = scmp.eq.s32.totalorder %s20, 1
    %p127 = scmp.ne.s32.totalorder %s122, %s124
    %p128 = scmp.eq.s32.totalorder %s20, 0
    %p129 = por %p127, %p128
    %p130 = scmp.ne.s32.totalorder %s122, %s124
    %p131 = scmp.eq.s32.totalorder %s25, 1
    %p132 = por %p130, %p131
    %p133 = scmp.ne.s32.totalorder %s124, %s125
    %p134 = scmp.eq.s32.totalorder %s25, 0
    %p135 = por %p133, %p134
    %p136 = scmp.ne.s32.totalorder %s124, %s125
    %p137 = scmp.eq.s32.totalorder %s26, 1
    %p138 = por %p136, %p137
    %p140 = scmp.ne.s32.totalorder %s125, %s139
    %p141 = scmp.eq.s32.totalorder %s26, 0
    %p142 = por %p140, %p141
    %s144 = sadd.s32 %s143, 1
    %p147 = scmp.eq.s32.totalorder %s20, 1
    %p148 = scmp.ne.s32.totalorder %s143, %s145
    %p149 = scmp.eq.s32.totalorder %s20, 0
    %p150 = por %p148, %p149
    %p151 = scmp.ne.s32.totalorder %s143, %s145
    %p152 = scmp.eq.s32.totalorder %s25, 1
    %p153 = por %p151, %p152
    %p154 = scmp.ne.s32.totalorder %s145, %s146
    %p155 = scmp.eq.s32.totalorder %s25, 0
    %p156 = por %p154, %p155
    %p157 = scmp.ne.s32.totalorder %s145, %s146
    %p158 = scmp.eq.s32.totalorder %s26, 1
    %p159 = por %p157, %p158
    %p161 = scmp.ne.s32.totalorder %s146, %s160
    %p162 = scmp.eq.s32.totalorder %s26, 0
    %p163 = por %p161, %p162
    %s165 = sadd.s32 %s164, 1
    %p168 = scmp.eq.s32.totalorder %s20, 1
    %p169 = scmp.ne.s32.totalorder %s164, %s166
    %p170 = scmp.eq.s32.totalorder %s20, 0
    %p171 = por %p169, %p170
    %p172 = scmp.ne.s32.totalorder %s164, %s166
    %p173 = scmp.eq.s32.totalorder %s25, 1
    %p174 = por %p172, %p173
    %p175 = scmp.ne.s32.totalorder %s166, %s167
    %p176 = scmp.eq.s32.totalorder %s25, 0
    %p177 = por %p175, %p176
    %p178 = scmp.ne.s32.totalorder %s166, %s167
    %p179 = scmp.eq.s32.totalorder %s26, 1
    %p180 = por %p178, %p179
    %p182 = scmp.ne.s32.totalorder %s167, %s181
    %p183 = scmp.eq.s32.totalorder %s26, 0
    %p184 = por %p182, %p183
    %s186 = sadd.s32 %s185, 1
    %p189 = scmp.eq.s32.totalorder %s20, 1
    %p190 = scmp.ne.s32.totalorder %s185, %s187
    %p191 = scmp.eq.s32.totalorder %s20, 0
    %p192 = por %p190, %p191
    %p193 = scmp.ne.s32.totalorder %s185, %s187
    %p194 = scmp.eq.s32.totalorder %s25, 1
    %p195 = por %p193, %p194
    %p196 = scmp.ne.s32.totalorder %s187, %s188
    %p197 = scmp.eq.s32.totalorder %s25, 0
    %p198 = por %p196, %p197
    %p199 = scmp.ne.s32.totalorder %s187, %s188
    %p200 = scmp.eq.s32.totalorder %s26, 1
    %p201 = por %p199, %p200
    %p203 = scmp.ne.s32.totalorder %s188, %s202
    %p204 = scmp.eq.s32.totalorder %s26, 0
    %p205 = por %p203, %p204
    %s207 = sadd.s32 %s206, 1
    %p210 = scmp.eq.s32.totalorder %s20, 1
    %p211 = scmp.ne.s32.totalorder %s206, %s208
    %p212 = scmp.eq.s32.totalorder %s20, 0
    %p213 = por %p211, %p212
    %p214 = scmp.ne.s32.totalorder %s206, %s208
    %p215 = scmp.eq.s32.totalorder %s25, 1
    %p216 = por %p214, %p215
    %p217 = scmp.ne.s32.totalorder %s208, %s209
    %p218 = scmp.eq.s32.totalorder %s25, 0
    %p219 = por %p217, %p218
    %p220 = scmp.ne.s32.totalorder %s208, %s209
    %p221 = scmp.eq.s32.totalorder %s26, 1
    %p222 = por %p220, %p221
    %p224 = scmp.ne.s32.totalorder %s209, %s223
    %p225 = scmp.eq.s32.totalorder %s26, 0
    %p226 = por %p224, %p225
    %s228 = sadd.s32 %s227, 1
    %p231 = scmp.eq.s32.totalorder %s20, 1
    %p232 = scmp.ne.s32.totalorder %s227, %s229
    %p233 = scmp.eq.s32.totalorder %s20, 0
    %p234 = por %p232, %p233
    %p235 = scmp.ne.s32.totalorder %s227, %s229
    %p236 = scmp.eq.s32.totalorder %s25, 1
    %p237 = por %p235, %p236
    %p238 = scmp.ne.s32.totalorder %s229, %s230
    %p239 = scmp.eq.s32.totalorder %s25, 0
    %p240 = por %p238, %p239
    %p241 = scmp.ne.s32.totalorder %s229, %s230
    %p242 = scmp.eq.s32.totalorder %s26, 1
    %p243 = por %p241, %p242
    %p245 = scmp.ne.s32.totalorder %s230, %s244
    %p246 = scmp.eq.s32.totalorder %s26, 0
    %p247 = por %p245, %p246
    %s249 = sadd.s32 %s248, 1
    %p252 = scmp.eq.s32.totalorder %s20, 1
    %p253 = scmp.ne.s32.totalorder %s248, %s250
    %p254 = scmp.eq.s32.totalorder %s20, 0
    %p255 = por %p253, %p254
    %p256 = scmp.ne.s32.totalorder %s248, %s250
    %p257 = scmp.eq.s32.totalorder %s25, 1
    %p258 = por %p256, %p257
    %p259 = scmp.ne.s32.totalorder %s250, %s251
    %p260 = scmp.eq.s32.totalorder %s25, 0
    %p261 = por %p259, %p260
    %p262 = scmp.ne.s32.totalorder %s250, %s251
    %p263 = scmp.eq.s32.totalorder %s26, 1
    %p264 = por %p262, %p263
    %p266 = scmp.ne.s32.totalorder %s251, %s265
    %p267 = scmp.eq.s32.totalorder %s26, 0
    %p268 = por %p266, %p267
    %s270 = sadd.s32 %s269, 1
    %p273 = scmp.eq.s32.totalorder %s20, 1
    %p274 = scmp.ne.s32.totalorder %s269, %s271
    %p275 = scmp.eq.s32.totalorder %s20, 0
    %p276 = por %p274, %p275
    %p277 = scmp.ne.s32.totalorder %s269, %s271
    %p278 = scmp.eq.s32.totalorder %s25, 1
    %p279 = por %p277, %p278
    %p280 = scmp.ne.s32.totalorder %s271, %s272
    %p281 = scmp.eq.s32.totalorder %s25, 0
    %p282 = por %p280, %p281
    %p283 = scmp.ne.s32.totalorder %s271, %s272
    %p284 = scmp.eq.s32.totalorder %s26, 1
    %p285 = por %p283, %p284
    %p287 = scmp.ne.s32.totalorder %s272, %s286
    %p288 = scmp.eq.s32.totalorder %s26, 0
    %p289 = por %p287, %p288
    %s291 = sadd.s32 %s290, 1
    %p294 = scmp.eq.s32.totalorder %s20, 1
    %p295 = scmp.ne.s32.totalorder %s290, %s292
    %p296 = scmp.eq.s32.totalorder %s20, 0
    %p297 = por %p295, %p296
    %p298 = scmp.ne.s32.totalorder %s290, %s292
    %p299 = scmp.eq.s32.totalorder %s25, 1
    %p300 = por %p298, %p299
    %p301 = scmp.ne.s32.totalorder %s292, %s293
    %p302 = scmp.eq.s32.totalorder %s25, 0
    %p303 = por %p301, %p302
    %p304 = scmp.ne.s32.totalorder %s292, %s293
    %p305 = scmp.eq.s32.totalorder %s26, 1
    %p306 = por %p304, %p305
    %p308 = scmp.ne.s32.totalorder %s293, %s307
    %p309 = scmp.eq.s32.totalorder %s26, 0
    %p310 = por %p308, %p309
    %s312 = sadd.s32 %s311, 1
    %p315 = scmp.eq.s32.totalorder %s20, 1
    %p316 = scmp.ne.s32.totalorder %s311, %s313
    %p317 = scmp.eq.s32.totalorder %s20, 0
    %p318 = por %p316, %p317
    %p319 = scmp.ne.s32.totalorder %s311, %s313
    %p320 = scmp.eq.s32.totalorder %s25, 1
    %p321 = por %p319, %p320
    %p322 = scmp.ne.s32.totalorder %s313, %s314
    %p323 = scmp.eq.s32.totalorder %s25, 0
    %p324 = por %p322, %p323
    %p325 = scmp.ne.s32.totalorder %s313, %s314
    %p326 = scmp.eq.s32.totalorder %s26, 1
    %p327 = por %p325, %p326
    %p329 = scmp.ne.s32.totalorder %s314, %s328
    %p330 = scmp.eq.s32.totalorder %s26, 0
    %p331 = por %p329, %p330
    %s332 = ssub.s32 %s20, %s27
    %p333 = scmp.eq.s32.totalorder %s332, 0
    %s335 = sadd.s32 %s334, 1
    %s336 = scalar_select %p333, %s334, %s335
    %p339 = pneg %p333
    %p340 = scmp.eq.s32.totalorder %s20, 1
    %p341 = por %p339, %p340
    %p342 = scmp.ne.s32.totalorder %s334, %s337
    %p343 = scmp.eq.s32.totalorder %s20, 0
    %p344 = por %p342, %p343
    %p345 = scmp.ne.s32.totalorder %s334, %s337
    %p346 = scmp.eq.s32.totalorder %s25, 1
    %p347 = por %p345, %p346
    %p348 = scmp.ne.s32.totalorder %s337, %s338
    %p349 = scmp.eq.s32.totalorder %s25, 0
    %p350 = por %p348, %p349
    %p351 = scmp.ne.s32.totalorder %s337, %s338
    %p352 = scmp.eq.s32.totalorder %s26, 1
    %p353 = por %p351, %p352
    %p355 = scmp.ne.s32.totalorder %s338, %s354
    %p356 = scmp.eq.s32.totalorder %s26, 0
    %p357 = por %p355, %p356
    %p358 = scmp.le.s32.totalorder 1, %s20
    %p359 = scmp.lt.s32.totalorder %s20, 3
    %p360 = pnand %p358, %p359
    %p361 = pneg %p360
    // Predicated region
    $region9: #{esm2_sequence_classifier_forward.1} parent=5 // pred_check
      _
    $region10: #{esm2_sequence_classifier_forward.1} parent=5 // pred_check_branch
      %363 = sbr.rel (%p360) target = $region12
    $region11: #{esm2_sequence_classifier_forward.1} parent=5 // pred_region
      %s364 = ssub.s32 %s20, 1
      // Predicated region
      $region13: #{esm2_sequence_classifier_forward.1} parent=11 // pred_check
        %p365 = pneg %p93
      $region14: #{esm2_sequence_classifier_forward.1} parent=11 // pred_check_branch
        %367 = sbr.rel (%p365) target = $region16
      $region15: #{esm2_sequence_classifier_forward.1} parent=11 // pred_region
        _
      $region16: #{esm2_sequence_classifier_forward.1} parent=11 // pred_fallthru
        _
      // Predicated region
      $region17: #{esm2_sequence_classifier_forward.1} parent=11 // pred_check
        %p368 = pneg %p114
      $region18: #{esm2_sequence_classifier_forward.1} parent=11 // pred_check_branch
        %370 = sbr.rel (%p368) target = $region20
      $region19: #{esm2_sequence_classifier_forward.1} parent=11 // pred_region
        _
      $region20: #{esm2_sequence_classifier_forward.1} parent=11 // pred_fallthru
        _
      // Predicated region
      $region21: #{esm2_sequence_classifier_forward.1} parent=11 // pred_check
        %p371 = pneg %p135
      $region22: #{esm2_sequence_classifier_forward.1} parent=11 // pred_check_branch
        %373 = sbr.rel (%p371) target = $region24
      $region23: #{esm2_sequence_classifier_forward.1} parent=11 // pred_region
        _
      $region24: #{esm2_sequence_classifier_forward.1} parent=11 // pred_fallthru
        _
      // Predicated region
      $region25: #{esm2_sequence_classifier_forward.1} parent=11 // pred_check
        %p374 = pneg %p156
      $region26: #{esm2_sequence_classifier_forward.1} parent=11 // pred_check_branch
        %376 = sbr.rel (%p374) target = $region28
      $region27: #{esm2_sequence_classifier_forward.1} parent=11 // pred_region
        _
      $region28: #{esm2_sequence_classifier_forward.1} parent=11 // pred_fallthru
        _
      // Predicated region
      $region29: #{esm2_sequence_classifier_forward.1} parent=11 // pred_check
        %p377 = pneg %p177
      $region30: #{esm2_sequence_classifier_forward.1} parent=11 // pred_check_branch
        %379 = sbr.rel (%p377) target = $region32
      $region31: #{esm2_sequence_classifier_forward.1} parent=11 // pred_region
        _
      $region32: #{esm2_sequence_classifier_forward.1} parent=11 // pred_fallthru
        _
      // Predicated region
      $region33: #{esm2_sequence_classifier_forward.1} parent=11 // pred_check
        %p380 = pneg %p198
      $region34: #{esm2_sequence_classifier_forward.1} parent=11 // pred_check_branch
        %382 = sbr.rel (%p380) target = $region36
      $region35: #{esm2_sequence_classifier_forward.1} parent=11 // pred_region
        _
      $region36: #{esm2_sequence_classifier_forward.1} parent=11 // pred_fallthru
        _
      // Predicated region
      $region37: #{esm2_sequence_classifier_forward.1} parent=11 // pred_check
        %p383 = pneg %p219
      $region38: #{esm2_sequence_classifier_forward.1} parent=11 // pred_check_branch
        %385 = sbr.rel (%p383) target = $region40
      $region39: #{esm2_sequence_classifier_forward.1} parent=11 // pred_region
        _
      $region40: #{esm2_sequence_classifier_forward.1} parent=11 // pred_fallthru
        _
      // Predicated region
      $region41: #{esm2_sequence_classifier_forward.1} parent=11 // pred_check
        %p386 = pneg %p240
      $region42: #{esm2_sequence_classifier_forward.1} parent=11 // pred_check_branch
        %388 = sbr.rel (%p386) target = $region44
      $region43: #{esm2_sequence_classifier_forward.1} parent=11 // pred_region
        _
      $region44: #{esm2_sequence_classifier_forward.1} parent=11 // pred_fallthru
        _
      // Predicated region
      $region45: #{esm2_sequence_classifier_forward.1} parent=11 // pred_check
        %p389 = pneg %p261
      $region46: #{esm2_sequence_classifier_forward.1} parent=11 // pred_check_branch
        %391 = sbr.rel (%p389) target = $region48
      $region47: #{esm2_sequence_classifier_forward.1} parent=11 // pred_region
        _
      $region48: #{esm2_sequence_classifier_forward.1} parent=11 // pred_fallthru
        _
      // Predicated region
      $region49: #{esm2_sequence_classifier_forward.1} parent=11 // pred_check
        %p392 = pneg %p282
      $region50: #{esm2_sequence_classifier_forward.1} parent=11 // pred_check_branch
        %394 = sbr.rel (%p392) target = $region52
      $region51: #{esm2_sequence_classifier_forward.1} parent=11 // pred_region
        _
      $region52: #{esm2_sequence_classifier_forward.1} parent=11 // pred_fallthru
        _
      // Predicated region
      $region53: #{esm2_sequence_classifier_forward.1} parent=11 // pred_check
        %p395 = pneg %p303
      $region54: #{esm2_sequence_classifier_forward.1} parent=11 // pred_check_branch
        %397 = sbr.rel (%p395) target = $region56
      $region55: #{esm2_sequence_classifier_forward.1} parent=11 // pred_region
        _
      $region56: #{esm2_sequence_classifier_forward.1} parent=11 // pred_fallthru
        _
      // Predicated region
      $region57: #{esm2_sequence_classifier_forward.1} parent=11 // pred_check
        %p398 = pneg %p324
      $region58: #{esm2_sequence_classifier_forward.1} parent=11 // pred_check_branch
        %400 = sbr.rel (%p398) target = $region60
      $region59: #{esm2_sequence_classifier_forward.1} parent=11 // pred_region
        _
      $region60: #{esm2_sequence_classifier_forward.1} parent=11 // pred_fallthru
        _
    $region12: #{esm2_sequence_classifier_forward.1} parent=5 // pred_fallthru
      _
    %p401 = scmp.lt.s32.totalorder %s20, 2
    // Predicated region
    $region61: #{esm2_sequence_classifier_forward.1} parent=5 // pred_check
      %p402 = pneg %p401
    $region62: #{esm2_sequence_classifier_forward.1} parent=5 // pred_check_branch
      %404 = sbr.rel (%p402) target = $region64
    $region63: #{esm2_sequence_classifier_forward.1} parent=5 // pred_region
      // Predicated region
      $region65: #{esm2_sequence_classifier_forward.1} parent=63 // pred_check
        %p405 = pneg %p40
      $region66: #{esm2_sequence_classifier_forward.1} parent=63 // pred_check_branch
        %407 = sbr.rel (%p405) target = $region68
      $region67: #{esm2_sequence_classifier_forward.1} parent=63 // pred_region
        %p408 = scmp.lt.s32.totalorder %s20, 1
        %s409 = scalar_select %p408, %s20, 1
        %s410 = smul.addr %s409, 8
        %s411 = scalar_lea.vmem %s0, %s410
      $region68: #{esm2_sequence_classifier_forward.1} parent=63 // pred_fallthru
        _
      // Predicated region
      $region69: #{esm2_sequence_classifier_forward.1} parent=63 // pred_check
        %p412 = pneg %p66
      $region70: #{esm2_sequence_classifier_forward.1} parent=63 // pred_check_branch
        %414 = sbr.rel (%p412) target = $region72
      $region71: #{esm2_sequence_classifier_forward.1} parent=63 // pred_region
        %p415 = scmp.lt.s32.totalorder %s20, 1
        %s416 = scalar_select %p415, %s20, 1
        %s417 = scalar_lea.vmem %s1, %s416
      $region72: #{esm2_sequence_classifier_forward.1} parent=63 // pred_fallthru
        _
    $region64: #{esm2_sequence_classifier_forward.1} parent=5 // pred_fallthru
      _
    %p418 = scmp.le.s32.totalorder 1, %s20
    %p419 = scmp.lt.s32.totalorder %s20, 3
    %p420 = pnand %p418, %p419
    %p421 = pneg %p420
    // Predicated region
    $region73: #{esm2_sequence_classifier_forward.1} parent=5 // pred_check
      _
    $region74: #{esm2_sequence_classifier_forward.1} parent=5 // pred_check_branch
      %423 = sbr.rel (%p420) target = $region76
    $region75: #{esm2_sequence_classifier_forward.1} parent=5 // pred_region
      %s424 = ssub.s32 %s20, 1
      %p425 = scmp.lt.s32.totalorder %s25, 1
      %s426 = scalar_select %p425, %s25, 1
      %s427 = smul.addr %s426, 8
      %s428 = scalar_lea.vmem %s0, %s427
      %p429 = pneg %p46
      %p430 = pneg %p43
      %p431 = scmp.lt.s32.totalorder %s25, 1
      %s432 = scalar_select %p431, %s25, 1
      %s433 = scalar_lea.vmem %s1, %s432
      %p434 = pneg %p72
      %p435 = pneg %p69
      %p436 = pneg %p93
      %p437 = pneg %p90
      %p438 = pneg %p114
      %p439 = pneg %p111
      %p440 = pneg %p135
      %p441 = pneg %p132
      %p442 = pneg %p156
      %p443 = pneg %p153
      %p444 = pneg %p177
      %p445 = pneg %p174
      %p446 = pneg %p198
      %p447 = pneg %p195
      %p448 = pneg %p219
      %p449 = pneg %p216
      %p450 = pneg %p240
      %p451 = pneg %p237
      %p452 = pneg %p261
      %p453 = pneg %p258
      %p454 = pneg %p282
      %p455 = pneg %p279
      %p456 = pneg %p303
      %p457 = pneg %p300
      %p458 = pneg %p324
      %p459 = pneg %p321
      %p460 = pneg %p350
      %p461 = pneg %p347
      %p462 = scmp.lt.s32.totalorder %s25, 1
      %s463 = scalar_select %p462, %s25, 1
      %s464 = smul.addr %s463, 8
      %s465 = scalar_lea.vmem %s14, %s464
      %p466 = scmp.lt.s32.totalorder %s25, 1
      %s467 = scalar_select %p466, %s25, 1
      %s468 = smul.addr %s467, 8
      %s469 = scalar_lea.vmem %s0, %s468
      %p470 = scmp.lt.s32.totalorder %s25, 1
      %s471 = scalar_select %p470, %s25, 1
      %s472 = scalar_lea.vmem %s1, %s471
      %p473 = scmp.lt.s32.totalorder %s25, 1
      %s474 = scalar_select %p473, %s25, 1
      %s475 = smul.addr %s474, 8
      %s476 = scalar_lea.vmem %s14, %s475
      %v478 = vld [vmem:[%s469] sm:$0xff]
      %v479 = vld [vmem:[%s472] sm:$0x1]
      %v480 = vld [vmem:[%s2] sm:$0x1]
      %v481 = vld [vmem:[%s2 + $0x1] sm:$0x1]
      %vm482 = vcmask 261120
      %v483 = vsel %vm482, %v478, 0.0
      %484 = vadd.xlane.f32.xlu0 %v483
      %v485 = vpop.xlane.xlu0 %484
      %v486 = vrcp.pop 32.0
      %v487 = vmul.f32 %v485, %v486
      %v488 = vsub.f32 %v478, %v487
      %v489 = vmul.f32 %v488, %v488
      %v490 = vsel %vm482, %v489, 0.0
      %491 = vadd.xlane.f32.xlu0 %v490
      %v492 = vpop.xlane.xlu0 %491
      %v493 = vmul.f32 %v492, %v486
      %v494 = vadd.f32 %v493, 1e-05
      %v495 = vrsqrt.pop %v494
      %v496 = vmul.f32 %v488, %v495
      %v497 = vlaneseq
      %v498 = vshrl.u32 %v497, 7
      %v499 = vsub.s32 0, %v498
      %v500 = vrot.slane %v480, %v499
      %v501 = vmul.f32 %v496, %v500
      %v502 = vlaneseq
      %v503 = vshrl.u32 %v502, 7
      %v504 = vsub.s32 0, %v503
      %v505 = vrot.slane %v481, %v504
      %v506 = vadd.f32 %v501, %v505
      %v507 = vld [vmem:[%s6] sm:$0x3f]
      %v508 = vpack.c.bf16 %v506, %v506
      %v509 = vld [vmem:[%s3] sm:$0xf]
      %v510 = vld [vmem:[%s3 + $0x4] sm:$0xf]
      %v511 = vld [vmem:[%s3 + $0x8] sm:$0xf]
      %v512 = vld [vmem:[%s3 + $0xc] sm:$0xf]
      %v513 = vld [vmem:[%s4] sm:$0x1]
      %v515 = vlaneseq
      %v516 = vshrl.u32 %v515, 7
      %v517 = vsub.s32 0, %v516
      %v518 = vrot.slane %v513, %v517
      %v524 = vunpack.c.l.b16 %v509
      %v525 = vunpack.c.l.b16 %v510
      %v526 = vunpack.c.l.b16 %v511
      %v527 = vunpack.c.l.b16 %v512
      %v528 = vpack.c.b16 %v525, %v524
      %v529 = vpack.c.b16 %v527, %v526
      %v533 = vsel %vm482, %v508, 0
      %535 = vmatprep.subr.bf16.mxu0 0
      %536 = vmatpush1.bf16.msra.mxu0 %v528
      %537 = vmatprep.subr.bf16.mxu0 0
      %538 = vmatpush1.bf16.msra.mxu0 %v529
      %539 = vmatprep.subr.bf16.mxu0 0
      %540 = vmatpush1.bf16.msra.mxu0 0
      %541 = vmatprep.subr.bf16.mxu0 0
      %542 = vmatpush1.bf16.msra.mxu0 0
      %543 = vmatprep.subr.bf16.mxu0 0
      %544 = vmatpush1.bf16.msra.mxu0 0
      %545 = vmatprep.subr.bf16.mxu0 0
      %546 = vmatpush1.bf16.msra.mxu0 0
      %547 = vmatprep.subr.bf16.mxu0 0
      %548 = vmatpush1.bf16.msra.mxu0 0
      %549 = vmatprep.subr.bf16.mxu0 0
      %550 = vmatpush1.bf16.msra.mxu0 0
      %551 = vmatprep.subr.bf16.mxu0 0
      %552 = vmatpush1.bf16.msra.mxu0 0
      %553 = vmatprep.subr.bf16.mxu0 0
      %554 = vmatpush1.bf16.msra.mxu0 0
      %555 = vmatprep.subr.bf16.mxu0 0
      %556 = vmatpush1.bf16.msra.mxu0 0
      %557 = vmatprep.subr.bf16.mxu0 0
      %558 = vmatpush1.bf16.msra.mxu0 0
      %559 = vmatprep.subr.bf16.mxu0 0
      %560 = vmatpush1.bf16.msra.mxu0 0
      %561 = vmatprep.subr.bf16.mxu0 0
      %562 = vmatpush1.bf16.msra.mxu0 0
      %563 = vmatprep.subr.bf16.mxu0 0
      %564 = vmatpush1.bf16.msra.mxu0 0
      %565 = vmatprep.subr.bf16.mxu0 0
      %566 = vmatpush1.bf16.msra.mxu0 0
      %567 = vmatprep.mubr.bf16.mxu0 0
      %568 = vmatmul.mubr.bf16.gmra.mrb[0].mxu0 %v533
      %v569 = vpop.f32.mrb[0].mxu0
      %v570 = vadd.f32 %v518, %v569
      %v571 = vpop.f32.mrb[0].mxu0
      %v572 = vpop.f32.mrb[0].mxu0
      %v573 = vpop.f32.mrb[0].mxu0
      %574 = vdwg.mxu0
      %576 = vrot.lane.b32.xlu0 %v570, 120
      %v577 = vpop.permute.xlu0 %576
      %579 = vrot.lane.b32.xlu0 %v570, 112
      %v580 = vpop.permute.xlu0 %579
      %582 = vrot.lane.b32.xlu0 %v570, 104
      %v583 = vpop.permute.xlu0 %582
      %585 = vrot.lane.b32.xlu0 %v570, 96
      %v586 = vpop.permute.xlu0 %585
      %588 = vrot.lane.b32.xlu0 %v570, 88
      %v589 = vpop.permute.xlu0 %588
      %591 = vrot.lane.b32.xlu0 %v570, 80
      %v592 = vpop.permute.xlu0 %591
      %594 = vrot.lane.b32.xlu0 %v570, 72
      %v595 = vpop.permute.xlu0 %594
      %597 = vrot.lane.b32.xlu0 %v570, 64
      %v598 = vpop.permute.xlu0 %597
      %600 = vrot.lane.b32.xlu0 %v570, 56
      %v601 = vpop.permute.xlu0 %600
      %603 = vrot.lane.b32.xlu0 %v570, 48
      %v604 = vpop.permute.xlu0 %603
      %606 = vrot.lane.b32.xlu0 %v570, 40
      %v607 = vpop.permute.xlu0 %606
      %v609 = vcombine.low %v570, %v580
      %v610 = vcombine.high %v570, %v580
      %v612 = vunpack.c.l.s4 1983009808
      %v613 = vunpack.c.0.s8 %v612
      %v614 = vlaneseq
      %v615 = vshrl.u32 %v614, 7
      %v616 = vsub.s32 %v613, %v615
      %v617 = vrot.slane %v609, %v616
      %v619 = vunpack.c.l.s4 1983009808
      %v620 = vunpack.c.0.s8 %v619
      %v621 = vlaneseq
      %v622 = vshrl.u32 %v621, 7
      %v623 = vsub.s32 %v620, %v622
      %v624 = vrot.slane %v610, %v623
      %v625 = vcombine.low %v577, %v583
      %v626 = vcombine.high %v577, %v583
      %v628 = vunpack.c.l.s4 1983009808
      %v629 = vunpack.c.0.s8 %v628
      %v630 = vlaneseq
      %v631 = vshrl.u32 %v630, 7
      %v632 = vsub.s32 %v629, %v631
      %v633 = vrot.slane %v625, %v632
      %v635 = vunpack.c.l.s4 1983009808
      %v636 = vunpack.c.0.s8 %v635
      %v637 = vlaneseq
      %v638 = vshrl.u32 %v637, 7
      %v639 = vsub.s32 %v636, %v638
      %v640 = vrot.slane %v626, %v639
      %v641 = vcombine.low %v586, %v592
      %v642 = vcombine.high %v586, %v592
      %v644 = vunpack.c.l.s4 1983009808
      %v645 = vunpack.c.0.s8 %v644
      %v646 = vlaneseq
      %v647 = vshrl.u32 %v646, 7
      %v648 = vsub.s32 %v645, %v647
      %v649 = vrot.slane %v641, %v648
      %v651 = vunpack.c.l.s4 1983009808
      %v652 = vunpack.c.0.s8 %v651
      %v653 = vlaneseq
      %v654 = vshrl.u32 %v653, 7
      %v655 = vsub.s32 %v652, %v654
      %v656 = vrot.slane %v642, %v655
      %v657 = vcombine.low %v589, %v595
      %v658 = vcombine.high %v589, %v595
      %v660 = vunpack.c.l.s4 1983009808
      %v661 = vunpack.c.0.s8 %v660
      %v662 = vlaneseq
      %v663 = vshrl.u32 %v662, 7
      %v664 = vsub.s32 %v661, %v663
      %v665 = vrot.slane %v657, %v664
      %v667 = vunpack.c.l.s4 1983009808
      %v668 = vunpack.c.0.s8 %v667
      %v669 = vlaneseq
      %v670 = vshrl.u32 %v669, 7
      %v671 = vsub.s32 %v668, %v670
      %v672 = vrot.slane %v658, %v671
      %v673 = vcombine.low %v617, %v633
      %v674 = vcombine.high %v617, %v633
      %v676 = vunpack.c.l.s4 1934713408
      %v677 = vunpack.c.0.s8 %v676
      %v678 = vlaneseq
      %v679 = vshrl.u32 %v678, 7
      %v680 = vsub.s32 %v677, %v679
      %v681 = vrot.slane %v673, %v680
      %v683 = vunpack.c.l.s4 1934713408
      %v684 = vunpack.c.0.s8 %v683
      %v685 = vlaneseq
      %v686 = vshrl.u32 %v685, 7
      %v687 = vsub.s32 %v684, %v686
      %v688 = vrot.slane %v674, %v687
      %v689 = vcombine.low %v624, %v640
      %v690 = vcombine.high %v624, %v640
      %v692 = vunpack.c.l.s4 1934713408
      %v693 = vunpack.c.0.s8 %v692
      %v694 = vlaneseq
      %v695 = vshrl.u32 %v694, 7
      %v696 = vsub.s32 %v693, %v695
      %v697 = vrot.slane %v689, %v696
      %v699 = vunpack.c.l.s4 1934713408
      %v700 = vunpack.c.0.s8 %v699
      %v701 = vlaneseq
      %v702 = vshrl.u32 %v701, 7
      %v703 = vsub.s32 %v700, %v702
      %v704 = vrot.slane %v690, %v703
      %v705 = vcombine.low %v649, %v665
      %v706 = vcombine.high %v649, %v665
      %v708 = vunpack.c.l.s4 1934713408
      %v709 = vunpack.c.0.s8 %v708
      %v710 = vlaneseq
      %v711 = vshrl.u32 %v710, 7
      %v712 = vsub.s32 %v709, %v711
      %v713 = vrot.slane %v705, %v712
      %v715 = vunpack.c.l.s4 1934713408
      %v716 = vunpack.c.0.s8 %v715
      %v717 = vlaneseq
      %v718 = vshrl.u32 %v717, 7
      %v719 = vsub.s32 %v716, %v718
      %v720 = vrot.slane %v706, %v719
      %v721 = vcombine.low %v656, %v672
      %v722 = vcombine.high %v656, %v672
      %v724 = vunpack.c.l.s4 1934713408
      %v725 = vunpack.c.0.s8 %v724
      %v726 = vlaneseq
      %v727 = vshrl.u32 %v726, 7
      %v728 = vsub.s32 %v725, %v727
      %v729 = vrot.slane %v721, %v728
      %v731 = vunpack.c.l.s4 1934713408
      %v732 = vunpack.c.0.s8 %v731
      %v733 = vlaneseq
      %v734 = vshrl.u32 %v733, 7
      %v735 = vsub.s32 %v732, %v734
      %v736 = vrot.slane %v722, %v735
      %v737 = vcombine.low %v681, %v713
      %v738 = vcombine.high %v681, %v713
      %v739 = vcombine.low %v688, %v720
      %v740 = vcombine.high %v688, %v720
      %v741 = vcombine.low %v697, %v729
      %v742 = vcombine.high %v697, %v729
      %v743 = vcombine.low %v704, %v736
      %v744 = vcombine.high %v704, %v736
      %v745 = vcombine.low %v598, %v604
      %v746 = vcombine.high %v598, %v604
      %v748 = vunpack.c.l.s4 1983009808
      %v749 = vunpack.c.0.s8 %v748
      %v750 = vlaneseq
      %v751 = vshrl.u32 %v750, 7
      %v752 = vsub.s32 %v749, %v751
      %v753 = vrot.slane %v745, %v752
      %v755 = vunpack.c.l.s4 1983009808
      %v756 = vunpack.c.0.s8 %v755
      %v757 = vlaneseq
      %v758 = vshrl.u32 %v757, 7
      %v759 = vsub.s32 %v756, %v758
      %v760 = vrot.slane %v746, %v759
      %v761 = vcombine.low %v601, %v607
      %v762 = vcombine.high %v601, %v607
      %v764 = vunpack.c.l.s4 1983009808
      %v765 = vunpack.c.0.s8 %v764
      %v766 = vlaneseq
      %v767 = vshrl.u32 %v766, 7
      %v768 = vsub.s32 %v765, %v767
      %v769 = vrot.slane %v761, %v768
      %v771 = vunpack.c.l.s4 1983009808
      %v772 = vunpack.c.0.s8 %v771
      %v773 = vlaneseq
      %v774 = vshrl.u32 %v773, 7
      %v775 = vsub.s32 %v772, %v774
      %v776 = vrot.slane %v762, %v775
      %v777 = vcombine.low %v753, %v769
      %v778 = vcombine.high %v753, %v769
      %v780 = vunpack.c.l.s4 1934713408
      %v781 = vunpack.c.0.s8 %v780
      %v782 = vlaneseq
      %v783 = vshrl.u32 %v782, 7
      %v784 = vsub.s32 %v781, %v783
      %v785 = vrot.slane %v777, %v784
      %v787 = vunpack.c.l.s4 1934713408
      %v788 = vunpack.c.0.s8 %v787
      %v789 = vlaneseq
      %v790 = vshrl.u32 %v789, 7
      %v791 = vsub.s32 %v788, %v790
      %v792 = vrot.slane %v778, %v791
      %v793 = vcombine.low %v760, %v776
      %v794 = vcombine.high %v760, %v776
      %v796 = vunpack.c.l.s4 1934713408
      %v797 = vunpack.c.0.s8 %v796
      %v798 = vlaneseq
      %v799 = vshrl.u32 %v798, 7
      %v800 = vsub.s32 %v797, %v799
      %v801 = vrot.slane %v793, %v800
      %v803 = vunpack.c.l.s4 1934713408
      %v804 = vunpack.c.0.s8 %v803
      %v805 = vlaneseq
      %v806 = vshrl.u32 %v805, 7
      %v807 = vsub.s32 %v804, %v806
      %v808 = vrot.slane %v794, %v807
      %v809 = vcombine.high %v785, 0.0
      %v810 = vcombine.high %v792, 0.0
      %v811 = vcombine.high %v801, 0.0
      %v812 = vcombine.high %v808, 0.0
      %v813 = vcombine.low %v737, %v739
      %v814 = vcombine.high %v737, %v739
      %v816 = vunpack.c.l.s4 1983009808
      %v817 = vunpack.c.0.s8 %v816
      %v818 = vlaneseq
      %v819 = vshrl.u32 %v818, 7
      %v820 = vsub.s32 %v817, %v819
      %v821 = vrot.slane %v813, %v820
      %v823 = vunpack.c.l.s4 1983009808
      %v824 = vunpack.c.0.s8 %v823
      %v825 = vlaneseq
      %v826 = vshrl.u32 %v825, 7
      %v827 = vsub.s32 %v824, %v826
      %v828 = vrot.slane %v814, %v827
      %v829 = vcombine.low %v738, %v740
      %v830 = vcombine.high %v738, %v740
      %v832 = vunpack.c.l.s4 1983009808
      %v833 = vunpack.c.0.s8 %v832
      %v834 = vlaneseq
      %v835 = vshrl.u32 %v834, 7
      %v836 = vsub.s32 %v833, %v835
      %v837 = vrot.slane %v829, %v836
      %v839 = vunpack.c.l.s4 1983009808
      %v840 = vunpack.c.0.s8 %v839
      %v841 = vlaneseq
      %v842 = vshrl.u32 %v841, 7
      %v843 = vsub.s32 %v840, %v842
      %v844 = vrot.slane %v830, %v843
      %v845 = vcombine.low %v741, %v743
      %v846 = vcombine.high %v741, %v743
      %v848 = vunpack.c.l.s4 1983009808
      %v849 = vunpack.c.0.s8 %v848
      %v850 = vlaneseq
      %v851 = vshrl.u32 %v850, 7
      %v852 = vsub.s32 %v849, %v851
      %v853 = vrot.slane %v845, %v852
      %v855 = vunpack.c.l.s4 1983009808
      %v856 = vunpack.c.0.s8 %v855
      %v857 = vlaneseq
      %v858 = vshrl.u32 %v857, 7
      %v859 = vsub.s32 %v856, %v858
      %v860 = vrot.slane %v846, %v859
      %v861 = vcombine.low %v742, %v744
      %v862 = vcombine.high %v742, %v744
      %v864 = vunpack.c.l.s4 1983009808
      %v865 = vunpack.c.0.s8 %v864
      %v866 = vlaneseq
      %v867 = vshrl.u32 %v866, 7
      %v868 = vsub.s32 %v865, %v867
      %v869 = vrot.slane %v861, %v868
      %v871 = vunpack.c.l.s4 1983009808
      %v872 = vunpack.c.0.s8 %v871
      %v873 = vlaneseq
      %v874 = vshrl.u32 %v873, 7
      %v875 = vsub.s32 %v872, %v874
      %v876 = vrot.slane %v862, %v875
      %v877 = vcombine.low %v821, %v837
      %v878 = vcombine.high %v821, %v837
      %v880 = vunpack.c.l.s4 1934713408
      %v881 = vunpack.c.0.s8 %v880
      %v882 = vlaneseq
      %v883 = vshrl.u32 %v882, 7
      %v884 = vsub.s32 %v881, %v883
      %v885 = vrot.slane %v877, %v884
      %v887 = vunpack.c.l.s4 1934713408
      %v888 = vunpack.c.0.s8 %v887
      %v889 = vlaneseq
      %v890 = vshrl.u32 %v889, 7
      %v891 = vsub.s32 %v888, %v890
      %v892 = vrot.slane %v878, %v891
      %v893 = vcombine.low %v828, %v844
      %v894 = vcombine.high %v828, %v844
      %v896 = vunpack.c.l.s4 1934713408
      %v897 = vunpack.c.0.s8 %v896
      %v898 = vlaneseq
      %v899 = vshrl.u32 %v898, 7
      %v900 = vsub.s32 %v897, %v899
      %v901 = vrot.slane %v893, %v900
      %v903 = vunpack.c.l.s4 1934713408
      %v904 = vunpack.c.0.s8 %v903
      %v905 = vlaneseq
      %v906 = vshrl.u32 %v905, 7
      %v907 = vsub.s32 %v904, %v906
      %v908 = vrot.slane %v894, %v907
      %v909 = vcombine.low %v853, %v869
      %v910 = vcombine.high %v853, %v869
      %v912 = vunpack.c.l.s4 1934713408
      %v913 = vunpack.c.0.s8 %v912
      %v914 = vlaneseq
      %v915 = vshrl.u32 %v914, 7
      %v916 = vsub.s32 %v913, %v915
      %v917 = vrot.slane %v909, %v916
      %v919 = vunpack.c.l.s4 1934713408
      %v920 = vunpack.c.0.s8 %v919
      %v921 = vlaneseq
      %v922 = vshrl.u32 %v921, 7
      %v923 = vsub.s32 %v920, %v922
      %v924 = vrot.slane %v910, %v923
      %v925 = vcombine.low %v860, %v876
      %v926 = vcombine.high %v860, %v876
      %v928 = vunpack.c.l.s4 1934713408
      %v929 = vunpack.c.0.s8 %v928
      %v930 = vlaneseq
      %v931 = vshrl.u32 %v930, 7
      %v932 = vsub.s32 %v929, %v931
      %v933 = vrot.slane %v925, %v932
      %v935 = vunpack.c.l.s4 1934713408
      %v936 = vunpack.c.0.s8 %v935
      %v937 = vlaneseq
      %v938 = vshrl.u32 %v937, 7
      %v939 = vsub.s32 %v936, %v938
      %v940 = vrot.slane %v926, %v939
      %v941 = vcombine.low %v885, %v917
      %v942 = vcombine.high %v885, %v917
      %v943 = vcombine.low %v892, %v924
      %v944 = vcombine.high %v892, %v924
      %v945 = vcombine.low %v901, %v933
      %v946 = vcombine.high %v901, %v933
      %v947 = vcombine.low %v908, %v940
      %v948 = vcombine.high %v908, %v940
      %v949 = vcombine.low %v785, %v792
      %v951 = vunpack.c.l.s4 1983009808
      %v952 = vunpack.c.0.s8 %v951
      %v953 = vlaneseq
      %v954 = vshrl.u32 %v953, 7
      %v955 = vsub.s32 %v952, %v954
      %v956 = vrot.slane %v949, %v955
      %v957 = vcombine.low %v809, %v810
      %v959 = vunpack.c.l.s4 1983009808
      %v960 = vunpack.c.0.s8 %v959
      %v961 = vlaneseq
      %v962 = vshrl.u32 %v961, 7
      %v963 = vsub.s32 %v960, %v962
      %v964 = vrot.slane %v957, %v963
      %v965 = vcombine.low %v801, %v808
      %v967 = vunpack.c.l.s4 1983009808
      %v968 = vunpack.c.0.s8 %v967
      %v969 = vlaneseq
      %v970 = vshrl.u32 %v969, 7
      %v971 = vsub.s32 %v968, %v970
      %v972 = vrot.slane %v965, %v971
      %v973 = vcombine.low %v811, %v812
      %v975 = vunpack.c.l.s4 1983009808
      %v976 = vunpack.c.0.s8 %v975
      %v977 = vlaneseq
      %v978 = vshrl.u32 %v977, 7
      %v979 = vsub.s32 %v976, %v978
      %v980 = vrot.slane %v973, %v979
      %v981 = vcombine.low %v956, %v964
      %v982 = vcombine.high %v956, %v964
      %v984 = vunpack.c.l.s4 1934713408
      %v985 = vunpack.c.0.s8 %v984
      %v986 = vlaneseq
      %v987 = vshrl.u32 %v986, 7
      %v988 = vsub.s32 %v985, %v987
      %v989 = vrot.slane %v981, %v988
      %v991 = vunpack.c.l.s4 1934713408
      %v992 = vunpack.c.0.s8 %v991
      %v993 = vlaneseq
      %v994 = vshrl.u32 %v993, 7
      %v995 = vsub.s32 %v992, %v994
      %v996 = vrot.slane %v982, %v995
      %v997 = vcombine.low %v972, %v980
      %v998 = vcombine.high %v972, %v980
      %v1000 = vunpack.c.l.s4 1934713408
      %v1001 = vunpack.c.0.s8 %v1000
      %v1002 = vlaneseq
      %v1003 = vshrl.u32 %v1002, 7
      %v1004 = vsub.s32 %v1001, %v1003
      %v1005 = vrot.slane %v997, %v1004
      %v1007 = vunpack.c.l.s4 1934713408
      %v1008 = vunpack.c.0.s8 %v1007
      %v1009 = vlaneseq
      %v1010 = vshrl.u32 %v1009, 7
      %v1011 = vsub.s32 %v1008, %v1010
      %v1012 = vrot.slane %v998, %v1011
      %v1013 = vcombine.low %v989, %v1005
      %v1014 = vcombine.high %v989, %v1005
      %v1015 = vcombine.low %v996, %v1012
      %v1016 = vcombine.high %v996, %v1012
      %v1017 = vpack.c.bf16 %v941, %v941
      %v1018 = vpack.c.bf16 %v942, %v942
      %v1019 = vpack.c.bf16 %v943, %v943
      %v1020 = vpack.c.bf16 %v944, %v944
      %v1021 = vpack.c.bf16 %v945, %v945
      %v1022 = vpack.c.bf16 %v946, %v946
      %v1023 = vpack.c.bf16 %v947, %v947
      %v1024 = vpack.c.bf16 %v948, %v948
      %v1025 = vpack.c.bf16 %v1013, %v1013
      %v1026 = vpack.c.bf16 %v1014, %v1014
      %v1027 = vpack.c.bf16 %v1015, %v1015
      %v1028 = vpack.c.bf16 %v1016, %v1016
      %v1030 = vlaneseq
      %v1031 = vshrl.u32 %v1030, 7
      %v1032 = vsub.s32 0, %v1031
      %v1033 = vrot.slane %v479, %v1032
      %vm1035 = vcmask 64512
      %v1037 = vsel %vm1035, %v1017, 0
      %v1040 = vsel %vm1035, %v1021, 0
      %1042 = vmatprep.subr.bf16.mxu0 0
      %1043 = vmatpush1.bf16.xpose.msra.mxu0 %v1040
      %1044 = vmatprep.subr.bf16.mxu0 0
      %1045 = vmatpush1.bf16.xpose.msra.mxu0 0
      %1046 = vmatprep.subr.bf16.mxu0 0
      %1047 = vmatpush1.bf16.xpose.msra.mxu0 0
      %1048 = vmatprep.subr.bf16.mxu0 0
      %1049 = vmatpush1.bf16.xpose.msra.mxu0 0
      %1050 = vmatprep.subr.bf16.mxu0 0
      %1051 = vmatpush1.bf16.xpose.msra.mxu0 0
      %1052 = vmatprep.subr.bf16.mxu0 0
      %1053 = vmatpush1.bf16.xpose.msra.mxu0 0
      %1054 = vmatprep.subr.bf16.mxu0 0
      %1055 = vmatpush1.bf16.xpose.msra.mxu0 0
      %1056 = vmatprep.subr.bf16.mxu0 0
      %1057 = vmatpush1.bf16.xpose.msra.mxu0 0
      %1058 = vmatprep.subr.bf16.mxu0 0
      %1059 = vmatpush1.bf16.xpose.msra.mxu0 0
      %1060 = vmatprep.subr.bf16.mxu0 0
      %1061 = vmatpush1.bf16.xpose.msra.mxu0 0
      %1062 = vmatprep.subr.bf16.mxu0 0
      %1063 = vmatpush1.bf16.xpose.msra.mxu0 0
      %1064 = vmatprep.subr.bf16.mxu0 0
      %1065 = vmatpush1.bf16.xpose.msra.mxu0 0
      %1066 = vmatprep.subr.bf16.mxu0 0
      %1067 = vmatpush1.bf16.xpose.msra.mxu0 0
      %1068 = vmatprep.subr.bf16.mxu0 0
      %1069 = vmatpush1.bf16.xpose.msra.mxu0 0
      %1070 = vmatprep.subr.bf16.mxu0 0
      %1071 = vmatpush1.bf16.xpose.msra.mxu0 0
      %1072 = vmatprep.subr.bf16.mxu0 0
      %1073 = vmatpush1.bf16.xpose.msra.mxu0 0
      %1074 = vmatprep.mubr.bf16.mxu0 0
      %1075 = vmatmul.mubr.bf16.gmra.mrb[0].mxu0 %v1037
      %v1076 = vpop.f32.mrb[0].mxu0
      %v1077 = vadd.f32 %v1033, %v1076
      %v1078 = vpop.f32.mrb[0].mxu0
      %v1079 = vpop.f32.mrb[0].mxu0
      %v1080 = vpop.f32.mrb[0].mxu0
      %1081 = vdwg.mxu0
      %v1083 = vsel %vm1035, %v1018, 0
      %v1086 = vsel %vm1035, %v1022, 0
      %1088 = vmatprep.subr.bf16.mxu0 0
      %1089 = vmatpush1.bf16.xpose.msra.mxu0 %v1086
      %1090 = vmatprep.subr.bf16.mxu0 0
      %1091 = vmatpush1.bf16.xpose.msra.mxu0 0
      %1092 = vmatprep.subr.bf16.mxu0 0
      %1093 = vmatpush1.bf16.xpose.msra.mxu0 0
      %1094 = vmatprep.subr.bf16.mxu0 0
      %1095 = vmatpush1.bf16.xpose.msra.mxu0 0
      %1096 = vmatprep.subr.bf16.mxu0 0
      %1097 = vmatpush1.bf16.xpose.msra.mxu0 0
      %1098 = vmatprep.subr.bf16.mxu0 0
      %1099 = vmatpush1.bf16.xpose.msra.mxu0 0
      %1100 = vmatprep.subr.bf16.mxu0 0
      %1101 = vmatpush1.bf16.xpose.msra.mxu0 0
      %1102 = vmatprep.subr.bf16.mxu0 0
      %1103 = vmatpush1.bf16.xpose.msra.mxu0 0
      %1104 = vmatprep.subr.bf16.mxu0 0
      %1105 = vmatpush1.bf16.xpose.msra.mxu0 0
      %1106 = vmatprep.subr.bf16.mxu0 0
      %1107 = vmatpush1.bf16.xpose.msra.mxu0 0
      %1108 = vmatprep.subr.bf16.mxu0 0
      %1109 = vmatpush1.bf16.xpose.msra.mxu0 0
      %1110 = vmatprep.subr.bf16.mxu0 0
      %1111 = vmatpush1.bf16.xpose.msra.mxu0 0
      %1112 = vmatprep.subr.bf16.mxu0 0
      %1113 = vmatpush1.bf16.xpose.msra.mxu0 0
      %1114 = vmatprep.subr.bf16.mxu0 0
      %1115 = vmatpush1.bf16.xpose.msra.mxu0 0
      %1116 = vmatprep.subr.bf16.mxu0 0
      %1117 = vmatpush1.bf16.xpose.msra.mxu0 0
      %1118 = vmatprep.subr.bf16.mxu0 0
      %1119 = vmatpush1.bf16.xpose.msra.mxu0 0
      %1120 = vmatprep.mubr.bf16.mxu0 0
      %1121 = vmatmul.mubr.bf16.gmra.mrb[0].mxu0 %v1083
      %v1122 = vpop.f32.mrb[0].mxu0
      %v1123 = vadd.f32 %v1033, %v1122
      %v1124 = vpop.f32.mrb[0].mxu0
      %v1125 = vpop.f32.mrb[0].mxu0
      %v1126 = vpop.f32.mrb[0].mxu0
      %1127 = vdwg.mxu0
      %v1129 = vsel %vm1035, %v1019, 0
      %v1132 = vsel %vm1035, %v1023, 0
      %1134 = vmatprep.subr.bf16.mxu0 0
      %1135 = vmatpush1.bf16.xpose.msra.mxu0 %v1132
      %1136 = vmatprep.subr.bf16.mxu0 0
      %1137 = vmatpush1.bf16.xpose.msra.mxu0 0
      %1138 = vmatprep.subr.bf16.mxu0 0
      %1139 = vmatpush1.bf16.xpose.msra.mxu0 0
      %1140 = vmatprep.subr.bf16.mxu0 0
      %1141 = vmatpush1.bf16.xpose.msra.mxu0 0
      %1142 = vmatprep.subr.bf16.mxu0 0
      %1143 = vmatpush1.bf16.xpose.msra.mxu0 0
      %1144 = vmatprep.subr.bf16.mxu0 0
      %1145 = vmatpush1.bf16.xpose.msra.mxu0 0
      %1146 = vmatprep.subr.bf16.mxu0 0
      %1147 = vmatpush1.bf16.xpose.msra.mxu0 0
      %1148 = vmatprep.subr.bf16.mxu0 0
      %1149 = vmatpush1.bf16.xpose.msra.mxu0 0
      %1150 = vmatprep.subr.bf16.mxu0 0
      %1151 = vmatpush1.bf16.xpose.msra.mxu0 0
      %1152 = vmatprep.subr.bf16.mxu0 0
      %1153 = vmatpush1.bf16.xpose.msra.mxu0 0
      %1154 = vmatprep.subr.bf16.mxu0 0
      %1155 = vmatpush1.bf16.xpose.msra.mxu0 0
      %1156 = vmatprep.subr.bf16.mxu0 0
      %1157 = vmatpush1.bf16.xpose.msra.mxu0 0
      %1158 = vmatprep.subr.bf16.mxu0 0
      %1159 = vmatpush1.bf16.xpose.msra.mxu0 0
      %1160 = vmatprep.subr.bf16.mxu0 0
      %1161 = vmatpush1.bf16.xpose.msra.mxu0 0
      %1162 = vmatprep.subr.bf16.mxu0 0
      %1163 = vmatpush1.bf16.xpose.msra.mxu0 0
      %1164 = vmatprep.subr.bf16.mxu0 0
      %1165 = vmatpush1.bf16.xpose.msra.mxu0 0
      %1166 = vmatprep.mubr.bf16.mxu0 0
      %1167 = vmatmul.mubr.bf16.gmra.mrb[0].mxu0 %v1129
      %v1168 = vpop.f32.mrb[0].mxu0
      %v1169 = vadd.f32 %v1033, %v1168
      %v1170 = vpop.f32.mrb[0].mxu0
      %v1171 = vpop.f32.mrb[0].mxu0
      %v1172 = vpop.f32.mrb[0].mxu0
      %1173 = vdwg.mxu0
      %v1175 = vsel %vm1035, %v1020, 0
      %v1178 = vsel %vm1035, %v1024, 0
      %1180 = vmatprep.subr.bf16.mxu0 0
      %1181 = vmatpush1.bf16.xpose.msra.mxu0 %v1178
      %1182 = vmatprep.subr.bf16.mxu0 0
      %1183 = vmatpush1.bf16.xpose.msra.mxu0 0
      %1184 = vmatprep.subr.bf16.mxu0 0
      %1185 = vmatpush1.bf16.xpose.msra.mxu0 0
      %1186 = vmatprep.subr.bf16.mxu0 0
      %1187 = vmatpush1.bf16.xpose.msra.mxu0 0
      %1188 = vmatprep.subr.bf16.mxu0 0
      %1189 = vmatpush1.bf16.xpose.msra.mxu0 0
      %1190 = vmatprep.subr.bf16.mxu0 0
      %1191 = vmatpush1.bf16.xpose.msra.mxu0 0
      %1192 = vmatprep.subr.bf16.mxu0 0
      %1193 = vmatpush1.bf16.xpose.msra.mxu0 0
      %1194 = vmatprep.subr.bf16.mxu0 0
      %1195 = vmatpush1.bf16.xpose.msra.mxu0 0
      %1196 = vmatprep.subr.bf16.mxu0 0
      %1197 = vmatpush1.bf16.xpose.msra.mxu0 0
      %1198 = vmatprep.subr.bf16.mxu0 0
      %1199 = vmatpush1.bf16.xpose.msra.mxu0 0
      %1200 = vmatprep.subr.bf16.mxu0 0
      %1201 = vmatpush1.bf16.xpose.msra.mxu0 0
      %1202 = vmatprep.subr.bf16.mxu0 0
      %1203 = vmatpush1.bf16.xpose.msra.mxu0 0
      %1204 = vmatprep.subr.bf16.mxu0 0
      %1205 = vmatpush1.bf16.xpose.msra.mxu0 0
      %1206 = vmatprep.subr.bf16.mxu0 0
      %1207 = vmatpush1.bf16.xpose.msra.mxu0 0
      %1208 = vmatprep.subr.bf16.mxu0 0
      %1209 = vmatpush1.bf16.xpose.msra.mxu0 0
      %1210 = vmatprep.subr.bf16.mxu0 0
      %1211 = vmatpush1.bf16.xpose.msra.mxu0 0
      %1212 = vmatprep.mubr.bf16.mxu0 0
      %1213 = vmatmul.mubr.bf16.gmra.mrb[0].mxu0 %v1175
      %v1214 = vpop.f32.mrb[0].mxu0
      %v1215 = vadd.f32 %v1033, %v1214
      %v1216 = vpop.f32.mrb[0].mxu0
      %v1217 = vpop.f32.mrb[0].mxu0
      %v1218 = vpop.f32.mrb[0].mxu0
      %1219 = vdwg.mxu0
      %v1220 = vsel %vm1035, %v1077, -inf
      %1221 = vmax.xlane.f32.xlu0 %v1220
      %v1222 = vpop.xlane.xlu0 %1221
      %v1223 = vsel %vm1035, %v1123, -inf
      %1224 = vmax.xlane.f32.xlu0 %v1223
      %v1225 = vpop.xlane.xlu0 %1224
      %v1226 = vsel %vm1035, %v1169, -inf
      %1227 = vmax.xlane.f32.xlu0 %v1226
      %v1228 = vpop.xlane.xlu0 %1227
      %v1229 = vsel %vm1035, %v1215, -inf
      %1230 = vmax.xlane.f32.xlu0 %v1229
      %v1231 = vpop.xlane.xlu0 %1230
      %v1232 = vsub.f32 %v1077, %v1222
      %v1233 = vsub.f32 %v1123, %v1225
      %v1234 = vsub.f32 %v1169, %v1228
      %v1235 = vsub.f32 %v1215, %v1231
      %v1236 = vmul.f32 %v1232, 1.442695
      %v1237 = vpow.pop %v1236
      %v1238 = vmul.f32 %v1233, 1.442695
      %v1239 = vpow.pop %v1238
      %v1240 = vmul.f32 %v1234, 1.442695
      %v1241 = vpow.pop %v1240
      %v1242 = vmul.f32 %v1235, 1.442695
      %v1243 = vpow.pop %v1242
      %v1244 = vsel %vm1035, %v1237, 0.0
      %1245 = vadd.xlane.f32.xlu0 %v1244
      %v1246 = vpop.xlane.xlu0 %1245
      %v1247 = vsel %vm1035, %v1239, 0.0
      %1248 = vadd.xlane.f32.xlu0 %v1247
      %v1249 = vpop.xlane.xlu0 %1248
      %v1250 = vsel %vm1035, %v1241, 0.0
      %1251 = vadd.xlane.f32.xlu0 %v1250
      %v1252 = vpop.xlane.xlu0 %1251
      %v1253 = vsel %vm1035, %v1243, 0.0
      %1254 = vadd.xlane.f32.xlu0 %v1253
      %v1255 = vpop.xlane.xlu0 %1254
      %v1256 = vrcp.pop %v1246
      %v1257 = vrcp.pop %v1249
      %v1258 = vrcp.pop %v1252
      %v1259 = vrcp.pop %v1255
      %v1260 = vmul.f32 %v1237, %v1256
      %v1261 = vmul.f32 %v1239, %v1257
      %v1262 = vmul.f32 %v1241, %v1258
      %v1263 = vmul.f32 %v1243, %v1259
      %v1264 = vpack.c.bf16 %v1260, %v1260
      %v1265 = vpack.c.bf16 %v1261, %v1261
      %v1266 = vpack.c.bf16 %v1262, %v1262
      %v1267 = vpack.c.bf16 %v1263, %v1263
      %v1269 = vsel %vm1035, %v1264, 0
      %vm1271 = vcmask 1043456
      %v1273 = vsel %vm1271, %v1025, 0
      %1275 = vmatprep.subr.bf16.mxu0 0
      %1276 = vmatpush1.bf16.msra.mxu0 %v1273
      %1277 = vmatprep.subr.bf16.mxu0 0
      %1278 = vmatpush1.bf16.msra.mxu0 0
      %1279 = vmatprep.subr.bf16.mxu0 0
      %1280 = vmatpush1.bf16.msra.mxu0 0
      %1281 = vmatprep.subr.bf16.mxu0 0
      %1282 = vmatpush1.bf16.msra.mxu0 0
      %1283 = vmatprep.subr.bf16.mxu0 0
      %1284 = vmatpush1.bf16.msra.mxu0 0
      %1285 = vmatprep.subr.bf16.mxu0 0
      %1286 = vmatpush1.bf16.msra.mxu0 0
      %1287 = vmatprep.subr.bf16.mxu0 0
      %1288 = vmatpush1.bf16.msra.mxu0 0
      %1289 = vmatprep.subr.bf16.mxu0 0
      %1290 = vmatpush1.bf16.msra.mxu0 0
      %1291 = vmatprep.subr.bf16.mxu0 0
      %1292 = vmatpush1.bf16.msra.mxu0 0
      %1293 = vmatprep.subr.bf16.mxu0 0
      %1294 = vmatpush1.bf16.msra.mxu0 0
      %1295 = vmatprep.subr.bf16.mxu0 0
      %1296 = vmatpush1.bf16.msra.mxu0 0
      %1297 = vmatprep.subr.bf16.mxu0 0
      %1298 = vmatpush1.bf16.msra.mxu0 0
      %1299 = vmatprep.subr.bf16.mxu0 0
      %1300 = vmatpush1.bf16.msra.mxu0 0
      %1301 = vmatprep.subr.bf16.mxu0 0
      %1302 = vmatpush1.bf16.msra.mxu0 0
      %1303 = vmatprep.subr.bf16.mxu0 0
      %1304 = vmatpush1.bf16.msra.mxu0 0
      %1305 = vmatprep.subr.bf16.mxu0 0
      %1306 = vmatpush1.bf16.msra.mxu0 0
      %1307 = vmatprep.mubr.bf16.mxu0 0
      %1308 = vmatmul.mubr.bf16.gmra.mrb[0].mxu0 %v1269
      %v1309 = vpop.f32.mrb[0].mxu0
      %v1310 = vadd.f32 0.0, %v1309
      %v1311 = vpop.f32.mrb[0].mxu0
      %v1312 = vpop.f32.mrb[0].mxu0
      %v1313 = vpop.f32.mrb[0].mxu0
      %1314 = vdwg.mxu0
      %v1316 = vsel %vm1035, %v1265, 0
      %v1319 = vsel %vm1271, %v1026, 0
      %1321 = vmatprep.subr.bf16.mxu0 0
      %1322 = vmatpush1.bf16.msra.mxu0 %v1319
      %1323 = vmatprep.subr.bf16.mxu0 0
      %1324 = vmatpush1.bf16.msra.mxu0 0
      %1325 = vmatprep.subr.bf16.mxu0 0
      %1326 = vmatpush1.bf16.msra.mxu0 0
      %1327 = vmatprep.subr.bf16.mxu0 0
      %1328 = vmatpush1.bf16.msra.mxu0 0
      %1329 = vmatprep.subr.bf16.mxu0 0
      %1330 = vmatpush1.bf16.msra.mxu0 0
      %1331 = vmatprep.subr.bf16.mxu0 0
      %1332 = vmatpush1.bf16.msra.mxu0 0
      %1333 = vmatprep.subr.bf16.mxu0 0
      %1334 = vmatpush1.bf16.msra.mxu0 0
      %1335 = vmatprep.subr.bf16.mxu0 0
      %1336 = vmatpush1.bf16.msra.mxu0 0
      %1337 = vmatprep.subr.bf16.mxu0 0
      %1338 = vmatpush1.bf16.msra.mxu0 0
      %1339 = vmatprep.subr.bf16.mxu0 0
      %1340 = vmatpush1.bf16.msra.mxu0 0
      %1341 = vmatprep.subr.bf16.mxu0 0
      %1342 = vmatpush1.bf16.msra.mxu0 0
      %1343 = vmatprep.subr.bf16.mxu0 0
      %1344 = vmatpush1.bf16.msra.mxu0 0
      %1345 = vmatprep.subr.bf16.mxu0 0
      %1346 = vmatpush1.bf16.msra.mxu0 0
      %1347 = vmatprep.subr.bf16.mxu0 0
      %1348 = vmatpush1.bf16.msra.mxu0 0
      %1349 = vmatprep.subr.bf16.mxu0 0
      %1350 = vmatpush1.bf16.msra.mxu0 0
      %1351 = vmatprep.subr.bf16.mxu0 0
      %1352 = vmatpush1.bf16.msra.mxu0 0
      %1353 = vmatprep.mubr.bf16.mxu0 0
      %1354 = vmatmul.mubr.bf16.gmra.mrb[0].mxu0 %v1316
      %v1355 = vpop.f32.mrb[0].mxu0
      %v1356 = vadd.f32 0.0, %v1355
      %v1357 = vpop.f32.mrb[0].mxu0
      %v1358 = vpop.f32.mrb[0].mxu0
      %v1359 = vpop.f32.mrb[0].mxu0
      %1360 = vdwg.mxu0
      %v1362 = vsel %vm1035, %v1266, 0
      %v1365 = vsel %vm1271, %v1027, 0
      %1367 = vmatprep.subr.bf16.mxu0 0
      %1368 = vmatpush1.bf16.msra.mxu0 %v1365
      %1369 = vmatprep.subr.bf16.mxu0 0
      %1370 = vmatpush1.bf16.msra.mxu0 0
      %1371 = vmatprep.subr.bf16.mxu0 0
      %1372 = vmatpush1.bf16.msra.mxu0 0
      %1373 = vmatprep.subr.bf16.mxu0 0
      %1374 = vmatpush1.bf16.msra.mxu0 0
      %1375 = vmatprep.subr.bf16.mxu0 0
      %1376 = vmatpush1.bf16.msra.mxu0 0
      %1377 = vmatprep.subr.bf16.mxu0 0
      %1378 = vmatpush1.bf16.msra.mxu0 0
      %1379 = vmatprep.subr.bf16.mxu0 0
      %1380 = vmatpush1.bf16.msra.mxu0 0
      %1381 = vmatprep.subr.bf16.mxu0 0
      %1382 = vmatpush1.bf16.msra.mxu0 0
      %1383 = vmatprep.subr.bf16.mxu0 0
      %1384 = vmatpush1.bf16.msra.mxu0 0
      %1385 = vmatprep.subr.bf16.mxu0 0
      %1386 = vmatpush1.bf16.msra.mxu0 0
      %1387 = vmatprep.subr.bf16.mxu0 0
      %1388 = vmatpush1.bf16.msra.mxu0 0
      %1389 = vmatprep.subr.bf16.mxu0 0
      %1390 = vmatpush1.bf16.msra.mxu0 0
      %1391 = vmatprep.subr.bf16.mxu0 0
      %1392 = vmatpush1.bf16.msra.mxu0 0
      %1393 = vmatprep.subr.bf16.mxu0 0
      %1394 = vmatpush1.bf16.msra.mxu0 0
      %1395 = vmatprep.subr.bf16.mxu0 0
      %1396 = vmatpush1.bf16.msra.mxu0 0
      %1397 = vmatprep.subr.bf16.mxu0 0
      %1398 = vmatpush1.bf16.msra.mxu0 0
      %1399 = vmatprep.mubr.bf16.mxu0 0
      %1400 = vmatmul.mubr.bf16.gmra.mrb[0].mxu0 %v1362
      %v1401 = vpop.f32.mrb[0].mxu0
      %v1402 = vadd.f32 0.0, %v1401
      %v1403 = vpop.f32.mrb[0].mxu0
      %v1404 = vpop.f32.mrb[0].mxu0
      %v1405 = vpop.f32.mrb[0].mxu0
      %1406 = vdwg.mxu0
      %v1408 = vsel %vm1035, %v1267, 0
      %v1411 = vsel %vm1271, %v1028, 0
      %1413 = vmatprep.subr.bf16.mxu0 0
      %1414 = vmatpush1.bf16.msra.mxu0 %v1411
      %1415 = vmatprep.subr.bf16.mxu0 0
      %1416 = vmatpush1.bf16.msra.mxu0 0
      %1417 = vmatprep.subr.bf16.mxu0 0
      %1418 = vmatpush1.bf16.msra.mxu0 0
      %1419 = vmatprep.subr.bf16.mxu0 0
      %1420 = vmatpush1.bf16.msra.mxu0 0
      %1421 = vmatprep.subr.bf16.mxu0 0
      %1422 = vmatpush1.bf16.msra.mxu0 0
      %1423 = vmatprep.subr.bf16.mxu0 0
      %1424 = vmatpush1.bf16.msra.mxu0 0
      %1425 = vmatprep.subr.bf16.mxu0 0
      %1426 = vmatpush1.bf16.msra.mxu0 0
      %1427 = vmatprep.subr.bf16.mxu0 0
      %1428 = vmatpush1.bf16.msra.mxu0 0
      %1429 = vmatprep.subr.bf16.mxu0 0
      %1430 = vmatpush1.bf16.msra.mxu0 0
      %1431 = vmatprep.subr.bf16.mxu0 0
      %1432 = vmatpush1.bf16.msra.mxu0 0
      %1433 = vmatprep.subr.bf16.mxu0 0
      %1434 = vmatpush1.bf16.msra.mxu0 0
      %1435 = vmatprep.subr.bf16.mxu0 0
      %1436 = vmatpush1.bf16.msra.mxu0 0
      %1437 = vmatprep.subr.bf16.mxu0 0
      %1438 = vmatpush1.bf16.msra.mxu0 0
      %1439 = vmatprep.subr.bf16.mxu0 0
      %1440 = vmatpush1.bf16.msra.mxu0 0
      %1441 = vmatprep.subr.bf16.mxu0 0
      %1442 = vmatpush1.bf16.msra.mxu0 0
      %1443 = vmatprep.subr.bf16.mxu0 0
      %1444 = vmatpush1.bf16.msra.mxu0 0
      %1445 = vmatprep.mubr.bf16.mxu0 0
      %1446 = vmatmul.mubr.bf16.gmra.mrb[0].mxu0 %v1408
      %v1447 = vpop.f32.mrb[0].mxu0
      %v1448 = vadd.f32 0.0, %v1447
      %v1449 = vpop.f32.mrb[0].mxu0
      %v1450 = vpop.f32.mrb[0].mxu0
      %v1451 = vpop.f32.mrb[0].mxu0
      %1452 = vdwg.mxu0
      %v1453 = vcombine.low %v1310, %v1402
      %v1454 = vcombine.high %v1310, %v1402
      %v1456 = vunpack.c.l.s4 1983009808
      %v1457 = vunpack.c.0.s8 %v1456
      %v1458 = vlaneseq
      %v1459 = vshrl.u32 %v1458, 7
      %v1460 = vsub.s32 %v1457, %v1459
      %v1461 = vrot.slane %v1453, %v1460
      %v1463 = vunpack.c.l.s4 1983009808
      %v1464 = vunpack.c.0.s8 %v1463
      %v1465 = vlaneseq
      %v1466 = vshrl.u32 %v1465, 7
      %v1467 = vsub.s32 %v1464, %v1466
      %v1468 = vrot.slane %v1454, %v1467
      %v1469 = vcombine.low %v1356, %v1448
      %v1470 = vcombine.high %v1356, %v1448
      %v1472 = vunpack.c.l.s4 1983009808
      %v1473 = vunpack.c.0.s8 %v1472
      %v1474 = vlaneseq
      %v1475 = vshrl.u32 %v1474, 7
      %v1476 = vsub.s32 %v1473, %v1475
      %v1477 = vrot.slane %v1469, %v1476
      %v1479 = vunpack.c.l.s4 1983009808
      %v1480 = vunpack.c.0.s8 %v1479
      %v1481 = vlaneseq
      %v1482 = vshrl.u32 %v1481, 7
      %v1483 = vsub.s32 %v1480, %v1482
      %v1484 = vrot.slane %v1470, %v1483
      %v1485 = vcombine.low %v1461, %v1477
      %v1486 = vcombine.high %v1461, %v1477
      %v1488 = vunpack.c.l.s4 1934713408
      %v1489 = vunpack.c.0.s8 %v1488
      %v1490 = vlaneseq
      %v1491 = vshrl.u32 %v1490, 7
      %v1492 = vsub.s32 %v1489, %v1491
      %v1493 = vrot.slane %v1485, %v1492
      %v1495 = vunpack.c.l.s4 1934713408
      %v1496 = vunpack.c.0.s8 %v1495
      %v1497 = vlaneseq
      %v1498 = vshrl.u32 %v1497, 7
      %v1499 = vsub.s32 %v1496, %v1498
      %v1500 = vrot.slane %v1486, %v1499
      %v1501 = vcombine.low %v1468, %v1484
      %v1502 = vcombine.high %v1468, %v1484
      %v1504 = vunpack.c.l.s4 1934713408
      %v1505 = vunpack.c.0.s8 %v1504
      %v1506 = vlaneseq
      %v1507 = vshrl.u32 %v1506, 7
      %v1508 = vsub.s32 %v1505, %v1507
      %v1509 = vrot.slane %v1501, %v1508
      %v1511 = vunpack.c.l.s4 1934713408
      %v1512 = vunpack.c.0.s8 %v1511
      %v1513 = vlaneseq
      %v1514 = vshrl.u32 %v1513, 7
      %v1515 = vsub.s32 %v1512, %v1514
      %v1516 = vrot.slane %v1502, %v1515
      %v1517 = vcombine.high %v1493, 0.0
      %v1518 = vcombine.high %v1500, 0.0
      %v1519 = vcombine.high %v1509, 0.0
      %v1520 = vcombine.high %v1516, 0.0
      %v1521 = vcombine.low %v1493, %v1500
      %v1523 = vunpack.c.l.s4 1983009808
      %v1524 = vunpack.c.0.s8 %v1523
      %v1525 = vlaneseq
      %v1526 = vshrl.u32 %v1525, 7
      %v1527 = vsub.s32 %v1524, %v1526
      %v1528 = vrot.slane %v1521, %v1527
      %v1529 = vcombine.low %v1517, %v1518
      %v1531 = vunpack.c.l.s4 1983009808
      %v1532 = vunpack.c.0.s8 %v1531
      %v1533 = vlaneseq
      %v1534 = vshrl.u32 %v1533, 7
      %v1535 = vsub.s32 %v1532, %v1534
      %v1536 = vrot.slane %v1529, %v1535
      %v1537 = vcombine.low %v1509, %v1516
      %v1539 = vunpack.c.l.s4 1983009808
      %v1540 = vunpack.c.0.s8 %v1539
      %v1541 = vlaneseq
      %v1542 = vshrl.u32 %v1541, 7
      %v1543 = vsub.s32 %v1540, %v1542
      %v1544 = vrot.slane %v1537, %v1543
      %v1545 = vcombine.low %v1519, %v1520
      %v1547 = vunpack.c.l.s4 1983009808
      %v1548 = vunpack.c.0.s8 %v1547
      %v1549 = vlaneseq
      %v1550 = vshrl.u32 %v1549, 7
      %v1551 = vsub.s32 %v1548, %v1550
      %v1552 = vrot.slane %v1545, %v1551
      %v1553 = vcombine.low %v1528, %v1536
      %v1554 = vcombine.high %v1528, %v1536
      %v1556 = vunpack.c.l.s4 1934713408
      %v1557 = vunpack.c.0.s8 %v1556
      %v1558 = vlaneseq
      %v1559 = vshrl.u32 %v1558, 7
      %v1560 = vsub.s32 %v1557, %v1559
      %v1561 = vrot.slane %v1553, %v1560
      %v1563 = vunpack.c.l.s4 1934713408
      %v1564 = vunpack.c.0.s8 %v1563
      %v1565 = vlaneseq
      %v1566 = vshrl.u32 %v1565, 7
      %v1567 = vsub.s32 %v1564, %v1566
      %v1568 = vrot.slane %v1554, %v1567
      %v1569 = vcombine.low %v1544, %v1552
      %v1570 = vcombine.high %v1544, %v1552
      %v1572 = vunpack.c.l.s4 1934713408
      %v1573 = vunpack.c.0.s8 %v1572
      %v1574 = vlaneseq
      %v1575 = vshrl.u32 %v1574, 7
      %v1576 = vsub.s32 %v1573, %v1575
      %v1577 = vrot.slane %v1569, %v1576
      %v1579 = vunpack.c.l.s4 1934713408
      %v1580 = vunpack.c.0.s8 %v1579
      %v1581 = vlaneseq
      %v1582 = vshrl.u32 %v1581, 7
      %v1583 = vsub.s32 %v1580, %v1582
      %v1584 = vrot.slane %v1570, %v1583
      %v1585 = vcombine.low %v1561, %v1577
      %v1586 = vcombine.high %v1561, %v1577
      %v1587 = vcombine.low %v1568, %v1584
      %v1588 = vcombine.high %v1568, %v1584
      %1590 = vrot.lane.b32.xlu0 %v1586, 8
      %v1591 = vpop.permute.xlu0 %1590
      %1594 = vrot.lane.b32.xlu0 %v1587, 16
      %v1595 = vpop.permute.xlu0 %1594
      %1598 = vrot.lane.b32.xlu0 %v1588, 24
      %v1599 = vpop.permute.xlu0 %1598
      %v1601 = vsel %vm1035, %v1585, %v1591
      %vm1602 = vcmask 130048
      %v1603 = vsel %vm1602, %v1601, %v1595
      %vm1604 = vcmask 195584
      %v1605 = vsel %vm1604, %v1603, %v1599
      %v1606 = vpack.c.bf16 %v1605, %v1605
      %v1607 = vld [vmem:[%s5] sm:$0xf]
      %v1608 = vld [vmem:[%s5 + $0x4] sm:$0xf]
      %v1609 = vld [vmem:[%s5 + $0x8] sm:$0xf]
      %v1610 = vld [vmem:[%s5 + $0xc] sm:$0xf]
      %v1611 = vlaneseq
      %v1612 = vshrl.u32 %v1611, 7
      %v1613 = vsub.s32 0, %v1612
      %v1614 = vrot.slane %v507, %v1613
      %v1619 = vunpack.c.l.b16 %v1607
      %v1620 = vunpack.c.l.b16 %v1608
      %v1621 = vunpack.c.l.b16 %v1609
      %v1622 = vunpack.c.l.b16 %v1610
      %v1623 = vpack.c.b16 %v1620, %v1619
      %v1624 = vpack.c.b16 %v1622, %v1621
      %v1628 = vsel %vm482, %v1606, 0
      %1630 = vmatprep.subr.bf16.mxu0 0
      %1631 = vmatpush1.bf16.msra.mxu0 %v1623
      %1632 = vmatprep.subr.bf16.mxu0 0
      %1633 = vmatpush1.bf16.msra.mxu0 %v1624
      %1634 = vmatprep.subr.bf16.mxu0 0
      %1635 = vmatpush1.bf16.msra.mxu0 0
      %1636 = vmatprep.subr.bf16.mxu0 0
      %1637 = vmatpush1.bf16.msra.mxu0 0
      %1638 = vmatprep.subr.bf16.mxu0 0
      %1639 = vmatpush1.bf16.msra.mxu0 0
      %1640 = vmatprep.subr.bf16.mxu0 0
      %1641 = vmatpush1.bf16.msra.mxu0 0
      %1642 = vmatprep.subr.bf16.mxu0 0
      %1643 = vmatpush1.bf16.msra.mxu0 0
      %1644 = vmatprep.subr.bf16.mxu0 0
      %1645 = vmatpush1.bf16.msra.mxu0 0
      %1646 = vmatprep.subr.bf16.mxu0 0
      %1647 = vmatpush1.bf16.msra.mxu0 0
      %1648 = vmatprep.subr.bf16.mxu0 0
      %1649 = vmatpush1.bf16.msra.mxu0 0
      %1650 = vmatprep.subr.bf16.mxu0 0
      %1651 = vmatpush1.bf16.msra.mxu0 0
      %1652 = vmatprep.subr.bf16.mxu0 0
      %1653 = vmatpush1.bf16.msra.mxu0 0
      %1654 = vmatprep.subr.bf16.mxu0 0
      %1655 = vmatpush1.bf16.msra.mxu0 0
      %1656 = vmatprep.subr.bf16.mxu0 0
      %1657 = vmatpush1.bf16.msra.mxu0 0
      %1658 = vmatprep.subr.bf16.mxu0 0
      %1659 = vmatpush1.bf16.msra.mxu0 0
      %1660 = vmatprep.subr.bf16.mxu0 0
      %1661 = vmatpush1.bf16.msra.mxu0 0
      %1662 = vmatprep.mubr.bf16.mxu0 0
      %1663 = vmatmul.mubr.bf16.gmra.mrb[0].mxu0 %v1628
      %v1664 = vpop.f32.mrb[0].mxu0
      %v1665 = vadd.f32 %v1614, %v1664
      %v1666 = vpop.f32.mrb[0].mxu0
      %v1667 = vpop.f32.mrb[0].mxu0
      %v1668 = vpop.f32.mrb[0].mxu0
      %1669 = vdwg.mxu0
      %v1670 = vadd.f32 %v506, %v1665
      %v1671 = vsel %vm482, %v1670, 0.0
      %1672 = vadd.xlane.f32.xlu0 %v1671
      %v1673 = vpop.xlane.xlu0 %1672
      %v1674 = vmul.f32 %v1673, %v486
      %v1675 = vsub.f32 %v1670, %v1674
      %v1676 = vmul.f32 %v1675, %v1675
      %v1677 = vsel %vm482, %v1676, 0.0
      %1678 = vadd.xlane.f32.xlu0 %v1677
      %v1679 = vpop.xlane.xlu0 %1678
      %v1680 = vmul.f32 %v1679, %v486
      %v1681 = vadd.f32 %v1680, 1e-05
      %v1682 = vrsqrt.pop %v1681
      %v1683 = vmul.f32 %v1675, %v1682
      %v1684 = vlaneseq
      %v1685 = vshrl.u32 %v1684, 7
      %v1686 = vsub.s32 1, %v1685
      %v1687 = vrot.slane %v507, %v1686
      %v1688 = vmul.f32 %v1683, %v1687
      %v1689 = vlaneseq
      %v1690 = vshrl.u32 %v1689, 7
      %v1691 = vsub.s32 2, %v1690
      %v1692 = vrot.slane %v507, %v1691
      %v1693 = vadd.f32 %v1688, %v1692
      %v1694 = vpack.c.bf16 %v1693, %v1693
      %v1695 = vld [vmem:[%s7] sm:$0xf]
      %v1696 = vld [vmem:[%s7 + $0x4] sm:$0xf]
      %v1697 = vld [vmem:[%s7 + $0x8] sm:$0xf]
      %v1698 = vld [vmem:[%s7 + $0xc] sm:$0xf]
      %v1699 = vld [vmem:[%s8] sm:$0x1]
      %v1701 = vlaneseq
      %v1702 = vshrl.u32 %v1701, 7
      %v1703 = vsub.s32 0, %v1702
      %v1704 = vrot.slane %v1699, %v1703
      %v1710 = vunpack.c.l.b16 %v1695
      %v1711 = vunpack.c.l.b16 %v1696
      %v1712 = vunpack.c.l.b16 %v1697
      %v1713 = vunpack.c.l.b16 %v1698
      %v1714 = vpack.c.b16 %v1711, %v1710
      %v1715 = vpack.c.b16 %v1713, %v1712
      %v1719 = vsel %vm482, %v1694, 0
      %1721 = vmatprep.subr.bf16.mxu0 0
      %1722 = vmatpush1.bf16.msra.mxu0 %v1714
      %1723 = vmatprep.subr.bf16.mxu0 0
      %1724 = vmatpush1.bf16.msra.mxu0 %v1715
      %1725 = vmatprep.subr.bf16.mxu0 0
      %1726 = vmatpush1.bf16.msra.mxu0 0
      %1727 = vmatprep.subr.bf16.mxu0 0
      %1728 = vmatpush1.bf16.msra.mxu0 0
      %1729 = vmatprep.subr.bf16.mxu0 0
      %1730 = vmatpush1.bf16.msra.mxu0 0
      %1731 = vmatprep.subr.bf16.mxu0 0
      %1732 = vmatpush1.bf16.msra.mxu0 0
      %1733 = vmatprep.subr.bf16.mxu0 0
      %1734 = vmatpush1.bf16.msra.mxu0 0
      %1735 = vmatprep.subr.bf16.mxu0 0
      %1736 = vmatpush1.bf16.msra.mxu0 0
      %1737 = vmatprep.subr.bf16.mxu0 0
      %1738 = vmatpush1.bf16.msra.mxu0 0
      %1739 = vmatprep.subr.bf16.mxu0 0
      %1740 = vmatpush1.bf16.msra.mxu0 0
      %1741 = vmatprep.subr.bf16.mxu0 0
      %1742 = vmatpush1.bf16.msra.mxu0 0
      %1743 = vmatprep.subr.bf16.mxu0 0
      %1744 = vmatpush1.bf16.msra.mxu0 0
      %1745 = vmatprep.subr.bf16.mxu0 0
      %1746 = vmatpush1.bf16.msra.mxu0 0
      %1747 = vmatprep.subr.bf16.mxu0 0
      %1748 = vmatpush1.bf16.msra.mxu0 0
      %1749 = vmatprep.subr.bf16.mxu0 0
      %1750 = vmatpush1.bf16.msra.mxu0 0
      %1751 = vmatprep.subr.bf16.mxu0 0
      %1752 = vmatpush1.bf16.msra.mxu0 0
      %1753 = vmatprep.mubr.bf16.mxu0 0
      %1754 = vmatmul.mubr.bf16.gmra.mrb[0].mxu0 %v1719
      %v1755 = vpop.f32.mrb[0].mxu0
      %v1756 = vadd.f32 %v1704, %v1755
      %v1757 = vpop.f32.mrb[0].mxu0
      %v1758 = vpop.f32.mrb[0].mxu0
      %v1759 = vpop.f32.mrb[0].mxu0
      %1760 = vdwg.mxu0
      %v1761 = vmul.f32 %v1756, 0.5
      %v1762 = vmul.f32 %v1756, 0.044715
      %v1763 = vmul.f32 %v1762, %v1756
      %v1764 = vmul.f32 %v1763, %v1756
      %v1765 = vadd.f32 %v1756, %v1764
      %v1766 = vmul.f32 %v1765, 0.7978846
      %v1767 = vtanh.pop %v1766
      %v1768 = vadd.f32 %v1767, 1.0
      %v1769 = vmul.f32 %v1761, %v1768
      %v1770 = vpack.c.bf16 %v1769, %v1769
      %v1771 = vld [vmem:[%s9] sm:$0xf]
      %v1772 = vld [vmem:[%s9 + $0x4] sm:$0xf]
      %v1773 = vld [vmem:[%s9 + $0x8] sm:$0xf]
      %v1774 = vld [vmem:[%s9 + $0xc] sm:$0xf]
      %v1775 = vld [vmem:[%s9 + $0x10] sm:$0xf]
      %v1776 = vld [vmem:[%s9 + $0x14] sm:$0xf]
      %v1777 = vld [vmem:[%s9 + $0x18] sm:$0xf]
      %v1778 = vld [vmem:[%s9 + $0x1c] sm:$0xf]
      %v1779 = vld [vmem:[%s9 + $0x20] sm:$0xf]
      %v1780 = vld [vmem:[%s9 + $0x24] sm:$0xf]
      %v1781 = vld [vmem:[%s9 + $0x28] sm:$0xf]
      %v1782 = vld [vmem:[%s9 + $0x2c] sm:$0xf]
      %v1783 = vld [vmem:[%s9 + $0x30] sm:$0xf]
      %v1784 = vld [vmem:[%s9 + $0x34] sm:$0xf]
      %v1785 = vld [vmem:[%s9 + $0x38] sm:$0xf]
      %v1786 = vld [vmem:[%s9 + $0x3c] sm:$0xf]
      %v1787 = vlaneseq
      %v1788 = vshrl.u32 %v1787, 7
      %v1789 = vsub.s32 3, %v1788
      %v1790 = vrot.slane %v507, %v1789
      %v1807 = vunpack.c.l.b16 %v1771
      %v1808 = vunpack.c.l.b16 %v1772
      %v1809 = vunpack.c.l.b16 %v1773
      %v1810 = vunpack.c.l.b16 %v1774
      %v1811 = vunpack.c.l.b16 %v1775
      %v1812 = vunpack.c.l.b16 %v1776
      %v1813 = vunpack.c.l.b16 %v1777
      %v1814 = vunpack.c.l.b16 %v1778
      %v1815 = vunpack.c.l.b16 %v1779
      %v1816 = vunpack.c.l.b16 %v1780
      %v1817 = vunpack.c.l.b16 %v1781
      %v1818 = vunpack.c.l.b16 %v1782
      %v1819 = vunpack.c.l.b16 %v1783
      %v1820 = vunpack.c.l.b16 %v1784
      %v1821 = vunpack.c.l.b16 %v1785
      %v1822 = vunpack.c.l.b16 %v1786
      %v1823 = vpack.c.b16 %v1808, %v1807
      %v1824 = vpack.c.b16 %v1810, %v1809
      %v1825 = vpack.c.b16 %v1812, %v1811
      %v1826 = vpack.c.b16 %v1814, %v1813
      %v1827 = vpack.c.b16 %v1816, %v1815
      %v1828 = vpack.c.b16 %v1818, %v1817
      %v1829 = vpack.c.b16 %v1820, %v1819
      %v1830 = vpack.c.b16 %v1822, %v1821
      %1839 = vmatprep.subr.bf16.mxu0 0
      %1840 = vmatpush1.bf16.msra.mxu0 %v1823
      %1841 = vmatprep.subr.bf16.mxu0 0
      %1842 = vmatpush1.bf16.msra.mxu0 %v1824
      %1843 = vmatprep.subr.bf16.mxu0 0
      %1844 = vmatpush1.bf16.msra.mxu0 %v1825
      %1845 = vmatprep.subr.bf16.mxu0 0
      %1846 = vmatpush1.bf16.msra.mxu0 %v1826
      %1847 = vmatprep.subr.bf16.mxu0 0
      %1848 = vmatpush1.bf16.msra.mxu0 %v1827
      %1849 = vmatprep.subr.bf16.mxu0 0
      %1850 = vmatpush1.bf16.msra.mxu0 %v1828
      %1851 = vmatprep.subr.bf16.mxu0 0
      %1852 = vmatpush1.bf16.msra.mxu0 %v1829
      %1853 = vmatprep.subr.bf16.mxu0 0
      %1854 = vmatpush1.bf16.msra.mxu0 %v1830
      %1855 = vmatprep.subr.bf16.mxu0 0
      %1856 = vmatpush1.bf16.msra.mxu0 0
      %1857 = vmatprep.subr.bf16.mxu0 0
      %1858 = vmatpush1.bf16.msra.mxu0 0
      %1859 = vmatprep.subr.bf16.mxu0 0
      %1860 = vmatpush1.bf16.msra.mxu0 0
      %1861 = vmatprep.subr.bf16.mxu0 0
      %1862 = vmatpush1.bf16.msra.mxu0 0
      %1863 = vmatprep.subr.bf16.mxu0 0
      %1864 = vmatpush1.bf16.msra.mxu0 0
      %1865 = vmatprep.subr.bf16.mxu0 0
      %1866 = vmatpush1.bf16.msra.mxu0 0
      %1867 = vmatprep.subr.bf16.mxu0 0
      %1868 = vmatpush1.bf16.msra.mxu0 0
      %1869 = vmatprep.subr.bf16.mxu0 0
      %1870 = vmatpush1.bf16.msra.mxu0 0
      %1871 = vmatprep.mubr.bf16.mxu0 0
      %1872 = vmatmul.mubr.bf16.gmra.mrb[0].mxu0 %v1770
      %v1873 = vpop.f32.mrb[0].mxu0
      %v1874 = vadd.f32 %v1790, %v1873
      %v1875 = vpop.f32.mrb[0].mxu0
      %v1876 = vpop.f32.mrb[0].mxu0
      %v1877 = vpop.f32.mrb[0].mxu0
      %1878 = vdwg.mxu0
      %v1879 = vadd.f32 %v1693, %v1874
      %v1880 = vsel %vm482, %v1879, 0.0
      %1881 = vadd.xlane.f32.xlu0 %v1880
      %v1882 = vpop.xlane.xlu0 %1881
      %v1883 = vmul.f32 %v1882, %v486
      %v1884 = vsub.f32 %v1879, %v1883
      %v1885 = vmul.f32 %v1884, %v1884
      %v1886 = vsel %vm482, %v1885, 0.0
      %1887 = vadd.xlane.f32.xlu0 %v1886
      %v1888 = vpop.xlane.xlu0 %1887
      %v1889 = vmul.f32 %v1888, %v486
      %v1890 = vadd.f32 %v1889, 1e-05
      %v1891 = vrsqrt.pop %v1890
      %v1892 = vmul.f32 %v1884, %v1891
      %v1893 = vlaneseq
      %v1894 = vshrl.u32 %v1893, 7
      %v1895 = vsub.s32 4, %v1894
      %v1896 = vrot.slane %v507, %v1895
      %v1897 = vmul.f32 %v1892, %v1896
      %v1898 = vlaneseq
      %v1899 = vshrl.u32 %v1898, 7
      %v1900 = vsub.s32 5, %v1899
      %v1901 = vrot.slane %v507, %v1900
      %v1902 = vadd.f32 %v1897, %v1901
      %s1903 = scalar_lea.vmem %s6, 8
      %v1904 = vld [vmem:[%s1903] sm:$0x3f]
      %v1905 = vpack.c.bf16 %v1902, %v1902
      %s1906 = scalar_lea.vmem %s3, 16
      %v1907 = vld [vmem:[%s1906] sm:$0xf]
      %v1908 = vld [vmem:[%s1906 + $0x4] sm:$0xf]
      %v1909 = vld [vmem:[%s1906 + $0x8] sm:$0xf]
      %v1910 = vld [vmem:[%s1906 + $0xc] sm:$0xf]
      %s1911 = scalar_lea.vmem %s4, 1
      %v1912 = vld [vmem:[%s1911] sm:$0x1]
      %v1914 = vlaneseq
      %v1915 = vshrl.u32 %v1914, 7
      %v1916 = vsub.s32 0, %v1915
      %v1917 = vrot.slane %v1912, %v1916
      %v1923 = vunpack.c.l.b16 %v1907
      %v1924 = vunpack.c.l.b16 %v1908
      %v1925 = vunpack.c.l.b16 %v1909
      %v1926 = vunpack.c.l.b16 %v1910
      %v1927 = vpack.c.b16 %v1924, %v1923
      %v1928 = vpack.c.b16 %v1926, %v1925
      %v1932 = vsel %vm482, %v1905, 0
      %1934 = vmatprep.subr.bf16.mxu0 0
      %1935 = vmatpush1.bf16.msra.mxu0 %v1927
      %1936 = vmatprep.subr.bf16.mxu0 0
      %1937 = vmatpush1.bf16.msra.mxu0 %v1928
      %1938 = vmatprep.subr.bf16.mxu0 0
      %1939 = vmatpush1.bf16.msra.mxu0 0
      %1940 = vmatprep.subr.bf16.mxu0 0
      %1941 = vmatpush1.bf16.msra.mxu0 0
      %1942 = vmatprep.subr.bf16.mxu0 0
      %1943 = vmatpush1.bf16.msra.mxu0 0
      %1944 = vmatprep.subr.bf16.mxu0 0
      %1945 = vmatpush1.bf16.msra.mxu0 0
      %1946 = vmatprep.subr.bf16.mxu0 0
      %1947 = vmatpush1.bf16.msra.mxu0 0
      %1948 = vmatprep.subr.bf16.mxu0 0
      %1949 = vmatpush1.bf16.msra.mxu0 0
      %1950 = vmatprep.subr.bf16.mxu0 0
      %1951 = vmatpush1.bf16.msra.mxu0 0
      %1952 = vmatprep.subr.bf16.mxu0 0
      %1953 = vmatpush1.bf16.msra.mxu0 0
      %1954 = vmatprep.subr.bf16.mxu0 0
      %1955 = vmatpush1.bf16.msra.mxu0 0
      %1956 = vmatprep.subr.bf16.mxu0 0
      %1957 = vmatpush1.bf16.msra.mxu0 0
      %1958 = vmatprep.subr.bf16.mxu0 0
      %1959 = vmatpush1.bf16.msra.mxu0 0
      %1960 = vmatprep.subr.bf16.mxu0 0
      %1961 = vmatpush1.bf16.msra.mxu0 0
      %1962 = vmatprep.subr.bf16.mxu0 0
      %1963 = vmatpush1.bf16.msra.mxu0 0
      %1964 = vmatprep.subr.bf16.mxu0 0
      %1965 = vmatpush1.bf16.msra.mxu0 0
      %1966 = vmatprep.mubr.bf16.mxu0 0
      %1967 = vmatmul.mubr.bf16.gmra.mrb[0].mxu0 %v1932
      %v1968 = vpop.f32.mrb[0].mxu0
      %v1969 = vadd.f32 %v1917, %v1968
      %v1970 = vpop.f32.mrb[0].mxu0
      %v1971 = vpop.f32.mrb[0].mxu0
      %v1972 = vpop.f32.mrb[0].mxu0
      %1973 = vdwg.mxu0
      %1975 = vrot.lane.b32.xlu0 %v1969, 120
      %v1976 = vpop.permute.xlu0 %1975
      %1978 = vrot.lane.b32.xlu0 %v1969, 112
      %v1979 = vpop.permute.xlu0 %1978
      %1981 = vrot.lane.b32.xlu0 %v1969, 104
      %v1982 = vpop.permute.xlu0 %1981
      %1984 = vrot.lane.b32.xlu0 %v1969, 96
      %v1985 = vpop.permute.xlu0 %1984
      %1987 = vrot.lane.b32.xlu0 %v1969, 88
      %v1988 = vpop.permute.xlu0 %1987
      %1990 = vrot.lane.b32.xlu0 %v1969, 80
      %v1991 = vpop.permute.xlu0 %1990
      %1993 = vrot.lane.b32.xlu0 %v1969, 72
      %v1994 = vpop.permute.xlu0 %1993
      %1996 = vrot.lane.b32.xlu0 %v1969, 64
      %v1997 = vpop.permute.xlu0 %1996
      %1999 = vrot.lane.b32.xlu0 %v1969, 56
      %v2000 = vpop.permute.xlu0 %1999
      %2002 = vrot.lane.b32.xlu0 %v1969, 48
      %v2003 = vpop.permute.xlu0 %2002
      %2005 = vrot.lane.b32.xlu0 %v1969, 40
      %v2006 = vpop.permute.xlu0 %2005
      %v2008 = vcombine.low %v1969, %v1979
      %v2009 = vcombine.high %v1969, %v1979
      %v2011 = vunpack.c.l.s4 1983009808
      %v2012 = vunpack.c.0.s8 %v2011
      %v2013 = vlaneseq
      %v2014 = vshrl.u32 %v2013, 7
      %v2015 = vsub.s32 %v2012, %v2014
      %v2016 = vrot.slane %v2008, %v2015
      %v2018 = vunpack.c.l.s4 1983009808
      %v2019 = vunpack.c.0.s8 %v2018
      %v2020 = vlaneseq
      %v2021 = vshrl.u32 %v2020, 7
      %v2022 = vsub.s32 %v2019, %v2021
      %v2023 = vrot.slane %v2009, %v2022
      %v2024 = vcombine.low %v1976, %v1982
      %v2025 = vcombine.high %v1976, %v1982
      %v2027 = vunpack.c.l.s4 1983009808
      %v2028 = vunpack.c.0.s8 %v2027
      %v2029 = vlaneseq
      %v2030 = vshrl.u32 %v2029, 7
      %v2031 = vsub.s32 %v2028, %v2030
      %v2032 = vrot.slane %v2024, %v2031
      %v2034 = vunpack.c.l.s4 1983009808
      %v2035 = vunpack.c.0.s8 %v2034
      %v2036 = vlaneseq
      %v2037 = vshrl.u32 %v2036, 7
      %v2038 = vsub.s32 %v2035, %v2037
      %v2039 = vrot.slane %v2025, %v2038
      %v2040 = vcombine.low %v1985, %v1991
      %v2041 = vcombine.high %v1985, %v1991
      %v2043 = vunpack.c.l.s4 1983009808
      %v2044 = vunpack.c.0.s8 %v2043
      %v2045 = vlaneseq
      %v2046 = vshrl.u32 %v2045, 7
      %v2047 = vsub.s32 %v2044, %v2046
      %v2048 = vrot.slane %v2040, %v2047
      %v2050 = vunpack.c.l.s4 1983009808
      %v2051 = vunpack.c.0.s8 %v2050
      %v2052 = vlaneseq
      %v2053 = vshrl.u32 %v2052, 7
      %v2054 = vsub.s32 %v2051, %v2053
      %v2055 = vrot.slane %v2041, %v2054
      %v2056 = vcombine.low %v1988, %v1994
      %v2057 = vcombine.high %v1988, %v1994
      %v2059 = vunpack.c.l.s4 1983009808
      %v2060 = vunpack.c.0.s8 %v2059
      %v2061 = vlaneseq
      %v2062 = vshrl.u32 %v2061, 7
      %v2063 = vsub.s32 %v2060, %v2062
      %v2064 = vrot.slane %v2056, %v2063
      %v2066 = vunpack.c.l.s4 1983009808
      %v2067 = vunpack.c.0.s8 %v2066
      %v2068 = vlaneseq
      %v2069 = vshrl.u32 %v2068, 7
      %v2070 = vsub.s32 %v2067, %v2069
      %v2071 = vrot.slane %v2057, %v2070
      %v2072 = vcombine.low %v2016, %v2032
      %v2073 = vcombine.high %v2016, %v2032
      %v2075 = vunpack.c.l.s4 1934713408
      %v2076 = vunpack.c.0.s8 %v2075
      %v2077 = vlaneseq
      %v2078 = vshrl.u32 %v2077, 7
      %v2079 = vsub.s32 %v2076, %v2078
      %v2080 = vrot.slane %v2072, %v2079
      %v2082 = vunpack.c.l.s4 1934713408
      %v2083 = vunpack.c.0.s8 %v2082
      %v2084 = vlaneseq
      %v2085 = vshrl.u32 %v2084, 7
      %v2086 = vsub.s32 %v2083, %v2085
      %v2087 = vrot.slane %v2073, %v2086
      %v2088 = vcombine.low %v2023, %v2039
      %v2089 = vcombine.high %v2023, %v2039
      %v2091 = vunpack.c.l.s4 1934713408
      %v2092 = vunpack.c.0.s8 %v2091
      %v2093 = vlaneseq
      %v2094 = vshrl.u32 %v2093, 7
      %v2095 = vsub.s32 %v2092, %v2094
      %v2096 = vrot.slane %v2088, %v2095
      %v2098 = vunpack.c.l.s4 1934713408
      %v2099 = vunpack.c.0.s8 %v2098
      %v2100 = vlaneseq
      %v2101 = vshrl.u32 %v2100, 7
      %v2102 = vsub.s32 %v2099, %v2101
      %v2103 = vrot.slane %v2089, %v2102
      %v2104 = vcombine.low %v2048, %v2064
      %v2105 = vcombine.high %v2048, %v2064
      %v2107 = vunpack.c.l.s4 1934713408
      %v2108 = vunpack.c.0.s8 %v2107
      %v2109 = vlaneseq
      %v2110 = vshrl.u32 %v2109, 7
      %v2111 = vsub.s32 %v2108, %v2110
      %v2112 = vrot.slane %v2104, %v2111
      %v2114 = vunpack.c.l.s4 1934713408
      %v2115 = vunpack.c.0.s8 %v2114
      %v2116 = vlaneseq
      %v2117 = vshrl.u32 %v2116, 7
      %v2118 = vsub.s32 %v2115, %v2117
      %v2119 = vrot.slane %v2105, %v2118
      %v2120 = vcombine.low %v2055, %v2071
      %v2121 = vcombine.high %v2055, %v2071
      %v2123 = vunpack.c.l.s4 1934713408
      %v2124 = vunpack.c.0.s8 %v2123
      %v2125 = vlaneseq
      %v2126 = vshrl.u32 %v2125, 7
      %v2127 = vsub.s32 %v2124, %v2126
      %v2128 = vrot.slane %v2120, %v2127
      %v2130 = vunpack.c.l.s4 1934713408
      %v2131 = vunpack.c.0.s8 %v2130
      %v2132 = vlaneseq
      %v2133 = vshrl.u32 %v2132, 7
      %v2134 = vsub.s32 %v2131, %v2133
      %v2135 = vrot.slane %v2121, %v2134
      %v2136 = vcombine.low %v2080, %v2112
      %v2137 = vcombine.high %v2080, %v2112
      %v2138 = vcombine.low %v2087, %v2119
      %v2139 = vcombine.high %v2087, %v2119
      %v2140 = vcombine.low %v2096, %v2128
      %v2141 = vcombine.high %v2096, %v2128
      %v2142 = vcombine.low %v2103, %v2135
      %v2143 = vcombine.high %v2103, %v2135
      %v2144 = vcombine.low %v1997, %v2003
      %v2145 = vcombine.high %v1997, %v2003
      %v2147 = vunpack.c.l.s4 1983009808
      %v2148 = vunpack.c.0.s8 %v2147
      %v2149 = vlaneseq
      %v2150 = vshrl.u32 %v2149, 7
      %v2151 = vsub.s32 %v2148, %v2150
      %v2152 = vrot.slane %v2144, %v2151
      %v2154 = vunpack.c.l.s4 1983009808
      %v2155 = vunpack.c.0.s8 %v2154
      %v2156 = vlaneseq
      %v2157 = vshrl.u32 %v2156, 7
      %v2158 = vsub.s32 %v2155, %v2157
      %v2159 = vrot.slane %v2145, %v2158
      %v2160 = vcombine.low %v2000, %v2006
      %v2161 = vcombine.high %v2000, %v2006
      %v2163 = vunpack.c.l.s4 1983009808
      %v2164 = vunpack.c.0.s8 %v2163
      %v2165 = vlaneseq
      %v2166 = vshrl.u32 %v2165, 7
      %v2167 = vsub.s32 %v2164, %v2166
      %v2168 = vrot.slane %v2160, %v2167
      %v2170 = vunpack.c.l.s4 1983009808
      %v2171 = vunpack.c.0.s8 %v2170
      %v2172 = vlaneseq
      %v2173 = vshrl.u32 %v2172, 7
      %v2174 = vsub.s32 %v2171, %v2173
      %v2175 = vrot.slane %v2161, %v2174
      %v2176 = vcombine.low %v2152, %v2168
      %v2177 = vcombine.high %v2152, %v2168
      %v2179 = vunpack.c.l.s4 1934713408
      %v2180 = vunpack.c.0.s8 %v2179
      %v2181 = vlaneseq
      %v2182 = vshrl.u32 %v2181, 7
      %v2183 = vsub.s32 %v2180, %v2182
      %v2184 = vrot.slane %v2176, %v2183
      %v2186 = vunpack.c.l.s4 1934713408
      %v2187 = vunpack.c.0.s8 %v2186
      %v2188 = vlaneseq
      %v2189 = vshrl.u32 %v2188, 7
      %v2190 = vsub.s32 %v2187, %v2189
      %v2191 = vrot.slane %v2177, %v2190
      %v2192 = vcombine.low %v2159, %v2175
      %v2193 = vcombine.high %v2159, %v2175
      %v2195 = vunpack.c.l.s4 1934713408
      %v2196 = vunpack.c.0.s8 %v2195
      %v2197 = vlaneseq
      %v2198 = vshrl.u32 %v2197, 7
      %v2199 = vsub.s32 %v2196, %v2198
      %v2200 = vrot.slane %v2192, %v2199
      %v2202 = vunpack.c.l.s4 1934713408
      %v2203 = vunpack.c.0.s8 %v2202
      %v2204 = vlaneseq
      %v2205 = vshrl.u32 %v2204, 7
      %v2206 = vsub.s32 %v2203, %v2205
      %v2207 = vrot.slane %v2193, %v2206
      %v2208 = vcombine.high %v2184, 0.0
      %v2209 = vcombine.high %v2191, 0.0
      %v2210 = vcombine.high %v2200, 0.0
      %v2211 = vcombine.high %v2207, 0.0
      %v2212 = vcombine.low %v2136, %v2138
      %v2213 = vcombine.high %v2136, %v2138
      %v2215 = vunpack.c.l.s4 1983009808
      %v2216 = vunpack.c.0.s8 %v2215
      %v2217 = vlaneseq
      %v2218 = vshrl.u32 %v2217, 7
      %v2219 = vsub.s32 %v2216, %v2218
      %v2220 = vrot.slane %v2212, %v2219
      %v2222 = vunpack.c.l.s4 1983009808
      %v2223 = vunpack.c.0.s8 %v2222
      %v2224 = vlaneseq
      %v2225 = vshrl.u32 %v2224, 7
      %v2226 = vsub.s32 %v2223, %v2225
      %v2227 = vrot.slane %v2213, %v2226
      %v2228 = vcombine.low %v2137, %v2139
      %v2229 = vcombine.high %v2137, %v2139
      %v2231 = vunpack.c.l.s4 1983009808
      %v2232 = vunpack.c.0.s8 %v2231
      %v2233 = vlaneseq
      %v2234 = vshrl.u32 %v2233, 7
      %v2235 = vsub.s32 %v2232, %v2234
      %v2236 = vrot.slane %v2228, %v2235
      %v2238 = vunpack.c.l.s4 1983009808
      %v2239 = vunpack.c.0.s8 %v2238
      %v2240 = vlaneseq
      %v2241 = vshrl.u32 %v2240, 7
      %v2242 = vsub.s32 %v2239, %v2241
      %v2243 = vrot.slane %v2229, %v2242
      %v2244 = vcombine.low %v2140, %v2142
      %v2245 = vcombine.high %v2140, %v2142
      %v2247 = vunpack.c.l.s4 1983009808
      %v2248 = vunpack.c.0.s8 %v2247
      %v2249 = vlaneseq
      %v2250 = vshrl.u32 %v2249, 7
      %v2251 = vsub.s32 %v2248, %v2250
      %v2252 = vrot.slane %v2244, %v2251
      %v2254 = vunpack.c.l.s4 1983009808
      %v2255 = vunpack.c.0.s8 %v2254
      %v2256 = vlaneseq
      %v2257 = vshrl.u32 %v2256, 7
      %v2258 = vsub.s32 %v2255, %v2257
      %v2259 = vrot.slane %v2245, %v2258
      %v2260 = vcombine.low %v2141, %v2143
      %v2261 = vcombine.high %v2141, %v2143
      %v2263 = vunpack.c.l.s4 1983009808
      %v2264 = vunpack.c.0.s8 %v2263
      %v2265 = vlaneseq
      %v2266 = vshrl.u32 %v2265, 7
      %v2267 = vsub.s32 %v2264, %v2266
      %v2268 = vrot.slane %v2260, %v2267
      %v2270 = vunpack.c.l.s4 1983009808
      %v2271 = vunpack.c.0.s8 %v2270
      %v2272 = vlaneseq
      %v2273 = vshrl.u32 %v2272, 7
      %v2274 = vsub.s32 %v2271, %v2273
      %v2275 = vrot.slane %v2261, %v2274
      %v2276 = vcombine.low %v2220, %v2236
      %v2277 = vcombine.high %v2220, %v2236
      %v2279 = vunpack.c.l.s4 1934713408
      %v2280 = vunpack.c.0.s8 %v2279
      %v2281 = vlaneseq
      %v2282 = vshrl.u32 %v2281, 7
      %v2283 = vsub.s32 %v2280, %v2282
      %v2284 = vrot.slane %v2276, %v2283
      %v2286 = vunpack.c.l.s4 1934713408
      %v2287 = vunpack.c.0.s8 %v2286
      %v2288 = vlaneseq
      %v2289 = vshrl.u32 %v2288, 7
      %v2290 = vsub.s32 %v2287, %v2289
      %v2291 = vrot.slane %v2277, %v2290
      %v2292 = vcombine.low %v2227, %v2243
      %v2293 = vcombine.high %v2227, %v2243
      %v2295 = vunpack.c.l.s4 1934713408
      %v2296 = vunpack.c.0.s8 %v2295
      %v2297 = vlaneseq
      %v2298 = vshrl.u32 %v2297, 7
      %v2299 = vsub.s32 %v2296, %v2298
      %v2300 = vrot.slane %v2292, %v2299
      %v2302 = vunpack.c.l.s4 1934713408
      %v2303 = vunpack.c.0.s8 %v2302
      %v2304 = vlaneseq
      %v2305 = vshrl.u32 %v2304, 7
      %v2306 = vsub.s32 %v2303, %v2305
      %v2307 = vrot.slane %v2293, %v2306
      %v2308 = vcombine.low %v2252, %v2268
      %v2309 = vcombine.high %v2252, %v2268
      %v2311 = vunpack.c.l.s4 1934713408
      %v2312 = vunpack.c.0.s8 %v2311
      %v2313 = vlaneseq
      %v2314 = vshrl.u32 %v2313, 7
      %v2315 = vsub.s32 %v2312, %v2314
      %v2316 = vrot.slane %v2308, %v2315
      %v2318 = vunpack.c.l.s4 1934713408
      %v2319 = vunpack.c.0.s8 %v2318
      %v2320 = vlaneseq
      %v2321 = vshrl.u32 %v2320, 7
      %v2322 = vsub.s32 %v2319, %v2321
      %v2323 = vrot.slane %v2309, %v2322
      %v2324 = vcombine.low %v2259, %v2275
      %v2325 = vcombine.high %v2259, %v2275
      %v2327 = vunpack.c.l.s4 1934713408
      %v2328 = vunpack.c.0.s8 %v2327
      %v2329 = vlaneseq
      %v2330 = vshrl.u32 %v2329, 7
      %v2331 = vsub.s32 %v2328, %v2330
      %v2332 = vrot.slane %v2324, %v2331
      %v2334 = vunpack.c.l.s4 1934713408
      %v2335 = vunpack.c.0.s8 %v2334
      %v2336 = vlaneseq
      %v2337 = vshrl.u32 %v2336, 7
      %v2338 = vsub.s32 %v2335, %v2337
      %v2339 = vrot.slane %v2325, %v2338
      %v2340 = vcombine.low %v2284, %v2316
      %v2341 = vcombine.high %v2284, %v2316
      %v2342 = vcombine.low %v2291, %v2323
      %v2343 = vcombine.high %v2291, %v2323
      %v2344 = vcombine.low %v2300, %v2332
      %v2345 = vcombine.high %v2300, %v2332
      %v2346 = vcombine.low %v2307, %v2339
      %v2347 = vcombine.high %v2307, %v2339
      %v2348 = vcombine.low %v2184, %v2191
      %v2350 = vunpack.c.l.s4 1983009808
      %v2351 = vunpack.c.0.s8 %v2350
      %v2352 = vlaneseq
      %v2353 = vshrl.u32 %v2352, 7
      %v2354 = vsub.s32 %v2351, %v2353
      %v2355 = vrot.slane %v2348, %v2354
      %v2356 = vcombine.low %v2208, %v2209
      %v2358 = vunpack.c.l.s4 1983009808
      %v2359 = vunpack.c.0.s8 %v2358
      %v2360 = vlaneseq
      %v2361 = vshrl.u32 %v2360, 7
      %v2362 = vsub.s32 %v2359, %v2361
      %v2363 = vrot.slane %v2356, %v2362
      %v2364 = vcombine.low %v2200, %v2207
      %v2366 = vunpack.c.l.s4 1983009808
      %v2367 = vunpack.c.0.s8 %v2366
      %v2368 = vlaneseq
      %v2369 = vshrl.u32 %v2368, 7
      %v2370 = vsub.s32 %v2367, %v2369
      %v2371 = vrot.slane %v2364, %v2370
      %v2372 = vcombine.low %v2210, %v2211
      %v2374 = vunpack.c.l.s4 1983009808
      %v2375 = vunpack.c.0.s8 %v2374
      %v2376 = vlaneseq
      %v2377 = vshrl.u32 %v2376, 7
      %v2378 = vsub.s32 %v2375, %v2377
      %v2379 = vrot.slane %v2372, %v2378
      %v2380 = vcombine.low %v2355, %v2363
      %v2381 = vcombine.high %v2355, %v2363
      %v2383 = vunpack.c.l.s4 1934713408
      %v2384 = vunpack.c.0.s8 %v2383
      %v2385 = vlaneseq
      %v2386 = vshrl.u32 %v2385, 7
      %v2387 = vsub.s32 %v2384, %v2386
      %v2388 = vrot.slane %v2380, %v2387
      %v2390 = vunpack.c.l.s4 1934713408
      %v2391 = vunpack.c.0.s8 %v2390
      %v2392 = vlaneseq
      %v2393 = vshrl.u32 %v2392, 7
      %v2394 = vsub.s32 %v2391, %v2393
      %v2395 = vrot.slane %v2381, %v2394
      %v2396 = vcombine.low %v2371, %v2379
      %v2397 = vcombine.high %v2371, %v2379
      %v2399 = vunpack.c.l.s4 1934713408
      %v2400 = vunpack.c.0.s8 %v2399
      %v2401 = vlaneseq
      %v2402 = vshrl.u32 %v2401, 7
      %v2403 = vsub.s32 %v2400, %v2402
      %v2404 = vrot.slane %v2396, %v2403
      %v2406 = vunpack.c.l.s4 1934713408
      %v2407 = vunpack.c.0.s8 %v2406
      %v2408 = vlaneseq
      %v2409 = vshrl.u32 %v2408, 7
      %v2410 = vsub.s32 %v2407, %v2409
      %v2411 = vrot.slane %v2397, %v2410
      %v2412 = vcombine.low %v2388, %v2404
      %v2413 = vcombine.high %v2388, %v2404
      %v2414 = vcombine.low %v2395, %v2411
      %v2415 = vcombine.high %v2395, %v2411
      %v2416 = vpack.c.bf16 %v2340, %v2340
      %v2417 = vpack.c.bf16 %v2341, %v2341
      %v2418 = vpack.c.bf16 %v2342, %v2342
      %v2419 = vpack.c.bf16 %v2343, %v2343
      %v2420 = vpack.c.bf16 %v2344, %v2344
      %v2421 = vpack.c.bf16 %v2345, %v2345
      %v2422 = vpack.c.bf16 %v2346, %v2346
      %v2423 = vpack.c.bf16 %v2347, %v2347
      %v2424 = vpack.c.bf16 %v2412, %v2412
      %v2425 = vpack.c.bf16 %v2413, %v2413
      %v2426 = vpack.c.bf16 %v2414, %v2414
      %v2427 = vpack.c.bf16 %v2415, %v2415
      %v2429 = vsel %vm1035, %v2416, 0
      %v2432 = vsel %vm1035, %v2420, 0
      %2434 = vmatprep.subr.bf16.mxu0 0
      %2435 = vmatpush1.bf16.xpose.msra.mxu0 %v2432
      %2436 = vmatprep.subr.bf16.mxu0 0
      %2437 = vmatpush1.bf16.xpose.msra.mxu0 0
      %2438 = vmatprep.subr.bf16.mxu0 0
      %2439 = vmatpush1.bf16.xpose.msra.mxu0 0
      %2440 = vmatprep.subr.bf16.mxu0 0
      %2441 = vmatpush1.bf16.xpose.msra.mxu0 0
      %2442 = vmatprep.subr.bf16.mxu0 0
      %2443 = vmatpush1.bf16.xpose.msra.mxu0 0
      %2444 = vmatprep.subr.bf16.mxu0 0
      %2445 = vmatpush1.bf16.xpose.msra.mxu0 0
      %2446 = vmatprep.subr.bf16.mxu0 0
      %2447 = vmatpush1.bf16.xpose.msra.mxu0 0
      %2448 = vmatprep.subr.bf16.mxu0 0
      %2449 = vmatpush1.bf16.xpose.msra.mxu0 0
      %2450 = vmatprep.subr.bf16.mxu0 0
      %2451 = vmatpush1.bf16.xpose.msra.mxu0 0
      %2452 = vmatprep.subr.bf16.mxu0 0
      %2453 = vmatpush1.bf16.xpose.msra.mxu0 0
      %2454 = vmatprep.subr.bf16.mxu0 0
      %2455 = vmatpush1.bf16.xpose.msra.mxu0 0
      %2456 = vmatprep.subr.bf16.mxu0 0
      %2457 = vmatpush1.bf16.xpose.msra.mxu0 0
      %2458 = vmatprep.subr.bf16.mxu0 0
      %2459 = vmatpush1.bf16.xpose.msra.mxu0 0
      %2460 = vmatprep.subr.bf16.mxu0 0
      %2461 = vmatpush1.bf16.xpose.msra.mxu0 0
      %2462 = vmatprep.subr.bf16.mxu0 0
      %2463 = vmatpush1.bf16.xpose.msra.mxu0 0
      %2464 = vmatprep.subr.bf16.mxu0 0
      %2465 = vmatpush1.bf16.xpose.msra.mxu0 0
      %2466 = vmatprep.mubr.bf16.mxu0 0
      %2467 = vmatmul.mubr.bf16.gmra.mrb[0].mxu0 %v2429
      %v2468 = vpop.f32.mrb[0].mxu0
      %v2469 = vadd.f32 %v1033, %v2468
      %v2470 = vpop.f32.mrb[0].mxu0
      %v2471 = vpop.f32.mrb[0].mxu0
      %v2472 = vpop.f32.mrb[0].mxu0
      %2473 = vdwg.mxu0
      %v2475 = vsel %vm1035, %v2417, 0
      %v2478 = vsel %vm1035, %v2421, 0
      %2480 = vmatprep.subr.bf16.mxu0 0
      %2481 = vmatpush1.bf16.xpose.msra.mxu0 %v2478
      %2482 = vmatprep.subr.bf16.mxu0 0
      %2483 = vmatpush1.bf16.xpose.msra.mxu0 0
      %2484 = vmatprep.subr.bf16.mxu0 0
      %2485 = vmatpush1.bf16.xpose.msra.mxu0 0
      %2486 = vmatprep.subr.bf16.mxu0 0
      %2487 = vmatpush1.bf16.xpose.msra.mxu0 0
      %2488 = vmatprep.subr.bf16.mxu0 0
      %2489 = vmatpush1.bf16.xpose.msra.mxu0 0
      %2490 = vmatprep.subr.bf16.mxu0 0
      %2491 = vmatpush1.bf16.xpose.msra.mxu0 0
      %2492 = vmatprep.subr.bf16.mxu0 0
      %2493 = vmatpush1.bf16.xpose.msra.mxu0 0
      %2494 = vmatprep.subr.bf16.mxu0 0
      %2495 = vmatpush1.bf16.xpose.msra.mxu0 0
      %2496 = vmatprep.subr.bf16.mxu0 0
      %2497 = vmatpush1.bf16.xpose.msra.mxu0 0
      %2498 = vmatprep.subr.bf16.mxu0 0
      %2499 = vmatpush1.bf16.xpose.msra.mxu0 0
      %2500 = vmatprep.subr.bf16.mxu0 0
      %2501 = vmatpush1.bf16.xpose.msra.mxu0 0
      %2502 = vmatprep.subr.bf16.mxu0 0
      %2503 = vmatpush1.bf16.xpose.msra.mxu0 0
      %2504 = vmatprep.subr.bf16.mxu0 0
      %2505 = vmatpush1.bf16.xpose.msra.mxu0 0
      %2506 = vmatprep.subr.bf16.mxu0 0
      %2507 = vmatpush1.bf16.xpose.msra.mxu0 0
      %2508 = vmatprep.subr.bf16.mxu0 0
      %2509 = vmatpush1.bf16.xpose.msra.mxu0 0
      %2510 = vmatprep.subr.bf16.mxu0 0
      %2511 = vmatpush1.bf16.xpose.msra.mxu0 0
      %2512 = vmatprep.mubr.bf16.mxu0 0
      %2513 = vmatmul.mubr.bf16.gmra.mrb[0].mxu0 %v2475
      %v2514 = vpop.f32.mrb[0].mxu0
      %v2515 = vadd.f32 %v1033, %v2514
      %v2516 = vpop.f32.mrb[0].mxu0
      %v2517 = vpop.f32.mrb[0].mxu0
      %v2518 = vpop.f32.mrb[0].mxu0
      %2519 = vdwg.mxu0
      %v2521 = vsel %vm1035, %v2418, 0
      %v2524 = vsel %vm1035, %v2422, 0
      %2526 = vmatprep.subr.bf16.mxu0 0
      %2527 = vmatpush1.bf16.xpose.msra.mxu0 %v2524
      %2528 = vmatprep.subr.bf16.mxu0 0
      %2529 = vmatpush1.bf16.xpose.msra.mxu0 0
      %2530 = vmatprep.subr.bf16.mxu0 0
      %2531 = vmatpush1.bf16.xpose.msra.mxu0 0
      %2532 = vmatprep.subr.bf16.mxu0 0
      %2533 = vmatpush1.bf16.xpose.msra.mxu0 0
      %2534 = vmatprep.subr.bf16.mxu0 0
      %2535 = vmatpush1.bf16.xpose.msra.mxu0 0
      %2536 = vmatprep.subr.bf16.mxu0 0
      %2537 = vmatpush1.bf16.xpose.msra.mxu0 0
      %2538 = vmatprep.subr.bf16.mxu0 0
      %2539 = vmatpush1.bf16.xpose.msra.mxu0 0
      %2540 = vmatprep.subr.bf16.mxu0 0
      %2541 = vmatpush1.bf16.xpose.msra.mxu0 0
      %2542 = vmatprep.subr.bf16.mxu0 0
      %2543 = vmatpush1.bf16.xpose.msra.mxu0 0
      %2544 = vmatprep.subr.bf16.mxu0 0
      %2545 = vmatpush1.bf16.xpose.msra.mxu0 0
      %2546 = vmatprep.subr.bf16.mxu0 0
      %2547 = vmatpush1.bf16.xpose.msra.mxu0 0
      %2548 = vmatprep.subr.bf16.mxu0 0
      %2549 = vmatpush1.bf16.xpose.msra.mxu0 0
      %2550 = vmatprep.subr.bf16.mxu0 0
      %2551 = vmatpush1.bf16.xpose.msra.mxu0 0
      %2552 = vmatprep.subr.bf16.mxu0 0
      %2553 = vmatpush1.bf16.xpose.msra.mxu0 0
      %2554 = vmatprep.subr.bf16.mxu0 0
      %2555 = vmatpush1.bf16.xpose.msra.mxu0 0
      %2556 = vmatprep.subr.bf16.mxu0 0
      %2557 = vmatpush1.bf16.xpose.msra.mxu0 0
      %2558 = vmatprep.mubr.bf16.mxu0 0
      %2559 = vmatmul.mubr.bf16.gmra.mrb[0].mxu0 %v2521
      %v2560 = vpop.f32.mrb[0].mxu0
      %v2561 = vadd.f32 %v1033, %v2560
      %v2562 = vpop.f32.mrb[0].mxu0
      %v2563 = vpop.f32.mrb[0].mxu0
      %v2564 = vpop.f32.mrb[0].mxu0
      %2565 = vdwg.mxu0
      %v2567 = vsel %vm1035, %v2419, 0
      %v2570 = vsel %vm1035, %v2423, 0
      %2572 = vmatprep.subr.bf16.mxu0 0
      %2573 = vmatpush1.bf16.xpose.msra.mxu0 %v2570
      %2574 = vmatprep.subr.bf16.mxu0 0
      %2575 = vmatpush1.bf16.xpose.msra.mxu0 0
      %2576 = vmatprep.subr.bf16.mxu0 0
      %2577 = vmatpush1.bf16.xpose.msra.mxu0 0
      %2578 = vmatprep.subr.bf16.mxu0 0
      %2579 = vmatpush1.bf16.xpose.msra.mxu0 0
      %2580 = vmatprep.subr.bf16.mxu0 0
      %2581 = vmatpush1.bf16.xpose.msra.mxu0 0
      %2582 = vmatprep.subr.bf16.mxu0 0
      %2583 = vmatpush1.bf16.xpose.msra.mxu0 0
      %2584 = vmatprep.subr.bf16.mxu0 0
      %2585 = vmatpush1.bf16.xpose.msra.mxu0 0
      %2586 = vmatprep.subr.bf16.mxu0 0
      %2587 = vmatpush1.bf16.xpose.msra.mxu0 0
      %2588 = vmatprep.subr.bf16.mxu0 0
      %2589 = vmatpush1.bf16.xpose.msra.mxu0 0
      %2590 = vmatprep.subr.bf16.mxu0 0
      %2591 = vmatpush1.bf16.xpose.msra.mxu0 0
      %2592 = vmatprep.subr.bf16.mxu0 0
      %2593 = vmatpush1.bf16.xpose.msra.mxu0 0
      %2594 = vmatprep.subr.bf16.mxu0 0
      %2595 = vmatpush1.bf16.xpose.msra.mxu0 0
      %2596 = vmatprep.subr.bf16.mxu0 0
      %2597 = vmatpush1.bf16.xpose.msra.mxu0 0
      %2598 = vmatprep.subr.bf16.mxu0 0
      %2599 = vmatpush1.bf16.xpose.msra.mxu0 0
      %2600 = vmatprep.subr.bf16.mxu0 0
      %2601 = vmatpush1.bf16.xpose.msra.mxu0 0
      %2602 = vmatprep.subr.bf16.mxu0 0
      %2603 = vmatpush1.bf16.xpose.msra.mxu0 0
      %2604 = vmatprep.mubr.bf16.mxu0 0
      %2605 = vmatmul.mubr.bf16.gmra.mrb[0].mxu0 %v2567
      %v2606 = vpop.f32.mrb[0].mxu0
      %v2607 = vadd.f32 %v1033, %v2606
      %v2608 = vpop.f32.mrb[0].mxu0
      %v2609 = vpop.f32.mrb[0].mxu0
      %v2610 = vpop.f32.mrb[0].mxu0
      %2611 = vdwg.mxu0
      %v2612 = vsel %vm1035, %v2469, -inf
      %2613 = vmax.xlane.f32.xlu0 %v2612
      %v2614 = vpop.xlane.xlu0 %2613
      %v2615 = vsel %vm1035, %v2515, -inf
      %2616 = vmax.xlane.f32.xlu0 %v2615
      %v2617 = vpop.xlane.xlu0 %2616
      %v2618 = vsel %vm1035, %v2561, -inf
      %2619 = vmax.xlane.f32.xlu0 %v2618
      %v2620 = vpop.xlane.xlu0 %2619
      %v2621 = vsel %vm1035, %v2607, -inf
      %2622 = vmax.xlane.f32.xlu0 %v2621
      %v2623 = vpop.xlane.xlu0 %2622
      %v2624 = vsub.f32 %v2469, %v2614
      %v2625 = vsub.f32 %v2515, %v2617
      %v2626 = vsub.f32 %v2561, %v2620
      %v2627 = vsub.f32 %v2607, %v2623
      %v2628 = vmul.f32 %v2624, 1.442695
      %v2629 = vpow.pop %v2628
      %v2630 = vmul.f32 %v2625, 1.442695
      %v2631 = vpow.pop %v2630
      %v2632 = vmul.f32 %v2626, 1.442695
      %v2633 = vpow.pop %v2632
      %v2634 = vmul.f32 %v2627, 1.442695
      %v2635 = vpow.pop %v2634
      %v2636 = vsel %vm1035, %v2629, 0.0
      %2637 = vadd.xlane.f32.xlu0 %v2636
      %v2638 = vpop.xlane.xlu0 %2637
      %v2639 = vsel %vm1035, %v2631, 0.0
      %2640 = vadd.xlane.f32.xlu0 %v2639
      %v2641 = vpop.xlane.xlu0 %2640
      %v2642 = vsel %vm1035, %v2633, 0.0
      %2643 = vadd.xlane.f32.xlu0 %v2642
      %v2644 = vpop.xlane.xlu0 %2643
      %v2645 = vsel %vm1035, %v2635, 0.0
      %2646 = vadd.xlane.f32.xlu0 %v2645
      %v2647 = vpop.xlane.xlu0 %2646
      %v2648 = vrcp.pop %v2638
      %v2649 = vrcp.pop %v2641
      %v2650 = vrcp.pop %v2644
      %v2651 = vrcp.pop %v2647
      %v2652 = vmul.f32 %v2629, %v2648
      %v2653 = vmul.f32 %v2631, %v2649
      %v2654 = vmul.f32 %v2633, %v2650
      %v2655 = vmul.f32 %v2635, %v2651
      %v2656 = vpack.c.bf16 %v2652, %v2652
      %v2657 = vpack.c.bf16 %v2653, %v2653
      %v2658 = vpack.c.bf16 %v2654, %v2654
      %v2659 = vpack.c.bf16 %v2655, %v2655
      %v2661 = vsel %vm1035, %v2656, 0
      %v2664 = vsel %vm1271, %v2424, 0
      %2666 = vmatprep.subr.bf16.mxu0 0
      %2667 = vmatpush1.bf16.msra.mxu0 %v2664
      %2668 = vmatprep.subr.bf16.mxu0 0
      %2669 = vmatpush1.bf16.msra.mxu0 0
      %2670 = vmatprep.subr.bf16.mxu0 0
      %2671 = vmatpush1.bf16.msra.mxu0 0
      %2672 = vmatprep.subr.bf16.mxu0 0
      %2673 = vmatpush1.bf16.msra.mxu0 0
      %2674 = vmatprep.subr.bf16.mxu0 0
      %2675 = vmatpush1.bf16.msra.mxu0 0
      %2676 = vmatprep.subr.bf16.mxu0 0
      %2677 = vmatpush1.bf16.msra.mxu0 0
      %2678 = vmatprep.subr.bf16.mxu0 0
      %2679 = vmatpush1.bf16.msra.mxu0 0
      %2680 = vmatprep.subr.bf16.mxu0 0
      %2681 = vmatpush1.bf16.msra.mxu0 0
      %2682 = vmatprep.subr.bf16.mxu0 0
      %2683 = vmatpush1.bf16.msra.mxu0 0
      %2684 = vmatprep.subr.bf16.mxu0 0
      %2685 = vmatpush1.bf16.msra.mxu0 0
      %2686 = vmatprep.subr.bf16.mxu0 0
      %2687 = vmatpush1.bf16.msra.mxu0 0
      %2688 = vmatprep.subr.bf16.mxu0 0
      %2689 = vmatpush1.bf16.msra.mxu0 0
      %2690 = vmatprep.subr.bf16.mxu0 0
      %2691 = vmatpush1.bf16.msra.mxu0 0
      %2692 = vmatprep.subr.bf16.mxu0 0
      %2693 = vmatpush1.bf16.msra.mxu0 0
      %2694 = vmatprep.subr.bf16.mxu0 0
      %2695 = vmatpush1.bf16.msra.mxu0 0
      %2696 = vmatprep.subr.bf16.mxu0 0
      %2697 = vmatpush1.bf16.msra.mxu0 0
      %2698 = vmatprep.mubr.bf16.mxu0 0
      %2699 = vmatmul.mubr.bf16.gmra.mrb[0].mxu0 %v2661
      %v2700 = vpop.f32.mrb[0].mxu0
      %v2701 = vadd.f32 0.0, %v2700
      %v2702 = vpop.f32.mrb[0].mxu0
      %v2703 = vpop.f32.mrb[0].mxu0
      %v2704 = vpop.f32.mrb[0].mxu0
      %2705 = vdwg.mxu0
      %v2707 = vsel %vm1035, %v2657, 0
      %v2710 = vsel %vm1271, %v2425, 0
      %2712 = vmatprep.subr.bf16.mxu0 0
      %2713 = vmatpush1.bf16.msra.mxu0 %v2710
      %2714 = vmatprep.subr.bf16.mxu0 0
      %2715 = vmatpush1.bf16.msra.mxu0 0
      %2716 = vmatprep.subr.bf16.mxu0 0
      %2717 = vmatpush1.bf16.msra.mxu0 0
      %2718 = vmatprep.subr.bf16.mxu0 0
      %2719 = vmatpush1.bf16.msra.mxu0 0
      %2720 = vmatprep.subr.bf16.mxu0 0
      %2721 = vmatpush1.bf16.msra.mxu0 0
      %2722 = vmatprep.subr.bf16.mxu0 0
      %2723 = vmatpush1.bf16.msra.mxu0 0
      %2724 = vmatprep.subr.bf16.mxu0 0
      %2725 = vmatpush1.bf16.msra.mxu0 0
      %2726 = vmatprep.subr.bf16.mxu0 0
      %2727 = vmatpush1.bf16.msra.mxu0 0
      %2728 = vmatprep.subr.bf16.mxu0 0
      %2729 = vmatpush1.bf16.msra.mxu0 0
      %2730 = vmatprep.subr.bf16.mxu0 0
      %2731 = vmatpush1.bf16.msra.mxu0 0
      %2732 = vmatprep.subr.bf16.mxu0 0
      %2733 = vmatpush1.bf16.msra.mxu0 0
      %2734 = vmatprep.subr.bf16.mxu0 0
      %2735 = vmatpush1.bf16.msra.mxu0 0
      %2736 = vmatprep.subr.bf16.mxu0 0
      %2737 = vmatpush1.bf16.msra.mxu0 0
      %2738 = vmatprep.subr.bf16.mxu0 0
      %2739 = vmatpush1.bf16.msra.mxu0 0
      %2740 = vmatprep.subr.bf16.mxu0 0
      %2741 = vmatpush1.bf16.msra.mxu0 0
      %2742 = vmatprep.subr.bf16.mxu0 0
      %2743 = vmatpush1.bf16.msra.mxu0 0
      %2744 = vmatprep.mubr.bf16.mxu0 0
      %2745 = vmatmul.mubr.bf16.gmra.mrb[0].mxu0 %v2707
      %v2746 = vpop.f32.mrb[0].mxu0
      %v2747 = vadd.f32 0.0, %v2746
      %v2748 = vpop.f32.mrb[0].mxu0
      %v2749 = vpop.f32.mrb[0].mxu0
      %v2750 = vpop.f32.mrb[0].mxu0
      %2751 = vdwg.mxu0
      %v2753 = vsel %vm1035, %v2658, 0
      %v2756 = vsel %vm1271, %v2426, 0
      %2758 = vmatprep.subr.bf16.mxu0 0
      %2759 = vmatpush1.bf16.msra.mxu0 %v2756
      %2760 = vmatprep.subr.bf16.mxu0 0
      %2761 = vmatpush1.bf16.msra.mxu0 0
      %2762 = vmatprep.subr.bf16.mxu0 0
      %2763 = vmatpush1.bf16.msra.mxu0 0
      %2764 = vmatprep.subr.bf16.mxu0 0
      %2765 = vmatpush1.bf16.msra.mxu0 0
      %2766 = vmatprep.subr.bf16.mxu0 0
      %2767 = vmatpush1.bf16.msra.mxu0 0
      %2768 = vmatprep.subr.bf16.mxu0 0
      %2769 = vmatpush1.bf16.msra.mxu0 0
      %2770 = vmatprep.subr.bf16.mxu0 0
      %2771 = vmatpush1.bf16.msra.mxu0 0
      %2772 = vmatprep.subr.bf16.mxu0 0
      %2773 = vmatpush1.bf16.msra.mxu0 0
      %2774 = vmatprep.subr.bf16.mxu0 0
      %2775 = vmatpush1.bf16.msra.mxu0 0
      %2776 = vmatprep.subr.bf16.mxu0 0
      %2777 = vmatpush1.bf16.msra.mxu0 0
      %2778 = vmatprep.subr.bf16.mxu0 0
      %2779 = vmatpush1.bf16.msra.mxu0 0
      %2780 = vmatprep.subr.bf16.mxu0 0
      %2781 = vmatpush1.bf16.msra.mxu0 0
      %2782 = vmatprep.subr.bf16.mxu0 0
      %2783 = vmatpush1.bf16.msra.mxu0 0
      %2784 = vmatprep.subr.bf16.mxu0 0
      %2785 = vmatpush1.bf16.msra.mxu0 0
      %2786 = vmatprep.subr.bf16.mxu0 0
      %2787 = vmatpush1.bf16.msra.mxu0 0
      %2788 = vmatprep.subr.bf16.mxu0 0
      %2789 = vmatpush1.bf16.msra.mxu0 0
      %2790 = vmatprep.mubr.bf16.mxu0 0
      %2791 = vmatmul.mubr.bf16.gmra.mrb[0].mxu0 %v2753
      %v2792 = vpop.f32.mrb[0].mxu0
      %v2793 = vadd.f32 0.0, %v2792
      %v2794 = vpop.f32.mrb[0].mxu0
      %v2795 = vpop.f32.mrb[0].mxu0
      %v2796 = vpop.f32.mrb[0].mxu0
      %2797 = vdwg.mxu0
      %v2799 = vsel %vm1035, %v2659, 0
      %v2802 = vsel %vm1271, %v2427, 0
      %2804 = vmatprep.subr.bf16.mxu0 0
      %2805 = vmatpush1.bf16.msra.mxu0 %v2802
      %2806 = vmatprep.subr.bf16.mxu0 0
      %2807 = vmatpush1.bf16.msra.mxu0 0
      %2808 = vmatprep.subr.bf16.mxu0 0
      %2809 = vmatpush1.bf16.msra.mxu0 0
      %2810 = vmatprep.subr.bf16.mxu0 0
      %2811 = vmatpush1.bf16.msra.mxu0 0
      %2812 = vmatprep.subr.bf16.mxu0 0
      %2813 = vmatpush1.bf16.msra.mxu0 0
      %2814 = vmatprep.subr.bf16.mxu0 0
      %2815 = vmatpush1.bf16.msra.mxu0 0
      %2816 = vmatprep.subr.bf16.mxu0 0
      %2817 = vmatpush1.bf16.msra.mxu0 0
      %2818 = vmatprep.subr.bf16.mxu0 0
      %2819 = vmatpush1.bf16.msra.mxu0 0
      %2820 = vmatprep.subr.bf16.mxu0 0
      %2821 = vmatpush1.bf16.msra.mxu0 0
      %2822 = vmatprep.subr.bf16.mxu0 0
      %2823 = vmatpush1.bf16.msra.mxu0 0
      %2824 = vmatprep.subr.bf16.mxu0 0
      %2825 = vmatpush1.bf16.msra.mxu0 0
      %2826 = vmatprep.subr.bf16.mxu0 0
      %2827 = vmatpush1.bf16.msra.mxu0 0
      %2828 = vmatprep.subr.bf16.mxu0 0
      %2829 = vmatpush1.bf16.msra.mxu0 0
      %2830 = vmatprep.subr.bf16.mxu0 0
      %2831 = vmatpush1.bf16.msra.mxu0 0
      %2832 = vmatprep.subr.bf16.mxu0 0
      %2833 = vmatpush1.bf16.msra.mxu0 0
      %2834 = vmatprep.subr.bf16.mxu0 0
      %2835 = vmatpush1.bf16.msra.mxu0 0
      %2836 = vmatprep.mubr.bf16.mxu0 0
      %2837 = vmatmul.mubr.bf16.gmra.mrb[0].mxu0 %v2799
      %v2838 = vpop.f32.mrb[0].mxu0
      %v2839 = vadd.f32 0.0, %v2838
      %v2840 = vpop.f32.mrb[0].mxu0
      %v2841 = vpop.f32.mrb[0].mxu0
      %v2842 = vpop.f32.mrb[0].mxu0
      %2843 = vdwg.mxu0
      %v2844 = vcombine.low %v2701, %v2793
      %v2845 = vcombine.high %v2701, %v2793
      %v2847 = vunpack.c.l.s4 1983009808
      %v2848 = vunpack.c.0.s8 %v2847
      %v2849 = vlaneseq
      %v2850 = vshrl.u32 %v2849, 7
      %v2851 = vsub.s32 %v2848, %v2850
      %v2852 = vrot.slane %v2844, %v2851
      %v2854 = vunpack.c.l.s4 1983009808
      %v2855 = vunpack.c.0.s8 %v2854
      %v2856 = vlaneseq
      %v2857 = vshrl.u32 %v2856, 7
      %v2858 = vsub.s32 %v2855, %v2857
      %v2859 = vrot.slane %v2845, %v2858
      %v2860 = vcombine.low %v2747, %v2839
      %v2861 = vcombine.high %v2747, %v2839
      %v2863 = vunpack.c.l.s4 1983009808
      %v2864 = vunpack.c.0.s8 %v2863
      %v2865 = vlaneseq
      %v2866 = vshrl.u32 %v2865, 7
      %v2867 = vsub.s32 %v2864, %v2866
      %v2868 = vrot.slane %v2860, %v2867
      %v2870 = vunpack.c.l.s4 1983009808
      %v2871 = vunpack.c.0.s8 %v2870
      %v2872 = vlaneseq
      %v2873 = vshrl.u32 %v2872, 7
      %v2874 = vsub.s32 %v2871, %v2873
      %v2875 = vrot.slane %v2861, %v2874
      %v2876 = vcombine.low %v2852, %v2868
      %v2877 = vcombine.high %v2852, %v2868
      %v2879 = vunpack.c.l.s4 1934713408
      %v2880 = vunpack.c.0.s8 %v2879
      %v2881 = vlaneseq
      %v2882 = vshrl.u32 %v2881, 7
      %v2883 = vsub.s32 %v2880, %v2882
      %v2884 = vrot.slane %v2876, %v2883
      %v2886 = vunpack.c.l.s4 1934713408
      %v2887 = vunpack.c.0.s8 %v2886
      %v2888 = vlaneseq
      %v2889 = vshrl.u32 %v2888, 7
      %v2890 = vsub.s32 %v2887, %v2889
      %v2891 = vrot.slane %v2877, %v2890
      %v2892 = vcombine.low %v2859, %v2875
      %v2893 = vcombine.high %v2859, %v2875
      %v2895 = vunpack.c.l.s4 1934713408
      %v2896 = vunpack.c.0.s8 %v2895
      %v2897 = vlaneseq
      %v2898 = vshrl.u32 %v2897, 7
      %v2899 = vsub.s32 %v2896, %v2898
      %v2900 = vrot.slane %v2892, %v2899
      %v2902 = vunpack.c.l.s4 1934713408
      %v2903 = vunpack.c.0.s8 %v2902
      %v2904 = vlaneseq
      %v2905 = vshrl.u32 %v2904, 7
      %v2906 = vsub.s32 %v2903, %v2905
      %v2907 = vrot.slane %v2893, %v2906
      %v2908 = vcombine.high %v2884, 0.0
      %v2909 = vcombine.high %v2891, 0.0
      %v2910 = vcombine.high %v2900, 0.0
      %v2911 = vcombine.high %v2907, 0.0
      %v2912 = vcombine.low %v2884, %v2891
      %v2914 = vunpack.c.l.s4 1983009808
      %v2915 = vunpack.c.0.s8 %v2914
      %v2916 = vlaneseq
      %v2917 = vshrl.u32 %v2916, 7
      %v2918 = vsub.s32 %v2915, %v2917
      %v2919 = vrot.slane %v2912, %v2918
      %v2920 = vcombine.low %v2908, %v2909
      %v2922 = vunpack.c.l.s4 1983009808
      %v2923 = vunpack.c.0.s8 %v2922
      %v2924 = vlaneseq
      %v2925 = vshrl.u32 %v2924, 7
      %v2926 = vsub.s32 %v2923, %v2925
      %v2927 = vrot.slane %v2920, %v2926
      %v2928 = vcombine.low %v2900, %v2907
      %v2930 = vunpack.c.l.s4 1983009808
      %v2931 = vunpack.c.0.s8 %v2930
      %v2932 = vlaneseq
      %v2933 = vshrl.u32 %v2932, 7
      %v2934 = vsub.s32 %v2931, %v2933
      %v2935 = vrot.slane %v2928, %v2934
      %v2936 = vcombine.low %v2910, %v2911
      %v2938 = vunpack.c.l.s4 1983009808
      %v2939 = vunpack.c.0.s8 %v2938
      %v2940 = vlaneseq
      %v2941 = vshrl.u32 %v2940, 7
      %v2942 = vsub.s32 %v2939, %v2941
      %v2943 = vrot.slane %v2936, %v2942
      %v2944 = vcombine.low %v2919, %v2927
      %v2945 = vcombine.high %v2919, %v2927
      %v2947 = vunpack.c.l.s4 1934713408
      %v2948 = vunpack.c.0.s8 %v2947
      %v2949 = vlaneseq
      %v2950 = vshrl.u32 %v2949, 7
      %v2951 = vsub.s32 %v2948, %v2950
      %v2952 = vrot.slane %v2944, %v2951
      %v2954 = vunpack.c.l.s4 1934713408
      %v2955 = vunpack.c.0.s8 %v2954
      %v2956 = vlaneseq
      %v2957 = vshrl.u32 %v2956, 7
      %v2958 = vsub.s32 %v2955, %v2957
      %v2959 = vrot.slane %v2945, %v2958
      %v2960 = vcombine.low %v2935, %v2943
      %v2961 = vcombine.high %v2935, %v2943
      %v2963 = vunpack.c.l.s4 1934713408
      %v2964 = vunpack.c.0.s8 %v2963
      %v2965 = vlaneseq
      %v2966 = vshrl.u32 %v2965, 7
      %v2967 = vsub.s32 %v2964, %v2966
      %v2968 = vrot.slane %v2960, %v2967
      %v2970 = vunpack.c.l.s4 1934713408
      %v2971 = vunpack.c.0.s8 %v2970
      %v2972 = vlaneseq
      %v2973 = vshrl.u32 %v2972, 7
      %v2974 = vsub.s32 %v2971, %v2973
      %v2975 = vrot.slane %v2961, %v2974
      %v2976 = vcombine.low %v2952, %v2968
      %v2977 = vcombine.high %v2952, %v2968
      %v2978 = vcombine.low %v2959, %v2975
      %v2979 = vcombine.high %v2959, %v2975
      %2981 = vrot.lane.b32.xlu0 %v2977, 8
      %v2982 = vpop.permute.xlu0 %2981
      %2985 = vrot.lane.b32.xlu0 %v2978, 16
      %v2986 = vpop.permute.xlu0 %2985
      %2989 = vrot.lane.b32.xlu0 %v2979, 24
      %v2990 = vpop.permute.xlu0 %2989
      %v2992 = vsel %vm1035, %v2976, %v2982
      %v2993 = vsel %vm1602, %v2992, %v2986
      %v2994 = vsel %vm1604, %v2993, %v2990
      %v2995 = vpack.c.bf16 %v2994, %v2994
      %s2996 = scalar_lea.vmem %s5, 16
      %v2997 = vld [vmem:[%s2996] sm:$0xf]
      %v2998 = vld [vmem:[%s2996 + $0x4] sm:$0xf]
      %v2999 = vld [vmem:[%s2996 + $0x8] sm:$0xf]
      %v3000 = vld [vmem:[%s2996 + $0xc] sm:$0xf]
      %v3001 = vlaneseq
      %v3002 = vshrl.u32 %v3001, 7
      %v3003 = vsub.s32 0, %v3002
      %v3004 = vrot.slane %v1904, %v3003
      %v3009 = vunpack.c.l.b16 %v2997
      %v3010 = vunpack.c.l.b16 %v2998
      %v3011 = vunpack.c.l.b16 %v2999
      %v3012 = vunpack.c.l.b16 %v3000
      %v3013 = vpack.c.b16 %v3010, %v3009
      %v3014 = vpack.c.b16 %v3012, %v3011
      %v3018 = vsel %vm482, %v2995, 0
      %3020 = vmatprep.subr.bf16.mxu0 0
      %3021 = vmatpush1.bf16.msra.mxu0 %v3013
      %3022 = vmatprep.subr.bf16.mxu0 0
      %3023 = vmatpush1.bf16.msra.mxu0 %v3014
      %3024 = vmatprep.subr.bf16.mxu0 0
      %3025 = vmatpush1.bf16.msra.mxu0 0
      %3026 = vmatprep.subr.bf16.mxu0 0
      %3027 = vmatpush1.bf16.msra.mxu0 0
      %3028 = vmatprep.subr.bf16.mxu0 0
      %3029 = vmatpush1.bf16.msra.mxu0 0
      %3030 = vmatprep.subr.bf16.mxu0 0
      %3031 = vmatpush1.bf16.msra.mxu0 0
      %3032 = vmatprep.subr.bf16.mxu0 0
      %3033 = vmatpush1.bf16.msra.mxu0 0
      %3034 = vmatprep.subr.bf16.mxu0 0
      %3035 = vmatpush1.bf16.msra.mxu0 0
      %3036 = vmatprep.subr.bf16.mxu0 0
      %3037 = vmatpush1.bf16.msra.mxu0 0
      %3038 = vmatprep.subr.bf16.mxu0 0
      %3039 = vmatpush1.bf16.msra.mxu0 0
      %3040 = vmatprep.subr.bf16.mxu0 0
      %3041 = vmatpush1.bf16.msra.mxu0 0
      %3042 = vmatprep.subr.bf16.mxu0 0
      %3043 = vmatpush1.bf16.msra.mxu0 0
      %3044 = vmatprep.subr.bf16.mxu0 0
      %3045 = vmatpush1.bf16.msra.mxu0 0
      %3046 = vmatprep.subr.bf16.mxu0 0
      %3047 = vmatpush1.bf16.msra.mxu0 0
      %3048 = vmatprep.subr.bf16.mxu0 0
      %3049 = vmatpush1.bf16.msra.mxu0 0
      %3050 = vmatprep.subr.bf16.mxu0 0
      %3051 = vmatpush1.bf16.msra.mxu0 0
      %3052 = vmatprep.mubr.bf16.mxu0 0
      %3053 = vmatmul.mubr.bf16.gmra.mrb[0].mxu0 %v3018
      %v3054 = vpop.f32.mrb[0].mxu0
      %v3055 = vadd.f32 %v3004, %v3054
      %v3056 = vpop.f32.mrb[0].mxu0
      %v3057 = vpop.f32.mrb[0].mxu0
      %v3058 = vpop.f32.mrb[0].mxu0
      %3059 = vdwg.mxu0
      %v3060 = vadd.f32 %v1902, %v3055
      %v3061 = vsel %vm482, %v3060, 0.0
      %3062 = vadd.xlane.f32.xlu0 %v3061
      %v3063 = vpop.xlane.xlu0 %3062
      %v3064 = vmul.f32 %v3063, %v486
      %v3065 = vsub.f32 %v3060, %v3064
      %v3066 = vmul.f32 %v3065, %v3065
      %v3067 = vsel %vm482, %v3066, 0.0
      %3068 = vadd.xlane.f32.xlu0 %v3067
      %v3069 = vpop.xlane.xlu0 %3068
      %v3070 = vmul.f32 %v3069, %v486
      %v3071 = vadd.f32 %v3070, 1e-05
      %v3072 = vrsqrt.pop %v3071
      %v3073 = vmul.f32 %v3065, %v3072
      %v3074 = vlaneseq
      %v3075 = vshrl.u32 %v3074, 7
      %v3076 = vsub.s32 1, %v3075
      %v3077 = vrot.slane %v1904, %v3076
      %v3078 = vmul.f32 %v3073, %v3077
      %v3079 = vlaneseq
      %v3080 = vshrl.u32 %v3079, 7
      %v3081 = vsub.s32 2, %v3080
      %v3082 = vrot.slane %v1904, %v3081
      %v3083 = vadd.f32 %v3078, %v3082
      %v3084 = vpack.c.bf16 %v3083, %v3083
      %s3085 = scalar_lea.vmem %s7, 16
      %v3086 = vld [vmem:[%s3085] sm:$0xf]
      %v3087 = vld [vmem:[%s3085 + $0x4] sm:$0xf]
      %v3088 = vld [vmem:[%s3085 + $0x8] sm:$0xf]
      %v3089 = vld [vmem:[%s3085 + $0xc] sm:$0xf]
      %s3090 = scalar_lea.vmem %s8, 1
      %v3091 = vld [vmem:[%s3090] sm:$0x1]
      %v3093 = vlaneseq
      %v3094 = vshrl.u32 %v3093, 7
      %v3095 = vsub.s32 0, %v3094
      %v3096 = vrot.slane %v3091, %v3095
      %v3102 = vunpack.c.l.b16 %v3086
      %v3103 = vunpack.c.l.b16 %v3087
      %v3104 = vunpack.c.l.b16 %v3088
      %v3105 = vunpack.c.l.b16 %v3089
      %v3106 = vpack.c.b16 %v3103, %v3102
      %v3107 = vpack.c.b16 %v3105, %v3104
      %v3111 = vsel %vm482, %v3084, 0
      %3113 = vmatprep.subr.bf16.mxu0 0
      %3114 = vmatpush1.bf16.msra.mxu0 %v3106
      %3115 = vmatprep.subr.bf16.mxu0 0
      %3116 = vmatpush1.bf16.msra.mxu0 %v3107
      %3117 = vmatprep.subr.bf16.mxu0 0
      %3118 = vmatpush1.bf16.msra.mxu0 0
      %3119 = vmatprep.subr.bf16.mxu0 0
      %3120 = vmatpush1.bf16.msra.mxu0 0
      %3121 = vmatprep.subr.bf16.mxu0 0
      %3122 = vmatpush1.bf16.msra.mxu0 0
      %3123 = vmatprep.subr.bf16.mxu0 0
      %3124 = vmatpush1.bf16.msra.mxu0 0
      %3125 = vmatprep.subr.bf16.mxu0 0
      %3126 = vmatpush1.bf16.msra.mxu0 0
      %3127 = vmatprep.subr.bf16.mxu0 0
      %3128 = vmatpush1.bf16.msra.mxu0 0
      %3129 = vmatprep.subr.bf16.mxu0 0
      %3130 = vmatpush1.bf16.msra.mxu0 0
      %3131 = vmatprep.subr.bf16.mxu0 0
      %3132 = vmatpush1.bf16.msra.mxu0 0
      %3133 = vmatprep.subr.bf16.mxu0 0
      %3134 = vmatpush1.bf16.msra.mxu0 0
      %3135 = vmatprep.subr.bf16.mxu0 0
      %3136 = vmatpush1.bf16.msra.mxu0 0
      %3137 = vmatprep.subr.bf16.mxu0 0
      %3138 = vmatpush1.bf16.msra.mxu0 0
      %3139 = vmatprep.subr.bf16.mxu0 0
      %3140 = vmatpush1.bf16.msra.mxu0 0
      %3141 = vmatprep.subr.bf16.mxu0 0
      %3142 = vmatpush1.bf16.msra.mxu0 0
      %3143 = vmatprep.subr.bf16.mxu0 0
      %3144 = vmatpush1.bf16.msra.mxu0 0
      %3145 = vmatprep.mubr.bf16.mxu0 0
      %3146 = vmatmul.mubr.bf16.gmra.mrb[0].mxu0 %v3111
      %v3147 = vpop.f32.mrb[0].mxu0
      %v3148 = vadd.f32 %v3096, %v3147
      %v3149 = vpop.f32.mrb[0].mxu0
      %v3150 = vpop.f32.mrb[0].mxu0
      %v3151 = vpop.f32.mrb[0].mxu0
      %3152 = vdwg.mxu0
      %v3153 = vmul.f32 %v3148, 0.5
      %v3154 = vmul.f32 %v3148, 0.044715
      %v3155 = vmul.f32 %v3154, %v3148
      %v3156 = vmul.f32 %v3155, %v3148
      %v3157 = vadd.f32 %v3148, %v3156
      %v3158 = vmul.f32 %v3157, 0.7978846
      %v3159 = vtanh.pop %v3158
      %v3160 = vadd.f32 %v3159, 1.0
      %v3161 = vmul.f32 %v3153, %v3160
      %v3162 = vpack.c.bf16 %v3161, %v3161
      %s3163 = scalar_lea.vmem %s9, 64
      %v3164 = vld [vmem:[%s3163] sm:$0xf]
      %v3165 = vld [vmem:[%s3163 + $0x4] sm:$0xf]
      %v3166 = vld [vmem:[%s3163 + $0x8] sm:$0xf]
      %v3167 = vld [vmem:[%s3163 + $0xc] sm:$0xf]
      %v3168 = vld [vmem:[%s3163 + $0x10] sm:$0xf]
      %v3169 = vld [vmem:[%s3163 + $0x14] sm:$0xf]
      %v3170 = vld [vmem:[%s3163 + $0x18] sm:$0xf]
      %v3171 = vld [vmem:[%s3163 + $0x1c] sm:$0xf]
      %v3172 = vld [vmem:[%s3163 + $0x20] sm:$0xf]
      %v3173 = vld [vmem:[%s3163 + $0x24] sm:$0xf]
      %v3174 = vld [vmem:[%s3163 + $0x28] sm:$0xf]
      %v3175 = vld [vmem:[%s3163 + $0x2c] sm:$0xf]
      %v3176 = vld [vmem:[%s3163 + $0x30] sm:$0xf]
      %v3177 = vld [vmem:[%s3163 + $0x34] sm:$0xf]
      %v3178 = vld [vmem:[%s3163 + $0x38] sm:$0xf]
      %v3179 = vld [vmem:[%s3163 + $0x3c] sm:$0xf]
      %v3180 = vlaneseq
      %v3181 = vshrl.u32 %v3180, 7
      %v3182 = vsub.s32 3, %v3181
      %v3183 = vrot.slane %v1904, %v3182
      %v3200 = vunpack.c.l.b16 %v3164
      %v3201 = vunpack.c.l.b16 %v3165
      %v3202 = vunpack.c.l.b16 %v3166
      %v3203 = vunpack.c.l.b16 %v3167
      %v3204 = vunpack.c.l.b16 %v3168
      %v3205 = vunpack.c.l.b16 %v3169
      %v3206 = vunpack.c.l.b16 %v3170
      %v3207 = vunpack.c.l.b16 %v3171
      %v3208 = vunpack.c.l.b16 %v3172
      %v3209 = vunpack.c.l.b16 %v3173
      %v3210 = vunpack.c.l.b16 %v3174
      %v3211 = vunpack.c.l.b16 %v3175
      %v3212 = vunpack.c.l.b16 %v3176
      %v3213 = vunpack.c.l.b16 %v3177
      %v3214 = vunpack.c.l.b16 %v3178
      %v3215 = vunpack.c.l.b16 %v3179
      %v3216 = vpack.c.b16 %v3201, %v3200
      %v3217 = vpack.c.b16 %v3203, %v3202
      %v3218 = vpack.c.b16 %v3205, %v3204
      %v3219 = vpack.c.b16 %v3207, %v3206
      %v3220 = vpack.c.b16 %v3209, %v3208
      %v3221 = vpack.c.b16 %v3211, %v3210
      %v3222 = vpack.c.b16 %v3213, %v3212
      %v3223 = vpack.c.b16 %v3215, %v3214
      %3232 = vmatprep.subr.bf16.mxu0 0
      %3233 = vmatpush1.bf16.msra.mxu0 %v3216
      %3234 = vmatprep.subr.bf16.mxu0 0
      %3235 = vmatpush1.bf16.msra.mxu0 %v3217
      %3236 = vmatprep.subr.bf16.mxu0 0
      %3237 = vmatpush1.bf16.msra.mxu0 %v3218
      %3238 = vmatprep.subr.bf16.mxu0 0
      %3239 = vmatpush1.bf16.msra.mxu0 %v3219
      %3240 = vmatprep.subr.bf16.mxu0 0
      %3241 = vmatpush1.bf16.msra.mxu0 %v3220
      %3242 = vmatprep.subr.bf16.mxu0 0
      %3243 = vmatpush1.bf16.msra.mxu0 %v3221
      %3244 = vmatprep.subr.bf16.mxu0 0
      %3245 = vmatpush1.bf16.msra.mxu0 %v3222
      %3246 = vmatprep.subr.bf16.mxu0 0
      %3247 = vmatpush1.bf16.msra.mxu0 %v3223
      %3248 = vmatprep.subr.bf16.mxu0 0
      %3249 = vmatpush1.bf16.msra.mxu0 0
      %3250 = vmatprep.subr.bf16.mxu0 0
      %3251 = vmatpush1.bf16.msra.mxu0 0
      %3252 = vmatprep.subr.bf16.mxu0 0
      %3253 = vmatpush1.bf16.msra.mxu0 0
      %3254 = vmatprep.subr.bf16.mxu0 0
      %3255 = vmatpush1.bf16.msra.mxu0 0
      %3256 = vmatprep.subr.bf16.mxu0 0
      %3257 = vmatpush1.bf16.msra.mxu0 0
      %3258 = vmatprep.subr.bf16.mxu0 0
      %3259 = vmatpush1.bf16.msra.mxu0 0
      %3260 = vmatprep.subr.bf16.mxu0 0
      %3261 = vmatpush1.bf16.msra.mxu0 0
      %3262 = vmatprep.subr.bf16.mxu0 0
      %3263 = vmatpush1.bf16.msra.mxu0 0
      %3264 = vmatprep.mubr.bf16.mxu0 0
      %3265 = vmatmul.mubr.bf16.gmra.mrb[0].mxu0 %v3162
      %v3266 = vpop.f32.mrb[0].mxu0
      %v3267 = vadd.f32 %v3183, %v3266
      %v3268 = vpop.f32.mrb[0].mxu0
      %v3269 = vpop.f32.mrb[0].mxu0
      %v3270 = vpop.f32.mrb[0].mxu0
      %3271 = vdwg.mxu0
      %v3272 = vadd.f32 %v3083, %v3267
      %v3273 = vsel %vm482, %v3272, 0.0
      %3274 = vadd.xlane.f32.xlu0 %v3273
      %v3275 = vpop.xlane.xlu0 %3274
      %v3276 = vmul.f32 %v3275, %v486
      %v3277 = vsub.f32 %v3272, %v3276
      %v3278 = vmul.f32 %v3277, %v3277
      %v3279 = vsel %vm482, %v3278, 0.0
      %3280 = vadd.xlane.f32.xlu0 %v3279
      %v3281 = vpop.xlane.xlu0 %3280
      %v3282 = vmul.f32 %v3281, %v486
      %v3283 = vadd.f32 %v3282, 1e-05
      %v3284 = vrsqrt.pop %v3283
      %v3285 = vmul.f32 %v3277, %v3284
      %v3286 = vlaneseq
      %v3287 = vshrl.u32 %v3286, 7
      %v3288 = vsub.s32 4, %v3287
      %v3289 = vrot.slane %v1904, %v3288
      %v3290 = vmul.f32 %v3285, %v3289
      %v3291 = vlaneseq
      %v3292 = vshrl.u32 %v3291, 7
      %v3293 = vsub.s32 5, %v3292
      %v3294 = vrot.slane %v1904, %v3293
      %v3295 = vadd.f32 %v3290, %v3294
      %v3296 = vpack.c.bf16 %v3295, %v3295
      %v3297 = vld [vmem:[%s10] sm:$0xf]
      %v3298 = vld [vmem:[%s10 + $0x4] sm:$0xf]
      %v3299 = vld [vmem:[%s10 + $0x8] sm:$0xf]
      %v3300 = vld [vmem:[%s10 + $0xc] sm:$0xf]
      %v3301 = vld [vmem:[%s11] sm:$0x1]
      %v3306 = vunpack.c.l.b16 %v3297
      %v3307 = vunpack.c.l.b16 %v3298
      %v3308 = vunpack.c.l.b16 %v3299
      %v3309 = vunpack.c.l.b16 %v3300
      %v3310 = vpack.c.b16 %v3307, %v3306
      %v3311 = vpack.c.b16 %v3309, %v3308
      %v3315 = vsel %vm482, %v3296, 0
      %3317 = vmatprep.subr.bf16.mxu0 0
      %3318 = vmatpush1.bf16.msra.mxu0 %v3310
      %3319 = vmatprep.subr.bf16.mxu0 0
      %3320 = vmatpush1.bf16.msra.mxu0 %v3311
      %3321 = vmatprep.subr.bf16.mxu0 0
      %3322 = vmatpush1.bf16.msra.mxu0 0
      %3323 = vmatprep.subr.bf16.mxu0 0
      %3324 = vmatpush1.bf16.msra.mxu0 0
      %3325 = vmatprep.subr.bf16.mxu0 0
      %3326 = vmatpush1.bf16.msra.mxu0 0
      %3327 = vmatprep.subr.bf16.mxu0 0
      %3328 = vmatpush1.bf16.msra.mxu0 0
      %3329 = vmatprep.subr.bf16.mxu0 0
      %3330 = vmatpush1.bf16.msra.mxu0 0
      %3331 = vmatprep.subr.bf16.mxu0 0
      %3332 = vmatpush1.bf16.msra.mxu0 0
      %3333 = vmatprep.subr.bf16.mxu0 0
      %3334 = vmatpush1.bf16.msra.mxu0 0
      %3335 = vmatprep.subr.bf16.mxu0 0
      %3336 = vmatpush1.bf16.msra.mxu0 0
      %3337 = vmatprep.subr.bf16.mxu0 0
      %3338 = vmatpush1.bf16.msra.mxu0 0
      %3339 = vmatprep.subr.bf16.mxu0 0
      %3340 = vmatpush1.bf16.msra.mxu0 0
      %3341 = vmatprep.subr.bf16.mxu0 0
      %3342 = vmatpush1.bf16.msra.mxu0 0
      %3343 = vmatprep.subr.bf16.mxu0 0
      %3344 = vmatpush1.bf16.msra.mxu0 0
      %3345 = vmatprep.subr.bf16.mxu0 0
      %3346 = vmatpush1.bf16.msra.mxu0 0
      %3347 = vmatprep.subr.bf16.mxu0 0
      %3348 = vmatpush1.bf16.msra.mxu0 0
      %3349 = vmatprep.mubr.bf16.mxu0 0
      %3350 = vmatmul.mubr.bf16.gmra.mrb[0].mxu0 %v3315
      %v3351 = vpop.f32.mrb[0].mxu0
      %v3352 = vadd.f32 %v3301, %v3351
      %v3353 = vpop.f32.mrb[0].mxu0
      %v3354 = vpop.f32.mrb[0].mxu0
      %v3355 = vpop.f32.mrb[0].mxu0
      %3356 = vdwg.mxu0
      %v3357 = vtanh.pop %v3352
      %v3358 = vpack.c.bf16 %v3357, %v3357
      %v3359 = vld [vmem:[%s12] sm:$0xf]
      %v3360 = vld [vmem:[%s12 + $0x4] sm:$0xf]
      %v3361 = vld [vmem:[%s12 + $0x8] sm:$0xf]
      %v3362 = vld [vmem:[%s12 + $0xc] sm:$0xf]
      %v3363 = vld [vmem:[%s13] sm:$0x1]
      %v3368 = vunpack.c.l.b16 %v3359
      %v3369 = vunpack.c.l.b16 %v3360
      %v3370 = vunpack.c.l.b16 %v3361
      %v3371 = vunpack.c.l.b16 %v3362
      %v3372 = vpack.c.b16 %v3369, %v3368
      %v3373 = vpack.c.b16 %v3371, %v3370
      %v3377 = vsel %vm482, %v3358, 0
      %3379 = vmatprep.subr.bf16.mxu0 0
      %3380 = vmatpush1.bf16.msra.mxu0 %v3372
      %3381 = vmatprep.subr.bf16.mxu0 0
      %3382 = vmatpush1.bf16.msra.mxu0 %v3373
      %3383 = vmatprep.subr.bf16.mxu0 0
      %3384 = vmatpush1.bf16.msra.mxu0 0
      %3385 = vmatprep.subr.bf16.mxu0 0
      %3386 = vmatpush1.bf16.msra.mxu0 0
      %3387 = vmatprep.subr.bf16.mxu0 0
      %3388 = vmatpush1.bf16.msra.mxu0 0
      %3389 = vmatprep.subr.bf16.mxu0 0
      %3390 = vmatpush1.bf16.msra.mxu0 0
      %3391 = vmatprep.subr.bf16.mxu0 0
      %3392 = vmatpush1.bf16.msra.mxu0 0
      %3393 = vmatprep.subr.bf16.mxu0 0
      %3394 = vmatpush1.bf16.msra.mxu0 0
      %3395 = vmatprep.subr.bf16.mxu0 0
      %3396 = vmatpush1.bf16.msra.mxu0 0
      %3397 = vmatprep.subr.bf16.mxu0 0
      %3398 = vmatpush1.bf16.msra.mxu0 0
      %3399 = vmatprep.subr.bf16.mxu0 0
      %3400 = vmatpush1.bf16.msra.mxu0 0
      %3401 = vmatprep.subr.bf16.mxu0 0
      %3402 = vmatpush1.bf16.msra.mxu0 0
      %3403 = vmatprep.subr.bf16.mxu0 0
      %3404 = vmatpush1.bf16.msra.mxu0 0
      %3405 = vmatprep.subr.bf16.mxu0 0
      %3406 = vmatpush1.bf16.msra.mxu0 0
      %3407 = vmatprep.subr.bf16.mxu0 0
      %3408 = vmatpush1.bf16.msra.mxu0 0
      %3409 = vmatprep.subr.bf16.mxu0 0
      %3410 = vmatpush1.bf16.msra.mxu0 0
      %3411 = vmatprep.mubr.bf16.mxu0 0
      %3412 = vmatmul.mubr.bf16.gmra.mrb[0].mxu0 %v3377
      %v3413 = vpop.f32.mrb[0].mxu0
      %v3414 = vadd.f32 %v3363, %v3413
      %v3415 = vpop.f32.mrb[0].mxu0
      %v3416 = vpop.f32.mrb[0].mxu0
      %v3417 = vpop.f32.mrb[0].mxu0
      %3418 = vdwg.mxu0
      %v3419 = vlaneseq
      %v3420 = vshrl.u32 %v3419, 7
      %v3421 = vsub.s32 0, %v3420
      %v3422 = vrot.slane %v3414, %v3421
      %3423 = vst [vmem:[%s476] sm:$0xff] %v3422
      %p3424 = scmp.lt.s32.totalorder %s25, 1
      %s3425 = scalar_select %p3424, %s25, 1
      %s3426 = smul.addr %s3425, 8
      %s3427 = scalar_lea.vmem %s14, %s3426
      // Predicated region
      $region77: #{esm2_sequence_classifier_forward.1} parent=75 // pred_check
        %p3428 = pneg %p347
      $region78: #{esm2_sequence_classifier_forward.1} parent=75 // pred_check_branch
        %3430 = sbr.rel (%p3428) target = $region80
      $region79: #{esm2_sequence_classifier_forward.1} parent=75 // pred_region
        _
      $region80: #{esm2_sequence_classifier_forward.1} parent=75 // pred_fallthru
        _
    $region76: #{esm2_sequence_classifier_forward.1} parent=5 // pred_fallthru
      _
    %p3431 = scmp.le.s32.totalorder 2, %s20
    // Predicated region
    $region81: #{esm2_sequence_classifier_forward.1} parent=5 // pred_check
      %p3432 = pneg %p3431
    $region82: #{esm2_sequence_classifier_forward.1} parent=5 // pred_check_branch
      %3434 = sbr.rel (%p3432) target = $region84
    $region83: #{esm2_sequence_classifier_forward.1} parent=5 // pred_region
      %s3435 = ssub.s32 %s20, 2
      // Predicated region
      $region85: #{esm2_sequence_classifier_forward.1} parent=83 // pred_check
        %p3436 = pneg %p353
      $region86: #{esm2_sequence_classifier_forward.1} parent=83 // pred_check_branch
        %3438 = sbr.rel (%p3436) target = $region88
      $region87: #{esm2_sequence_classifier_forward.1} parent=83 // pred_region
        %p3439 = scmp.lt.s32.totalorder %s26, 1
        %s3440 = scalar_select %p3439, %s26, 1
        %s3441 = smul.addr %s3440, 8
        %s3442 = scalar_lea.vmem %s14, %s3441
      $region88: #{esm2_sequence_classifier_forward.1} parent=83 // pred_fallthru
        _
    $region84: #{esm2_sequence_classifier_forward.1} parent=5 // pred_fallthru
      _
  $region6: #{esm2_sequence_classifier_forward.1} parent=0 // loop_footer
    %s24 = sadd.s32 1, %s20
  $region7: #{esm2_sequence_classifier_forward.1} parent=0 // loop_footer_branch
    %19 = sbr.rel target = $region3
  $region8: #{esm2_sequence_classifier_forward.1} parent=0 // loop_exit
    _

</llo_original>
